<compile_context>
chip_gen: v5e
topology: v5e:2x2
jax: 0.10.0
libtpu: 0.0.40
codegen_flags: <defaults>
</compile_context>

<pallas_src>
import functools

import jax
import jax.numpy as jnp
from jax import lax
from jax.experimental import pallas as pl
from jax.experimental.pallas import tpu as pltpu


def _round_up(x, m):
    return (x + m - 1) // m * m


# ----------------------------------------------------------------------------
# Fused kernel: one grid step == one image.
#
# All spatial data is kept flattened with a padded row stride so every conv
# tap is a single lane-shifted slice (no per-tap reshapes):
#   operand[c, oy*stride + ox + (ky*stride + kx)]
# Columns ox >= W of an accumulator are wrap-around garbage and are simply
# never copied out.
# ----------------------------------------------------------------------------
def _fused_unet_up_kernel(x1_ref, x2_ref, wup_ref, w1a_ref, w1b_ref, w2_ref,
                          sc_ref, sh_ref, o_ref, up_pad, y1_pad, *,
                          H, W, W2, c_in, c_up):
    f32 = jnp.float32
    Wp = W + 2            # padded row stride for the 3x3 convs
    Wd = 2 * W2 + 3       # padded row stride of the dilated ConvT input
    HWp = H * Wp
    HWd = H * Wd

    # ---------------- up = ConvTranspose2d(cusize, upsize, 4, 2, 1) ----------
    # x2 was zero-dilated (stride 2) and zero-padded (k-1-p = 2) on the host,
    # so this is a plain 4x4 stride-1 conv with the flipped kernel: 16
    # accumulating (c_up, c_in) x (c_in, H*Wd) MXU dots, lane axis = spatial.
    wup = wup_ref[...]                                      # (c_up, 16*c_in)
    acc_up = jnp.zeros((c_up, HWd), f32)
    for ky in range(4):
        for kx in range(4):
            t = ky * Wd + kx
            tap = ky * 4 + kx
            acc_up = acc_up + jnp.dot(
                wup[:, tap * c_in:(tap + 1) * c_in],
                x2_ref[0, :, pl.ds(t, HWd)],
                preferred_element_type=f32)

    # Scatter the W valid columns of each output row into a zero-bordered
    # stride-Wp buffer so conv1 can consume `up` like the padded inputs1.
    up_pad[...] = jnp.zeros(up_pad.shape, f32)
    for oy in range(H):
        up_pad[:, pl.ds((oy + 1) * Wp + 1, W)] = acc_up[:, oy * Wd:oy * Wd + W]

    # -------- conv1 = BN(conv3x3(cat([inputs1, up]))) * gamma ----------------
    # concat fused: two dots per tap, one on the inputs1 half, one on the up
    # half, into the same accumulator.  BN (eval) and gamma are one affine.
    w1a = w1a_ref[...]                                      # (c_up, 9*c_up)
    w1b = w1b_ref[...]
    acc1 = jnp.zeros((c_up, HWp), f32)
    for ky in range(3):
        for kx in range(3):
            t = ky * Wp + kx
            tap = ky * 3 + kx
            acc1 = acc1 + jnp.dot(
                w1a[:, tap * c_up:(tap + 1) * c_up],
                x1_ref[0, :, pl.ds(t, HWp)],
                preferred_element_type=f32)
            acc1 = acc1 + jnp.dot(
                w1b[:, tap * c_up:(tap + 1) * c_up],
                up_pad[:, pl.ds(t, HWp)],
                preferred_element_type=f32)
    y1 = acc1 * sc_ref[...] + sh_ref[...]

    y1_pad[...] = jnp.zeros(y1_pad.shape, f32)
    for oy in range(H):
        y1_pad[:, pl.ds((oy + 1) * Wp + 1, W)] = y1[:, oy * Wp:oy * Wp + W]

    # ---------------- conv2 = GELU(conv3x3(y1)) ------------------------------
    w2 = w2_ref[...]                                        # (c_up, 9*c_up)
    acc2 = jnp.zeros((c_up, HWp), f32)
    for ky in range(3):
        for kx in range(3):
            t = ky * Wp + kx
            tap = ky * 3 + kx
            acc2 = acc2 + jnp.dot(
                w2[:, tap * c_up:(tap + 1) * c_up],
                y1_pad[:, pl.ds(t, HWp)],
                preferred_element_type=f32)
    # exact (erf-based) GELU, matching torch.nn.GELU()
    y2 = 0.5 * acc2 * (1.0 + lax.erf(acc2 * 0.7071067811865476))

    for oy in range(H):
        o_ref[0, :, pl.ds(oy * W, W)] = (
            y2[:, oy * Wp:oy * Wp + W].astype(o_ref.dtype))


# ----------------------------------------------------------------------------
# Wrapper: host-side input prep + weight packing + single pallas_call.
# Matches unetUp(cusize, upsize, up_='ConvT', k=4, s=2, p=1).forward(i1, i2).
# ----------------------------------------------------------------------------
def unet_up_forward(inputs1, inputs2, params):
    n, c_up, h, w = inputs1.shape                    # NCHW
    n2, c_in, h2, w2 = inputs2.shape                 # NCHW
    assert n == n2 and h == 2 * h2 and w == 2 * w2

    wp = w + 2                                       # 3x3 padded row stride
    wd = 2 * w2 + 3                                  # dilated ConvT row stride
    hwp = h * wp
    hwd = h * wd
    # flat lane lengths: valid data + slack so every tap slice stays in bounds
    la = _round_up(2 * wp + 2 + hwp, 128)            # stride-wp operands
    lb = _round_up(3 * wd + 3 + hwd, 128)            # dilated ConvT operand

    # ---- cheap XLA prep on the *inputs* only --------------------------------
    # inputs1: zero-pad by 1 (3x3 halo) and flatten (row stride wp).
    x1p = jnp.pad(inputs1, ((0, 0), (0, 0), (1, 1), (1, 1)))
    x1f = x1p.reshape(n, c_up, (h + 2) * wp)
    x1f = jnp.pad(x1f, ((0, 0), (0, 0), (0, la - (h + 2) * wp)))

    # inputs2: interior-dilate by the ConvT stride and pad by k-1-p = 2
    # (lax.pad with interior padding, no scatter), then flatten.
    x2d = lax.pad(inputs2, jnp.array(0, inputs2.dtype),
                  ((0, 0, 0), (0, 0, 0), (2, 2, 1), (2, 2, 1)))
    x2f = x2d.reshape(n, c_in, (2 * h2 + 3) * wd)
    x2f = jnp.pad(x2f, ((0, 0), (0, 0), (0, lb - (2 * h2 + 3) * wd)))

    # ---- lane-dense 2-D weight packing --------------------------------------
    # ConvT weight (PyTorch (c_in, c_up, 4, 4)) -> flipped conv taps packed as
    # (c_up, 16*c_in); tap (ky,kx) uses columns [(ky*4+kx)*c_in, ...+c_in).
    w_up_flip = jnp.flip(params["w_up_t"], axis=(2, 3))
    wup_packed = jnp.transpose(w_up_flip, (1, 2, 3, 0)).reshape(c_up, 16 * c_in)

    # conv1 weight (c_up, 2*c_up, 3, 3) OIHW, split into inputs1-half/up-half.
    w1 = params["w1_oihw"]
    w1a = jnp.transpose(w1[:, :c_up], (0, 2, 3, 1)).reshape(c_up, 9 * c_up)
    w1b = jnp.transpose(w1[:, c_up:], (0, 2, 3, 1)).reshape(c_up, 9 * c_up)
    w2p = jnp.transpose(params["w2_oihw"], (0, 2, 3, 1)).reshape(c_up, 9 * c_up)

    scale = params["scale1"].reshape(c_up, 1).astype(jnp.float32)
    shift = params["shift1"].reshape(c_up, 1).astype(jnp.float32)

    kernel = functools.partial(_fused_unet_up_kernel,
                               H=h, W=w, W2=w2, c_in=c_in, c_up=c_up)

    out_flat = pl.pallas_call(
        kernel,
        out_shape=jax.ShapeDtypeStruct((n, c_up, h * w), inputs1.dtype),
        grid=(n,),
        in_specs=[
            pl.BlockSpec((1, c_up, la), lambda i: (i, 0, 0)),       # inputs1
            pl.BlockSpec((1, c_in, lb), lambda i: (i, 0, 0)),       # inputs2
            pl.BlockSpec((c_up, 16 * c_in), lambda i: (0, 0)),      # w_up
            pl.BlockSpec((c_up, 9 * c_up), lambda i: (0, 0)),       # w1 (x1)
            pl.BlockSpec((c_up, 9 * c_up), lambda i: (0, 0)),       # w1 (up)
            pl.BlockSpec((c_up, 9 * c_up), lambda i: (0, 0)),       # w2
            pl.BlockSpec((c_up, 1), lambda i: (0, 0)),              # scale
            pl.BlockSpec((c_up, 1), lambda i: (0, 0)),              # shift
        ],
        out_specs=pl.BlockSpec((1, c_up, h * w), lambda i: (i, 0, 0)),
        scratch_shapes=[
            pltpu.VMEM((c_up, la), jnp.float32),    # zero-bordered `up`
            pltpu.VMEM((c_up, la), jnp.float32),    # zero-bordered conv1 out
        ],
        compiler_params=pltpu.CompilerParams(
            dimension_semantics=("parallel",)),
    )(x1f, x2f, wup_packed, w1a, w1b, w2p, scale, shift)

    return out_flat.reshape(n, c_up, h, w)           # NCHW via pure reshape


# ----------------------------------------------------------------------------
# Pure-JAX reference (correctness check of the Pallas path)
# ----------------------------------------------------------------------------
def unet_up_reference(inputs1, inputs2, params):
    dn = ("NCHW", "HWIO", "NCHW")
    w_up_flip_hwio = jnp.transpose(jnp.flip(params["w_up_t"], (2, 3)),
                                   (2, 3, 0, 1))
    w1_hwio = jnp.transpose(params["w1_oihw"], (2, 3, 1, 0))
    w2_hwio = jnp.transpose(params["w2_oihw"], (2, 3, 1, 0))

    up = lax.conv_general_dilated(
        inputs2, w_up_flip_hwio, window_strides=(1, 1),
        padding=[(2, 2), (2, 2)], lhs_dilation=(2, 2), dimension_numbers=dn)
    cat = jnp.concatenate([inputs1, up], axis=1)
    y = lax.conv_general_dilated(cat, w1_hwio, (1, 1), [(1, 1), (1, 1)],
                                 dimension_numbers=dn)
    y = (y * params["scale1"].reshape(1, -1, 1, 1)
         + params["shift1"].reshape(1, -1, 1, 1))
    y = lax.conv_general_dilated(y, w2_hwio, (1, 1), [(1, 1), (1, 1)],
                                 dimension_numbers=dn)
    return 0.5 * y * (1.0 + lax.erf(y * 0.7071067811865476))


# ----------------------------------------------------------------------------
# Deterministic synthetic parameters (matching the module's shapes)
# ----------------------------------------------------------------------------
def make_params(key, cusize, upsize, gamma_init=1e-6):
    ks = jax.random.split(key, 7)
    # ConvTranspose2d(cusize, upsize, 4, 2, 1, bias=False): (in, out, kH, kW)
    w_up_t = jax.random.normal(ks[0], (cusize, upsize, 4, 4), jnp.float32) * 0.1
    # Conv2d(2*upsize, upsize, 3, 1, 1, bias=False) OIHW
    w1_oihw = jax.random.normal(ks[1], (upsize, 2 * upsize, 3, 3),
                                jnp.float32) * 0.1
    # Conv2d(upsize, upsize, 3, 1, 1, bias=False) OIHW
    w2_oihw = jax.random.normal(ks[2], (upsize, upsize, 3, 3),
                                jnp.float32) * 0.1

    # BatchNorm2d(upsize) eval-mode running stats
    bn_w = 1.0 + 0.1 * jax.random.normal(ks[3], (upsize,), jnp.float32)
    bn_b = 0.1 * jax.random.normal(ks[4], (upsize,), jnp.float32)
    bn_mean = 0.1 * jax.random.normal(ks[5], (upsize,), jnp.float32)
    bn_var = 1.0 + 0.1 * jax.random.uniform(ks[6], (upsize,), jnp.float32)
    eps = 1e-5
    gamma = gamma_init * jnp.ones((upsize,), jnp.float32)

    # fold BN(x) * gamma into one per-channel affine
    inv_std = bn_w / jnp.sqrt(bn_var + eps)
    scale1 = inv_std * gamma
    shift1 = (bn_b - bn_mean * inv_std) * gamma

    return {"w_up_t": w_up_t, "w1_oihw": w1_oihw, "w2_oihw": w2_oihw,
            "scale1": scale1, "shift1": shift1}


if __name__ == "__main__":
    N, cusize, upsize = 2, 8, 4
    H, W = 16, 16              # spatial size of inputs1 (and of the output)
    H2, W2 = H // 2, W // 2    # spatial size of inputs2 (pre-upsample)

    key = jax.random.PRNGKey(0)
    k1, k2, kp = jax.random.split(key, 3)
    inputs1 = jax.random.normal(k1, (N, upsize, H, W), jnp.float32)    # NCHW
    inputs2 = jax.random.normal(k2, (N, cusize, H2, W2), jnp.float32)  # NCHW

    fwd = jax.jit(unet_up_forward)
    ref = jax.jit(unet_up_reference)

    # check both the module's default tiny gamma (1e-6) and an O(1) gamma so
    # the test exercises real dynamic range through conv2/GELU.
    for gamma_init in (1e-6, 1.0):
        params = make_params(kp, cusize, upsize, gamma_init=gamma_init)
        out = jax.block_until_ready(fwd(inputs1, inputs2, params))
        expect = jax.block_until_ready(ref(inputs1, inputs2, params))
        assert out.shape == (N, upsize, H, W), out.shape
        err = float(jnp.max(jnp.abs(out - expect)))
        assert jnp.allclose(out, expect, rtol=1e-3, atol=1e-5), (gamma_init, err)

    print("KERNEL_OK")
</pallas_src>

<mosaic_0001>
module attributes {stable_mosaic.version = 11 : i64} {
  func.func @_fused_unet_up_kernel(%arg0: i32, %arg1: memref<1x4x384xf32, #tpu.memory_space<vmem>>, %arg2: memref<1x8x384xf32, #tpu.memory_space<vmem>>, %arg3: memref<4x128xf32, #tpu.memory_space<vmem>>, %arg4: memref<4x36xf32, #tpu.memory_space<vmem>>, %arg5: memref<4x36xf32, #tpu.memory_space<vmem>>, %arg6: memref<4x36xf32, #tpu.memory_space<vmem>>, %arg7: memref<4x1xf32, #tpu.memory_space<vmem>>, %arg8: memref<4x1xf32, #tpu.memory_space<vmem>>, %arg9: memref<1x4x256xf32, #tpu.memory_space<vmem>>, %arg10: memref<4x384xf32, #tpu.memory_space<vmem>>, %arg11: memref<4x384xf32, #tpu.memory_space<vmem>>) attributes {dimension_semantics = [#tpu.dimension_semantics<parallel>], iteration_bounds = array<i64: 2>, scalar_prefetch = 0 : i64, scratch_operands = 2 : i64, tpu.core_type = #tpu.core_type<tc>, window_params = [{transform_indices = @transform_0, window_bounds = array<i64: 1, 4, 384>}, {transform_indices = @transform_1, window_bounds = array<i64: 1, 8, 384>}, {pipeline_mode = #tpu.pipeline_mode<synchronous>, transform_indices = @transform_2, window_bounds = array<i64: 4, 128>}, {pipeline_mode = #tpu.pipeline_mode<synchronous>, transform_indices = @transform_3, window_bounds = array<i64: 4, 36>}, {pipeline_mode = #tpu.pipeline_mode<synchronous>, transform_indices = @transform_4, window_bounds = array<i64: 4, 36>}, {pipeline_mode = #tpu.pipeline_mode<synchronous>, transform_indices = @transform_5, window_bounds = array<i64: 4, 36>}, {pipeline_mode = #tpu.pipeline_mode<synchronous>, transform_indices = @transform_6, window_bounds = array<i64: 4, 1>}, {pipeline_mode = #tpu.pipeline_mode<synchronous>, transform_indices = @transform_7, window_bounds = array<i64: 4, 1>}, {transform_indices = @transform_8, window_bounds = array<i64: 1, 4, 256>}]} {
    %c0 = arith.constant 0 : index
    %c0_0 = arith.constant 0 : index
    %0 = vector.load %arg3[%c0, %c0_0] : memref<4x128xf32, #tpu.memory_space<vmem>>, vector<4x128xf32>
    %cst = arith.constant 0.000000e+00 : f32
    %1 = vector.broadcast %cst : f32 to vector<4x304xf32>
    %2 = vector.extract_strided_slice %0 {offsets = [0, 0], sizes = [4, 8], strides = [1, 1]} : vector<4x128xf32> to vector<4x8xf32>
    %c0_1 = arith.constant 0 : index
    %c0_2 = arith.constant 0 : index
    %c0_3 = arith.constant 0 : index
    %3 = vector.load %arg2[%c0_1, %c0_2, %c0_3] : memref<1x8x384xf32, #tpu.memory_space<vmem>>, vector<1x8x304xf32>
    %4 = vector.shape_cast %3 : vector<1x8x304xf32> to vector<8x304xf32>
    %cst_4 = arith.constant dense<0.000000e+00> : vector<4x304xf32>
    %5 = tpu.matmul %2, %4, %cst_4 {dimension_numbers = #tpu.dot_dimension_numbers<[1], [0], [0], [1], [0, 0, 1, 1], [], []>} : vector<4x8xf32>, vector<8x304xf32>, vector<4x304xf32> -> vector<4x304xf32>
    %6 = arith.addf %1, %5 : vector<4x304xf32>
    %7 = vector.extract_strided_slice %0 {offsets = [0, 8], sizes = [4, 8], strides = [1, 1]} : vector<4x128xf32> to vector<4x8xf32>
    %c0_5 = arith.constant 0 : index
    %c0_6 = arith.constant 0 : index
    %c1 = arith.constant 1 : index
    %8 = vector.load %arg2[%c0_5, %c0_6, %c1] : memref<1x8x384xf32, #tpu.memory_space<vmem>>, vector<1x8x304xf32>
    %9 = vector.shape_cast %8 : vector<1x8x304xf32> to vector<8x304xf32>
    %cst_7 = arith.constant dense<0.000000e+00> : vector<4x304xf32>
    %10 = tpu.matmul %7, %9, %cst_7 {dimension_numbers = #tpu.dot_dimension_numbers<[1], [0], [0], [1], [0, 0, 1, 1], [], []>} : vector<4x8xf32>, vector<8x304xf32>, vector<4x304xf32> -> vector<4x304xf32>
    %11 = arith.addf %6, %10 : vector<4x304xf32>
    %12 = vector.extract_strided_slice %0 {offsets = [0, 16], sizes = [4, 8], strides = [1, 1]} : vector<4x128xf32> to vector<4x8xf32>
    %c0_8 = arith.constant 0 : index
    %c0_9 = arith.constant 0 : index
    %c2 = arith.constant 2 : index
    %13 = vector.load %arg2[%c0_8, %c0_9, %c2] : memref<1x8x384xf32, #tpu.memory_space<vmem>>, vector<1x8x304xf32>
    %14 = vector.shape_cast %13 : vector<1x8x304xf32> to vector<8x304xf32>
    %cst_10 = arith.constant dense<0.000000e+00> : vector<4x304xf32>
    %15 = tpu.matmul %12, %14, %cst_10 {dimension_numbers = #tpu.dot_dimension_numbers<[1], [0], [0], [1], [0, 0, 1, 1], [], []>} : vector<4x8xf32>, vector<8x304xf32>, vector<4x304xf32> -> vector<4x304xf32>
    %16 = arith.addf %11, %15 : vector<4x304xf32>
    %17 = vector.extract_strided_slice %0 {offsets = [0, 24], sizes = [4, 8], strides = [1, 1]} : vector<4x128xf32> to vector<4x8xf32>
    %c0_11 = arith.constant 0 : index
    %c0_12 = arith.constant 0 : index
    %c3 = arith.constant 3 : index
    %18 = vector.load %arg2[%c0_11, %c0_12, %c3] : memref<1x8x384xf32, #tpu.memory_space<vmem>>, vector<1x8x304xf32>
    %19 = vector.shape_cast %18 : vector<1x8x304xf32> to vector<8x304xf32>
    %cst_13 = arith.constant dense<0.000000e+00> : vector<4x304xf32>
    %20 = tpu.matmul %17, %19, %cst_13 {dimension_numbers = #tpu.dot_dimension_numbers<[1], [0], [0], [1], [0, 0, 1, 1], [], []>} : vector<4x8xf32>, vector<8x304xf32>, vector<4x304xf32> -> vector<4x304xf32>
    %21 = arith.addf %16, %20 : vector<4x304xf32>
    %22 = vector.extract_strided_slice %0 {offsets = [0, 32], sizes = [4, 8], strides = [1, 1]} : vector<4x128xf32> to vector<4x8xf32>
    %c0_14 = arith.constant 0 : index
    %c0_15 = arith.constant 0 : index
    %c19 = arith.constant 19 : index
    %23 = vector.load %arg2[%c0_14, %c0_15, %c19] : memref<1x8x384xf32, #tpu.memory_space<vmem>>, vector<1x8x304xf32>
    %24 = vector.shape_cast %23 : vector<1x8x304xf32> to vector<8x304xf32>
    %cst_16 = arith.constant dense<0.000000e+00> : vector<4x304xf32>
    %25 = tpu.matmul %22, %24, %cst_16 {dimension_numbers = #tpu.dot_dimension_numbers<[1], [0], [0], [1], [0, 0, 1, 1], [], []>} : vector<4x8xf32>, vector<8x304xf32>, vector<4x304xf32> -> vector<4x304xf32>
    %26 = arith.addf %21, %25 : vector<4x304xf32>
    %27 = vector.extract_strided_slice %0 {offsets = [0, 40], sizes = [4, 8], strides = [1, 1]} : vector<4x128xf32> to vector<4x8xf32>
    %c0_17 = arith.constant 0 : index
    %c0_18 = arith.constant 0 : index
    %c20 = arith.constant 20 : index
    %28 = vector.load %arg2[%c0_17, %c0_18, %c20] : memref<1x8x384xf32, #tpu.memory_space<vmem>>, vector<1x8x304xf32>
    %29 = vector.shape_cast %28 : vector<1x8x304xf32> to vector<8x304xf32>
    %cst_19 = arith.constant dense<0.000000e+00> : vector<4x304xf32>
    %30 = tpu.matmul %27, %29, %cst_19 {dimension_numbers = #tpu.dot_dimension_numbers<[1], [0], [0], [1], [0, 0, 1, 1], [], []>} : vector<4x8xf32>, vector<8x304xf32>, vector<4x304xf32> -> vector<4x304xf32>
    %31 = arith.addf %26, %30 : vector<4x304xf32>
    %32 = vector.extract_strided_slice %0 {offsets = [0, 48], sizes = [4, 8], strides = [1, 1]} : vector<4x128xf32> to vector<4x8xf32>
    %c0_20 = arith.constant 0 : index
    %c0_21 = arith.constant 0 : index
    %c21 = arith.constant 21 : index
    %33 = vector.load %arg2[%c0_20, %c0_21, %c21] : memref<1x8x384xf32, #tpu.memory_space<vmem>>, vector<1x8x304xf32>
    %34 = vector.shape_cast %33 : vector<1x8x304xf32> to vector<8x304xf32>
    %cst_22 = arith.constant dense<0.000000e+00> : vector<4x304xf32>
    %35 = tpu.matmul %32, %34, %cst_22 {dimension_numbers = #tpu.dot_dimension_numbers<[1], [0], [0], [1], [0, 0, 1, 1], [], []>} : vector<4x8xf32>, vector<8x304xf32>, vector<4x304xf32> -> vector<4x304xf32>
    %36 = arith.addf %31, %35 : vector<4x304xf32>
    %37 = vector.extract_strided_slice %0 {offsets = [0, 56], sizes = [4, 8], strides = [1, 1]} : vector<4x128xf32> to vector<4x8xf32>
    %c0_23 = arith.constant 0 : index
    %c0_24 = arith.constant 0 : index
    %c22 = arith.constant 22 : index
    %38 = vector.load %arg2[%c0_23, %c0_24, %c22] : memref<1x8x384xf32, #tpu.memory_space<vmem>>, vector<1x8x304xf32>
    %39 = vector.shape_cast %38 : vector<1x8x304xf32> to vector<8x304xf32>
    %cst_25 = arith.constant dense<0.000000e+00> : vector<4x304xf32>
    %40 = tpu.matmul %37, %39, %cst_25 {dimension_numbers = #tpu.dot_dimension_numbers<[1], [0], [0], [1], [0, 0, 1, 1], [], []>} : vector<4x8xf32>, vector<8x304xf32>, vector<4x304xf32> -> vector<4x304xf32>
    %41 = arith.addf %36, %40 : vector<4x304xf32>
    %42 = vector.extract_strided_slice %0 {offsets = [0, 64], sizes = [4, 8], strides = [1, 1]} : vector<4x128xf32> to vector<4x8xf32>
    %c0_26 = arith.constant 0 : index
    %c0_27 = arith.constant 0 : index
    %c38 = arith.constant 38 : index
    %43 = vector.load %arg2[%c0_26, %c0_27, %c38] : memref<1x8x384xf32, #tpu.memory_space<vmem>>, vector<1x8x304xf32>
    %44 = vector.shape_cast %43 : vector<1x8x304xf32> to vector<8x304xf32>
    %cst_28 = arith.constant dense<0.000000e+00> : vector<4x304xf32>
    %45 = tpu.matmul %42, %44, %cst_28 {dimension_numbers = #tpu.dot_dimension_numbers<[1], [0], [0], [1], [0, 0, 1, 1], [], []>} : vector<4x8xf32>, vector<8x304xf32>, vector<4x304xf32> -> vector<4x304xf32>
    %46 = arith.addf %41, %45 : vector<4x304xf32>
    %47 = vector.extract_strided_slice %0 {offsets = [0, 72], sizes = [4, 8], strides = [1, 1]} : vector<4x128xf32> to vector<4x8xf32>
    %c0_29 = arith.constant 0 : index
    %c0_30 = arith.constant 0 : index
    %c39 = arith.constant 39 : index
    %48 = vector.load %arg2[%c0_29, %c0_30, %c39] : memref<1x8x384xf32, #tpu.memory_space<vmem>>, vector<1x8x304xf32>
    %49 = vector.shape_cast %48 : vector<1x8x304xf32> to vector<8x304xf32>
    %cst_31 = arith.constant dense<0.000000e+00> : vector<4x304xf32>
    %50 = tpu.matmul %47, %49, %cst_31 {dimension_numbers = #tpu.dot_dimension_numbers<[1], [0], [0], [1], [0, 0, 1, 1], [], []>} : vector<4x8xf32>, vector<8x304xf32>, vector<4x304xf32> -> vector<4x304xf32>
    %51 = arith.addf %46, %50 : vector<4x304xf32>
    %52 = vector.extract_strided_slice %0 {offsets = [0, 80], sizes = [4, 8], strides = [1, 1]} : vector<4x128xf32> to vector<4x8xf32>
    %c0_32 = arith.constant 0 : index
    %c0_33 = arith.constant 0 : index
    %c40 = arith.constant 40 : index
    %53 = vector.load %arg2[%c0_32, %c0_33, %c40] : memref<1x8x384xf32, #tpu.memory_space<vmem>>, vector<1x8x304xf32>
    %54 = vector.shape_cast %53 : vector<1x8x304xf32> to vector<8x304xf32>
    %cst_34 = arith.constant dense<0.000000e+00> : vector<4x304xf32>
    %55 = tpu.matmul %52, %54, %cst_34 {dimension_numbers = #tpu.dot_dimension_numbers<[1], [0], [0], [1], [0, 0, 1, 1], [], []>} : vector<4x8xf32>, vector<8x304xf32>, vector<4x304xf32> -> vector<4x304xf32>
    %56 = arith.addf %51, %55 : vector<4x304xf32>
    %57 = vector.extract_strided_slice %0 {offsets = [0, 88], sizes = [4, 8], strides = [1, 1]} : vector<4x128xf32> to vector<4x8xf32>
    %c0_35 = arith.constant 0 : index
    %c0_36 = arith.constant 0 : index
    %c41 = arith.constant 41 : index
    %58 = vector.load %arg2[%c0_35, %c0_36, %c41] : memref<1x8x384xf32, #tpu.memory_space<vmem>>, vector<1x8x304xf32>
    %59 = vector.shape_cast %58 : vector<1x8x304xf32> to vector<8x304xf32>
    %cst_37 = arith.constant dense<0.000000e+00> : vector<4x304xf32>
    %60 = tpu.matmul %57, %59, %cst_37 {dimension_numbers = #tpu.dot_dimension_numbers<[1], [0], [0], [1], [0, 0, 1, 1], [], []>} : vector<4x8xf32>, vector<8x304xf32>, vector<4x304xf32> -> vector<4x304xf32>
    %61 = arith.addf %56, %60 : vector<4x304xf32>
    %62 = vector.extract_strided_slice %0 {offsets = [0, 96], sizes = [4, 8], strides = [1, 1]} : vector<4x128xf32> to vector<4x8xf32>
    %c0_38 = arith.constant 0 : index
    %c0_39 = arith.constant 0 : index
    %c57 = arith.constant 57 : index
    %63 = vector.load %arg2[%c0_38, %c0_39, %c57] : memref<1x8x384xf32, #tpu.memory_space<vmem>>, vector<1x8x304xf32>
    %64 = vector.shape_cast %63 : vector<1x8x304xf32> to vector<8x304xf32>
    %cst_40 = arith.constant dense<0.000000e+00> : vector<4x304xf32>
    %65 = tpu.matmul %62, %64, %cst_40 {dimension_numbers = #tpu.dot_dimension_numbers<[1], [0], [0], [1], [0, 0, 1, 1], [], []>} : vector<4x8xf32>, vector<8x304xf32>, vector<4x304xf32> -> vector<4x304xf32>
    %66 = arith.addf %61, %65 : vector<4x304xf32>
    %67 = vector.extract_strided_slice %0 {offsets = [0, 104], sizes = [4, 8], strides = [1, 1]} : vector<4x128xf32> to vector<4x8xf32>
    %c0_41 = arith.constant 0 : index
    %c0_42 = arith.constant 0 : index
    %c58 = arith.constant 58 : index
    %68 = vector.load %arg2[%c0_41, %c0_42, %c58] : memref<1x8x384xf32, #tpu.memory_space<vmem>>, vector<1x8x304xf32>
    %69 = vector.shape_cast %68 : vector<1x8x304xf32> to vector<8x304xf32>
    %cst_43 = arith.constant dense<0.000000e+00> : vector<4x304xf32>
    %70 = tpu.matmul %67, %69, %cst_43 {dimension_numbers = #tpu.dot_dimension_numbers<[1], [0], [0], [1], [0, 0, 1, 1], [], []>} : vector<4x8xf32>, vector<8x304xf32>, vector<4x304xf32> -> vector<4x304xf32>
    %71 = arith.addf %66, %70 : vector<4x304xf32>
    %72 = vector.extract_strided_slice %0 {offsets = [0, 112], sizes = [4, 8], strides = [1, 1]} : vector<4x128xf32> to vector<4x8xf32>
    %c0_44 = arith.constant 0 : index
    %c0_45 = arith.constant 0 : index
    %c59 = arith.constant 59 : index
    %73 = vector.load %arg2[%c0_44, %c0_45, %c59] : memref<1x8x384xf32, #tpu.memory_space<vmem>>, vector<1x8x304xf32>
    %74 = vector.shape_cast %73 : vector<1x8x304xf32> to vector<8x304xf32>
    %cst_46 = arith.constant dense<0.000000e+00> : vector<4x304xf32>
    %75 = tpu.matmul %72, %74, %cst_46 {dimension_numbers = #tpu.dot_dimension_numbers<[1], [0], [0], [1], [0, 0, 1, 1], [], []>} : vector<4x8xf32>, vector<8x304xf32>, vector<4x304xf32> -> vector<4x304xf32>
    %76 = arith.addf %71, %75 : vector<4x304xf32>
    %77 = vector.extract_strided_slice %0 {offsets = [0, 120], sizes = [4, 8], strides = [1, 1]} : vector<4x128xf32> to vector<4x8xf32>
    %c0_47 = arith.constant 0 : index
    %c0_48 = arith.constant 0 : index
    %c60 = arith.constant 60 : index
    %78 = vector.load %arg2[%c0_47, %c0_48, %c60] : memref<1x8x384xf32, #tpu.memory_space<vmem>>, vector<1x8x304xf32>
    %79 = vector.shape_cast %78 : vector<1x8x304xf32> to vector<8x304xf32>
    %cst_49 = arith.constant dense<0.000000e+00> : vector<4x304xf32>
    %80 = tpu.matmul %77, %79, %cst_49 {dimension_numbers = #tpu.dot_dimension_numbers<[1], [0], [0], [1], [0, 0, 1, 1], [], []>} : vector<4x8xf32>, vector<8x304xf32>, vector<4x304xf32> -> vector<4x304xf32>
    %81 = arith.addf %76, %80 : vector<4x304xf32>
    %cst_50 = arith.constant 0.000000e+00 : f32
    %82 = vector.broadcast %cst_50 : f32 to vector<4x384xf32>
    %c0_51 = arith.constant 0 : index
    %c0_52 = arith.constant 0 : index
    %83 = vector.load %arg10[%c0_51, %c0_52] : memref<4x384xf32, #tpu.memory_space<vmem>>, vector<4x384xf32>
    tpu.vector_store %arg10[%c0_51, %c0_52], %82 {strides = array<i32>} : memref<4x384xf32, #tpu.memory_space<vmem>>, vector<4x384xf32>,
    %84 = vector.extract_strided_slice %81 {offsets = [0, 0], sizes = [4, 16], strides = [1, 1]} : vector<4x304xf32> to vector<4x16xf32>
    %c0_53 = arith.constant 0 : index
    %c19_54 = arith.constant 19 : index
    %85 = vector.load %arg10[%c0_53, %c19_54] : memref<4x384xf32, #tpu.memory_space<vmem>>, vector<4x16xf32>
    tpu.vector_store %arg10[%c0_53, %c19_54], %84 {strides = array<i32>} : memref<4x384xf32, #tpu.memory_space<vmem>>, vector<4x16xf32>,
    %86 = vector.extract_strided_slice %81 {offsets = [0, 19], sizes = [4, 16], strides = [1, 1]} : vector<4x304xf32> to vector<4x16xf32>
    %c0_55 = arith.constant 0 : index
    %c37 = arith.constant 37 : index
    %87 = vector.load %arg10[%c0_55, %c37] : memref<4x384xf32, #tpu.memory_space<vmem>>, vector<4x16xf32>
    tpu.vector_store %arg10[%c0_55, %c37], %86 {strides = array<i32>} : memref<4x384xf32, #tpu.memory_space<vmem>>, vector<4x16xf32>,
    %88 = vector.extract_strided_slice %81 {offsets = [0, 38], sizes = [4, 16], strides = [1, 1]} : vector<4x304xf32> to vector<4x16xf32>
    %c0_56 = arith.constant 0 : index
    %c55 = arith.constant 55 : index
    %89 = vector.load %arg10[%c0_56, %c55] : memref<4x384xf32, #tpu.memory_space<vmem>>, vector<4x16xf32>
    tpu.vector_store %arg10[%c0_56, %c55], %88 {strides = array<i32>} : memref<4x384xf32, #tpu.memory_space<vmem>>, vector<4x16xf32>,
    %90 = vector.extract_strided_slice %81 {offsets = [0, 57], sizes = [4, 16], strides = [1, 1]} : vector<4x304xf32> to vector<4x16xf32>
    %c0_57 = arith.constant 0 : index
    %c73 = arith.constant 73 : index
    %91 = vector.load %arg10[%c0_57, %c73] : memref<4x384xf32, #tpu.memory_space<vmem>>, vector<4x16xf32>
    tpu.vector_store %arg10[%c0_57, %c73], %90 {strides = array<i32>} : memref<4x384xf32, #tpu.memory_space<vmem>>, vector<4x16xf32>,
    %92 = vector.extract_strided_slice %81 {offsets = [0, 76], sizes = [4, 16], strides = [1, 1]} : vector<4x304xf32> to vector<4x16xf32>
    %c0_58 = arith.constant 0 : index
    %c91 = arith.constant 91 : index
    %93 = vector.load %arg10[%c0_58, %c91] : memref<4x384xf32, #tpu.memory_space<vmem>>, vector<4x16xf32>
    tpu.vector_store %arg10[%c0_58, %c91], %92 {strides = array<i32>} : memref<4x384xf32, #tpu.memory_space<vmem>>, vector<4x16xf32>,
    %94 = vector.extract_strided_slice %81 {offsets = [0, 95], sizes = [4, 16], strides = [1, 1]} : vector<4x304xf32> to vector<4x16xf32>
    %c0_59 = arith.constant 0 : index
    %c109 = arith.constant 109 : index
    %95 = vector.load %arg10[%c0_59, %c109] : memref<4x384xf32, #tpu.memory_space<vmem>>, vector<4x16xf32>
    tpu.vector_store %arg10[%c0_59, %c109], %94 {strides = array<i32>} : memref<4x384xf32, #tpu.memory_space<vmem>>, vector<4x16xf32>,
    %96 = vector.extract_strided_slice %81 {offsets = [0, 114], sizes = [4, 16], strides = [1, 1]} : vector<4x304xf32> to vector<4x16xf32>
    %c0_60 = arith.constant 0 : index
    %c127 = arith.constant 127 : index
    %97 = vector.load %arg10[%c0_60, %c127] : memref<4x384xf32, #tpu.memory_space<vmem>>, vector<4x16xf32>
    tpu.vector_store %arg10[%c0_60, %c127], %96 {strides = array<i32>} : memref<4x384xf32, #tpu.memory_space<vmem>>, vector<4x16xf32>,
    %98 = vector.extract_strided_slice %81 {offsets = [0, 133], sizes = [4, 16], strides = [1, 1]} : vector<4x304xf32> to vector<4x16xf32>
    %c0_61 = arith.constant 0 : index
    %c145 = arith.constant 145 : index
    %99 = vector.load %arg10[%c0_61, %c145] : memref<4x384xf32, #tpu.memory_space<vmem>>, vector<4x16xf32>
    tpu.vector_store %arg10[%c0_61, %c145], %98 {strides = array<i32>} : memref<4x384xf32, #tpu.memory_space<vmem>>, vector<4x16xf32>,
    %100 = vector.extract_strided_slice %81 {offsets = [0, 152], sizes = [4, 16], strides = [1, 1]} : vector<4x304xf32> to vector<4x16xf32>
    %c0_62 = arith.constant 0 : index
    %c163 = arith.constant 163 : index
    %101 = vector.load %arg10[%c0_62, %c163] : memref<4x384xf32, #tpu.memory_space<vmem>>, vector<4x16xf32>
    tpu.vector_store %arg10[%c0_62, %c163], %100 {strides = array<i32>} : memref<4x384xf32, #tpu.memory_space<vmem>>, vector<4x16xf32>,
    %102 = vector.extract_strided_slice %81 {offsets = [0, 171], sizes = [4, 16], strides = [1, 1]} : vector<4x304xf32> to vector<4x16xf32>
    %c0_63 = arith.constant 0 : index
    %c181 = arith.constant 181 : index
    %103 = vector.load %arg10[%c0_63, %c181] : memref<4x384xf32, #tpu.memory_space<vmem>>, vector<4x16xf32>
    tpu.vector_store %arg10[%c0_63, %c181], %102 {strides = array<i32>} : memref<4x384xf32, #tpu.memory_space<vmem>>, vector<4x16xf32>,
    %104 = vector.extract_strided_slice %81 {offsets = [0, 190], sizes = [4, 16], strides = [1, 1]} : vector<4x304xf32> to vector<4x16xf32>
    %c0_64 = arith.constant 0 : index
    %c199 = arith.constant 199 : index
    %105 = vector.load %arg10[%c0_64, %c199] : memref<4x384xf32, #tpu.memory_space<vmem>>, vector<4x16xf32>
    tpu.vector_store %arg10[%c0_64, %c199], %104 {strides = array<i32>} : memref<4x384xf32, #tpu.memory_space<vmem>>, vector<4x16xf32>,
    %106 = vector.extract_strided_slice %81 {offsets = [0, 209], sizes = [4, 16], strides = [1, 1]} : vector<4x304xf32> to vector<4x16xf32>
    %c0_65 = arith.constant 0 : index
    %c217 = arith.constant 217 : index
    %107 = vector.load %arg10[%c0_65, %c217] : memref<4x384xf32, #tpu.memory_space<vmem>>, vector<4x16xf32>
    tpu.vector_store %arg10[%c0_65, %c217], %106 {strides = array<i32>} : memref<4x384xf32, #tpu.memory_space<vmem>>, vector<4x16xf32>,
    %108 = vector.extract_strided_slice %81 {offsets = [0, 228], sizes = [4, 16], strides = [1, 1]} : vector<4x304xf32> to vector<4x16xf32>
    %c0_66 = arith.constant 0 : index
    %c235 = arith.constant 235 : index
    %109 = vector.load %arg10[%c0_66, %c235] : memref<4x384xf32, #tpu.memory_space<vmem>>, vector<4x16xf32>
    tpu.vector_store %arg10[%c0_66, %c235], %108 {strides = array<i32>} : memref<4x384xf32, #tpu.memory_space<vmem>>, vector<4x16xf32>,
    %110 = vector.extract_strided_slice %81 {offsets = [0, 247], sizes = [4, 16], strides = [1, 1]} : vector<4x304xf32> to vector<4x16xf32>
    %c0_67 = arith.constant 0 : index
    %c253 = arith.constant 253 : index
    %111 = vector.load %arg10[%c0_67, %c253] : memref<4x384xf32, #tpu.memory_space<vmem>>, vector<4x16xf32>
    tpu.vector_store %arg10[%c0_67, %c253], %110 {strides = array<i32>} : memref<4x384xf32, #tpu.memory_space<vmem>>, vector<4x16xf32>,
    %112 = vector.extract_strided_slice %81 {offsets = [0, 266], sizes = [4, 16], strides = [1, 1]} : vector<4x304xf32> to vector<4x16xf32>
    %c0_68 = arith.constant 0 : index
    %c271 = arith.constant 271 : index
    %113 = vector.load %arg10[%c0_68, %c271] : memref<4x384xf32, #tpu.memory_space<vmem>>, vector<4x16xf32>
    tpu.vector_store %arg10[%c0_68, %c271], %112 {strides = array<i32>} : memref<4x384xf32, #tpu.memory_space<vmem>>, vector<4x16xf32>,
    %114 = vector.extract_strided_slice %81 {offsets = [0, 285], sizes = [4, 16], strides = [1, 1]} : vector<4x304xf32> to vector<4x16xf32>
    %c0_69 = arith.constant 0 : index
    %c289 = arith.constant 289 : index
    %115 = vector.load %arg10[%c0_69, %c289] : memref<4x384xf32, #tpu.memory_space<vmem>>, vector<4x16xf32>
    tpu.vector_store %arg10[%c0_69, %c289], %114 {strides = array<i32>} : memref<4x384xf32, #tpu.memory_space<vmem>>, vector<4x16xf32>,
    %c0_70 = arith.constant 0 : index
    %c0_71 = arith.constant 0 : index
    %116 = vector.load %arg4[%c0_70, %c0_71] : memref<4x36xf32, #tpu.memory_space<vmem>>, vector<4x36xf32>
    %c0_72 = arith.constant 0 : index
    %c0_73 = arith.constant 0 : index
    %117 = vector.load %arg5[%c0_72, %c0_73] : memref<4x36xf32, #tpu.memory_space<vmem>>, vector<4x36xf32>
    %cst_74 = arith.constant 0.000000e+00 : f32
    %118 = vector.broadcast %cst_74 : f32 to vector<4x288xf32>
    %119 = vector.extract_strided_slice %116 {offsets = [0, 0], sizes = [4, 4], strides = [1, 1]} : vector<4x36xf32> to vector<4x4xf32>
    %c0_75 = arith.constant 0 : index
    %c0_76 = arith.constant 0 : index
    %c0_77 = arith.constant 0 : index
    %120 = vector.load %arg1[%c0_75, %c0_76, %c0_77] : memref<1x4x384xf32, #tpu.memory_space<vmem>>, vector<1x4x288xf32>
    %121 = vector.shape_cast %120 : vector<1x4x288xf32> to vector<4x288xf32>
    %cst_78 = arith.constant dense<0.000000e+00> : vector<4x288xf32>
    %122 = tpu.matmul %119, %121, %cst_78 {dimension_numbers = #tpu.dot_dimension_numbers<[1], [0], [0], [1], [0, 0, 1, 1], [], []>} : vector<4x4xf32>, vector<4x288xf32>, vector<4x288xf32> -> vector<4x288xf32>
    %123 = arith.addf %118, %122 : vector<4x288xf32>
    %124 = vector.extract_strided_slice %117 {offsets = [0, 0], sizes = [4, 4], strides = [1, 1]} : vector<4x36xf32> to vector<4x4xf32>
    %c0_79 = arith.constant 0 : index
    %c0_80 = arith.constant 0 : index
    %125 = vector.load %arg10[%c0_79, %c0_80] : memref<4x384xf32, #tpu.memory_space<vmem>>, vector<4x288xf32>
    %cst_81 = arith.constant dense<0.000000e+00> : vector<4x288xf32>
    %126 = tpu.matmul %124, %125, %cst_81 {dimension_numbers = #tpu.dot_dimension_numbers<[1], [0], [0], [1], [0, 0, 1, 1], [], []>} : vector<4x4xf32>, vector<4x288xf32>, vector<4x288xf32> -> vector<4x288xf32>
    %127 = arith.addf %123, %126 : vector<4x288xf32>
    %128 = vector.extract_strided_slice %116 {offsets = [0, 4], sizes = [4, 4], strides = [1, 1]} : vector<4x36xf32> to vector<4x4xf32>
    %c0_82 = arith.constant 0 : index
    %c0_83 = arith.constant 0 : index
    %c1_84 = arith.constant 1 : index
    %129 = vector.load %arg1[%c0_82, %c0_83, %c1_84] : memref<1x4x384xf32, #tpu.memory_space<vmem>>, vector<1x4x288xf32>
    %130 = vector.shape_cast %129 : vector<1x4x288xf32> to vector<4x288xf32>
    %cst_85 = arith.constant dense<0.000000e+00> : vector<4x288xf32>
    %131 = tpu.matmul %128, %130, %cst_85 {dimension_numbers = #tpu.dot_dimension_numbers<[1], [0], [0], [1], [0, 0, 1, 1], [], []>} : vector<4x4xf32>, vector<4x288xf32>, vector<4x288xf32> -> vector<4x288xf32>
    %132 = arith.addf %127, %131 : vector<4x288xf32>
    %133 = vector.extract_strided_slice %117 {offsets = [0, 4], sizes = [4, 4], strides = [1, 1]} : vector<4x36xf32> to vector<4x4xf32>
    %c0_86 = arith.constant 0 : index
    %c1_87 = arith.constant 1 : index
    %134 = vector.load %arg10[%c0_86, %c1_87] : memref<4x384xf32, #tpu.memory_space<vmem>>, vector<4x288xf32>
    %cst_88 = arith.constant dense<0.000000e+00> : vector<4x288xf32>
    %135 = tpu.matmul %133, %134, %cst_88 {dimension_numbers = #tpu.dot_dimension_numbers<[1], [0], [0], [1], [0, 0, 1, 1], [], []>} : vector<4x4xf32>, vector<4x288xf32>, vector<4x288xf32> -> vector<4x288xf32>
    %136 = arith.addf %132, %135 : vector<4x288xf32>
    %137 = vector.extract_strided_slice %116 {offsets = [0, 8], sizes = [4, 4], strides = [1, 1]} : vector<4x36xf32> to vector<4x4xf32>
    %c0_89 = arith.constant 0 : index
    %c0_90 = arith.constant 0 : index
    %c2_91 = arith.constant 2 : index
    %138 = vector.load %arg1[%c0_89, %c0_90, %c2_91] : memref<1x4x384xf32, #tpu.memory_space<vmem>>, vector<1x4x288xf32>
    %139 = vector.shape_cast %138 : vector<1x4x288xf32> to vector<4x288xf32>
    %cst_92 = arith.constant dense<0.000000e+00> : vector<4x288xf32>
    %140 = tpu.matmul %137, %139, %cst_92 {dimension_numbers = #tpu.dot_dimension_numbers<[1], [0], [0], [1], [0, 0, 1, 1], [], []>} : vector<4x4xf32>, vector<4x288xf32>, vector<4x288xf32> -> vector<4x288xf32>
    %141 = arith.addf %136, %140 : vector<4x288xf32>
    %142 = vector.extract_strided_slice %117 {offsets = [0, 8], sizes = [4, 4], strides = [1, 1]} : vector<4x36xf32> to vector<4x4xf32>
    %c0_93 = arith.constant 0 : index
    %c2_94 = arith.constant 2 : index
    %143 = vector.load %arg10[%c0_93, %c2_94] : memref<4x384xf32, #tpu.memory_space<vmem>>, vector<4x288xf32>
    %cst_95 = arith.constant dense<0.000000e+00> : vector<4x288xf32>
    %144 = tpu.matmul %142, %143, %cst_95 {dimension_numbers = #tpu.dot_dimension_numbers<[1], [0], [0], [1], [0, 0, 1, 1], [], []>} : vector<4x4xf32>, vector<4x288xf32>, vector<4x288xf32> -> vector<4x288xf32>
    %145 = arith.addf %141, %144 : vector<4x288xf32>
    %146 = vector.extract_strided_slice %116 {offsets = [0, 12], sizes = [4, 4], strides = [1, 1]} : vector<4x36xf32> to vector<4x4xf32>
    %c0_96 = arith.constant 0 : index
    %c0_97 = arith.constant 0 : index
    %c18 = arith.constant 18 : index
    %147 = vector.load %arg1[%c0_96, %c0_97, %c18] : memref<1x4x384xf32, #tpu.memory_space<vmem>>, vector<1x4x288xf32>
    %148 = vector.shape_cast %147 : vector<1x4x288xf32> to vector<4x288xf32>
    %cst_98 = arith.constant dense<0.000000e+00> : vector<4x288xf32>
    %149 = tpu.matmul %146, %148, %cst_98 {dimension_numbers = #tpu.dot_dimension_numbers<[1], [0], [0], [1], [0, 0, 1, 1], [], []>} : vector<4x4xf32>, vector<4x288xf32>, vector<4x288xf32> -> vector<4x288xf32>
    %150 = arith.addf %145, %149 : vector<4x288xf32>
    %151 = vector.extract_strided_slice %117 {offsets = [0, 12], sizes = [4, 4], strides = [1, 1]} : vector<4x36xf32> to vector<4x4xf32>
    %c0_99 = arith.constant 0 : index
    %c18_100 = arith.constant 18 : index
    %152 = vector.load %arg10[%c0_99, %c18_100] : memref<4x384xf32, #tpu.memory_space<vmem>>, vector<4x288xf32>
    %cst_101 = arith.constant dense<0.000000e+00> : vector<4x288xf32>
    %153 = tpu.matmul %151, %152, %cst_101 {dimension_numbers = #tpu.dot_dimension_numbers<[1], [0], [0], [1], [0, 0, 1, 1], [], []>} : vector<4x4xf32>, vector<4x288xf32>, vector<4x288xf32> -> vector<4x288xf32>
    %154 = arith.addf %150, %153 : vector<4x288xf32>
    %155 = vector.extract_strided_slice %116 {offsets = [0, 16], sizes = [4, 4], strides = [1, 1]} : vector<4x36xf32> to vector<4x4xf32>
    %c0_102 = arith.constant 0 : index
    %c0_103 = arith.constant 0 : index
    %c19_104 = arith.constant 19 : index
    %156 = vector.load %arg1[%c0_102, %c0_103, %c19_104] : memref<1x4x384xf32, #tpu.memory_space<vmem>>, vector<1x4x288xf32>
    %157 = vector.shape_cast %156 : vector<1x4x288xf32> to vector<4x288xf32>
    %cst_105 = arith.constant dense<0.000000e+00> : vector<4x288xf32>
    %158 = tpu.matmul %155, %157, %cst_105 {dimension_numbers = #tpu.dot_dimension_numbers<[1], [0], [0], [1], [0, 0, 1, 1], [], []>} : vector<4x4xf32>, vector<4x288xf32>, vector<4x288xf32> -> vector<4x288xf32>
    %159 = arith.addf %154, %158 : vector<4x288xf32>
    %160 = vector.extract_strided_slice %117 {offsets = [0, 16], sizes = [4, 4], strides = [1, 1]} : vector<4x36xf32> to vector<4x4xf32>
    %c0_106 = arith.constant 0 : index
    %c19_107 = arith.constant 19 : index
    %161 = vector.load %arg10[%c0_106, %c19_107] : memref<4x384xf32, #tpu.memory_space<vmem>>, vector<4x288xf32>
    %cst_108 = arith.constant dense<0.000000e+00> : vector<4x288xf32>
    %162 = tpu.matmul %160, %161, %cst_108 {dimension_numbers = #tpu.dot_dimension_numbers<[1], [0], [0], [1], [0, 0, 1, 1], [], []>} : vector<4x4xf32>, vector<4x288xf32>, vector<4x288xf32> -> vector<4x288xf32>
    %163 = arith.addf %159, %162 : vector<4x288xf32>
    %164 = vector.extract_strided_slice %116 {offsets = [0, 20], sizes = [4, 4], strides = [1, 1]} : vector<4x36xf32> to vector<4x4xf32>
    %c0_109 = arith.constant 0 : index
    %c0_110 = arith.constant 0 : index
    %c20_111 = arith.constant 20 : index
    %165 = vector.load %arg1[%c0_109, %c0_110, %c20_111] : memref<1x4x384xf32, #tpu.memory_space<vmem>>, vector<1x4x288xf32>
    %166 = vector.shape_cast %165 : vector<1x4x288xf32> to vector<4x288xf32>
    %cst_112 = arith.constant dense<0.000000e+00> : vector<4x288xf32>
    %167 = tpu.matmul %164, %166, %cst_112 {dimension_numbers = #tpu.dot_dimension_numbers<[1], [0], [0], [1], [0, 0, 1, 1], [], []>} : vector<4x4xf32>, vector<4x288xf32>, vector<4x288xf32> -> vector<4x288xf32>
    %168 = arith.addf %163, %167 : vector<4x288xf32>
    %169 = vector.extract_strided_slice %117 {offsets = [0, 20], sizes = [4, 4], strides = [1, 1]} : vector<4x36xf32> to vector<4x4xf32>
    %c0_113 = arith.constant 0 : index
    %c20_114 = arith.constant 20 : index
    %170 = vector.load %arg10[%c0_113, %c20_114] : memref<4x384xf32, #tpu.memory_space<vmem>>, vector<4x288xf32>
    %cst_115 = arith.constant dense<0.000000e+00> : vector<4x288xf32>
    %171 = tpu.matmul %169, %170, %cst_115 {dimension_numbers = #tpu.dot_dimension_numbers<[1], [0], [0], [1], [0, 0, 1, 1], [], []>} : vector<4x4xf32>, vector<4x288xf32>, vector<4x288xf32> -> vector<4x288xf32>
    %172 = arith.addf %168, %171 : vector<4x288xf32>
    %173 = vector.extract_strided_slice %116 {offsets = [0, 24], sizes = [4, 4], strides = [1, 1]} : vector<4x36xf32> to vector<4x4xf32>
    %c0_116 = arith.constant 0 : index
    %c0_117 = arith.constant 0 : index
    %c36 = arith.constant 36 : index
    %174 = vector.load %arg1[%c0_116, %c0_117, %c36] : memref<1x4x384xf32, #tpu.memory_space<vmem>>, vector<1x4x288xf32>
    %175 = vector.shape_cast %174 : vector<1x4x288xf32> to vector<4x288xf32>
    %cst_118 = arith.constant dense<0.000000e+00> : vector<4x288xf32>
    %176 = tpu.matmul %173, %175, %cst_118 {dimension_numbers = #tpu.dot_dimension_numbers<[1], [0], [0], [1], [0, 0, 1, 1], [], []>} : vector<4x4xf32>, vector<4x288xf32>, vector<4x288xf32> -> vector<4x288xf32>
    %177 = arith.addf %172, %176 : vector<4x288xf32>
    %178 = vector.extract_strided_slice %117 {offsets = [0, 24], sizes = [4, 4], strides = [1, 1]} : vector<4x36xf32> to vector<4x4xf32>
    %c0_119 = arith.constant 0 : index
    %c36_120 = arith.constant 36 : index
    %179 = vector.load %arg10[%c0_119, %c36_120] : memref<4x384xf32, #tpu.memory_space<vmem>>, vector<4x288xf32>
    %cst_121 = arith.constant dense<0.000000e+00> : vector<4x288xf32>
    %180 = tpu.matmul %178, %179, %cst_121 {dimension_numbers = #tpu.dot_dimension_numbers<[1], [0], [0], [1], [0, 0, 1, 1], [], []>} : vector<4x4xf32>, vector<4x288xf32>, vector<4x288xf32> -> vector<4x288xf32>
    %181 = arith.addf %177, %180 : vector<4x288xf32>
    %182 = vector.extract_strided_slice %116 {offsets = [0, 28], sizes = [4, 4], strides = [1, 1]} : vector<4x36xf32> to vector<4x4xf32>
    %c0_122 = arith.constant 0 : index
    %c0_123 = arith.constant 0 : index
    %c37_124 = arith.constant 37 : index
    %183 = vector.load %arg1[%c0_122, %c0_123, %c37_124] : memref<1x4x384xf32, #tpu.memory_space<vmem>>, vector<1x4x288xf32>
    %184 = vector.shape_cast %183 : vector<1x4x288xf32> to vector<4x288xf32>
    %cst_125 = arith.constant dense<0.000000e+00> : vector<4x288xf32>
    %185 = tpu.matmul %182, %184, %cst_125 {dimension_numbers = #tpu.dot_dimension_numbers<[1], [0], [0], [1], [0, 0, 1, 1], [], []>} : vector<4x4xf32>, vector<4x288xf32>, vector<4x288xf32> -> vector<4x288xf32>
    %186 = arith.addf %181, %185 : vector<4x288xf32>
    %187 = vector.extract_strided_slice %117 {offsets = [0, 28], sizes = [4, 4], strides = [1, 1]} : vector<4x36xf32> to vector<4x4xf32>
    %c0_126 = arith.constant 0 : index
    %c37_127 = arith.constant 37 : index
    %188 = vector.load %arg10[%c0_126, %c37_127] : memref<4x384xf32, #tpu.memory_space<vmem>>, vector<4x288xf32>
    %cst_128 = arith.constant dense<0.000000e+00> : vector<4x288xf32>
    %189 = tpu.matmul %187, %188, %cst_128 {dimension_numbers = #tpu.dot_dimension_numbers<[1], [0], [0], [1], [0, 0, 1, 1], [], []>} : vector<4x4xf32>, vector<4x288xf32>, vector<4x288xf32> -> vector<4x288xf32>
    %190 = arith.addf %186, %189 : vector<4x288xf32>
    %191 = vector.extract_strided_slice %116 {offsets = [0, 32], sizes = [4, 4], strides = [1, 1]} : vector<4x36xf32> to vector<4x4xf32>
    %c0_129 = arith.constant 0 : index
    %c0_130 = arith.constant 0 : index
    %c38_131 = arith.constant 38 : index
    %192 = vector.load %arg1[%c0_129, %c0_130, %c38_131] : memref<1x4x384xf32, #tpu.memory_space<vmem>>, vector<1x4x288xf32>
    %193 = vector.shape_cast %192 : vector<1x4x288xf32> to vector<4x288xf32>
    %cst_132 = arith.constant dense<0.000000e+00> : vector<4x288xf32>
    %194 = tpu.matmul %191, %193, %cst_132 {dimension_numbers = #tpu.dot_dimension_numbers<[1], [0], [0], [1], [0, 0, 1, 1], [], []>} : vector<4x4xf32>, vector<4x288xf32>, vector<4x288xf32> -> vector<4x288xf32>
    %195 = arith.addf %190, %194 : vector<4x288xf32>
    %196 = vector.extract_strided_slice %117 {offsets = [0, 32], sizes = [4, 4], strides = [1, 1]} : vector<4x36xf32> to vector<4x4xf32>
    %c0_133 = arith.constant 0 : index
    %c38_134 = arith.constant 38 : index
    %197 = vector.load %arg10[%c0_133, %c38_134] : memref<4x384xf32, #tpu.memory_space<vmem>>, vector<4x288xf32>
    %cst_135 = arith.constant dense<0.000000e+00> : vector<4x288xf32>
    %198 = tpu.matmul %196, %197, %cst_135 {dimension_numbers = #tpu.dot_dimension_numbers<[1], [0], [0], [1], [0, 0, 1, 1], [], []>} : vector<4x4xf32>, vector<4x288xf32>, vector<4x288xf32> -> vector<4x288xf32>
    %199 = arith.addf %195, %198 : vector<4x288xf32>
    %c0_136 = arith.constant 0 : index
    %c0_137 = arith.constant 0 : index
    %200 = vector.load %arg7[%c0_136, %c0_137] : memref<4x1xf32, #tpu.memory_space<vmem>>, vector<4x1xf32>
    %201 = vector.broadcast %200 : vector<4x1xf32> to vector<4x288xf32>
    %202 = arith.mulf %199, %201 : vector<4x288xf32>
    %c0_138 = arith.constant 0 : index
    %c0_139 = arith.constant 0 : index
    %203 = vector.load %arg8[%c0_138, %c0_139] : memref<4x1xf32, #tpu.memory_space<vmem>>, vector<4x1xf32>
    %204 = vector.broadcast %203 : vector<4x1xf32> to vector<4x288xf32>
    %205 = arith.addf %202, %204 : vector<4x288xf32>
    %cst_140 = arith.constant 0.000000e+00 : f32
    %206 = vector.broadcast %cst_140 : f32 to vector<4x384xf32>
    %c0_141 = arith.constant 0 : index
    %c0_142 = arith.constant 0 : index
    %207 = vector.load %arg11[%c0_141, %c0_142] : memref<4x384xf32, #tpu.memory_space<vmem>>, vector<4x384xf32>
    tpu.vector_store %arg11[%c0_141, %c0_142], %206 {strides = array<i32>} : memref<4x384xf32, #tpu.memory_space<vmem>>, vector<4x384xf32>,
    %208 = vector.extract_strided_slice %205 {offsets = [0, 0], sizes = [4, 16], strides = [1, 1]} : vector<4x288xf32> to vector<4x16xf32>
    %c0_143 = arith.constant 0 : index
    %c19_144 = arith.constant 19 : index
    %209 = vector.load %arg11[%c0_143, %c19_144] : memref<4x384xf32, #tpu.memory_space<vmem>>, vector<4x16xf32>
    tpu.vector_store %arg11[%c0_143, %c19_144], %208 {strides = array<i32>} : memref<4x384xf32, #tpu.memory_space<vmem>>, vector<4x16xf32>,
    %210 = vector.extract_strided_slice %205 {offsets = [0, 18], sizes = [4, 16], strides = [1, 1]} : vector<4x288xf32> to vector<4x16xf32>
    %c0_145 = arith.constant 0 : index
    %c37_146 = arith.constant 37 : index
    %211 = vector.load %arg11[%c0_145, %c37_146] : memref<4x384xf32, #tpu.memory_space<vmem>>, vector<4x16xf32>
    tpu.vector_store %arg11[%c0_145, %c37_146], %210 {strides = array<i32>} : memref<4x384xf32, #tpu.memory_space<vmem>>, vector<4x16xf32>,
    %212 = vector.extract_strided_slice %205 {offsets = [0, 36], sizes = [4, 16], strides = [1, 1]} : vector<4x288xf32> to vector<4x16xf32>
    %c0_147 = arith.constant 0 : index
    %c55_148 = arith.constant 55 : index
    %213 = vector.load %arg11[%c0_147, %c55_148] : memref<4x384xf32, #tpu.memory_space<vmem>>, vector<4x16xf32>
    tpu.vector_store %arg11[%c0_147, %c55_148], %212 {strides = array<i32>} : memref<4x384xf32, #tpu.memory_space<vmem>>, vector<4x16xf32>,
    %214 = vector.extract_strided_slice %205 {offsets = [0, 54], sizes = [4, 16], strides = [1, 1]} : vector<4x288xf32> to vector<4x16xf32>
    %c0_149 = arith.constant 0 : index
    %c73_150 = arith.constant 73 : index
    %215 = vector.load %arg11[%c0_149, %c73_150] : memref<4x384xf32, #tpu.memory_space<vmem>>, vector<4x16xf32>
    tpu.vector_store %arg11[%c0_149, %c73_150], %214 {strides = array<i32>} : memref<4x384xf32, #tpu.memory_space<vmem>>, vector<4x16xf32>,
    %216 = vector.extract_strided_slice %205 {offsets = [0, 72], sizes = [4, 16], strides = [1, 1]} : vector<4x288xf32> to vector<4x16xf32>
    %c0_151 = arith.constant 0 : index
    %c91_152 = arith.constant 91 : index
    %217 = vector.load %arg11[%c0_151, %c91_152] : memref<4x384xf32, #tpu.memory_space<vmem>>, vector<4x16xf32>
    tpu.vector_store %arg11[%c0_151, %c91_152], %216 {strides = array<i32>} : memref<4x384xf32, #tpu.memory_space<vmem>>, vector<4x16xf32>,
    %218 = vector.extract_strided_slice %205 {offsets = [0, 90], sizes = [4, 16], strides = [1, 1]} : vector<4x288xf32> to vector<4x16xf32>
    %c0_153 = arith.constant 0 : index
    %c109_154 = arith.constant 109 : index
    %219 = vector.load %arg11[%c0_153, %c109_154] : memref<4x384xf32, #tpu.memory_space<vmem>>, vector<4x16xf32>
    tpu.vector_store %arg11[%c0_153, %c109_154], %218 {strides = array<i32>} : memref<4x384xf32, #tpu.memory_space<vmem>>, vector<4x16xf32>,
    %220 = vector.extract_strided_slice %205 {offsets = [0, 108], sizes = [4, 16], strides = [1, 1]} : vector<4x288xf32> to vector<4x16xf32>
    %c0_155 = arith.constant 0 : index
    %c127_156 = arith.constant 127 : index
    %221 = vector.load %arg11[%c0_155, %c127_156] : memref<4x384xf32, #tpu.memory_space<vmem>>, vector<4x16xf32>
    tpu.vector_store %arg11[%c0_155, %c127_156], %220 {strides = array<i32>} : memref<4x384xf32, #tpu.memory_space<vmem>>, vector<4x16xf32>,
    %222 = vector.extract_strided_slice %205 {offsets = [0, 126], sizes = [4, 16], strides = [1, 1]} : vector<4x288xf32> to vector<4x16xf32>
    %c0_157 = arith.constant 0 : index
    %c145_158 = arith.constant 145 : index
    %223 = vector.load %arg11[%c0_157, %c145_158] : memref<4x384xf32, #tpu.memory_space<vmem>>, vector<4x16xf32>
    tpu.vector_store %arg11[%c0_157, %c145_158], %222 {strides = array<i32>} : memref<4x384xf32, #tpu.memory_space<vmem>>, vector<4x16xf32>,
    %224 = vector.extract_strided_slice %205 {offsets = [0, 144], sizes = [4, 16], strides = [1, 1]} : vector<4x288xf32> to vector<4x16xf32>
    %c0_159 = arith.constant 0 : index
    %c163_160 = arith.constant 163 : index
    %225 = vector.load %arg11[%c0_159, %c163_160] : memref<4x384xf32, #tpu.memory_space<vmem>>, vector<4x16xf32>
    tpu.vector_store %arg11[%c0_159, %c163_160], %224 {strides = array<i32>} : memref<4x384xf32, #tpu.memory_space<vmem>>, vector<4x16xf32>,
    %226 = vector.extract_strided_slice %205 {offsets = [0, 162], sizes = [4, 16], strides = [1, 1]} : vector<4x288xf32> to vector<4x16xf32>
    %c0_161 = arith.constant 0 : index
    %c181_162 = arith.constant 181 : index
    %227 = vector.load %arg11[%c0_161, %c181_162] : memref<4x384xf32, #tpu.memory_space<vmem>>, vector<4x16xf32>
    tpu.vector_store %arg11[%c0_161, %c181_162], %226 {strides = array<i32>} : memref<4x384xf32, #tpu.memory_space<vmem>>, vector<4x16xf32>,
    %228 = vector.extract_strided_slice %205 {offsets = [0, 180], sizes = [4, 16], strides = [1, 1]} : vector<4x288xf32> to vector<4x16xf32>
    %c0_163 = arith.constant 0 : index
    %c199_164 = arith.constant 199 : index
    %229 = vector.load %arg11[%c0_163, %c199_164] : memref<4x384xf32, #tpu.memory_space<vmem>>, vector<4x16xf32>
    tpu.vector_store %arg11[%c0_163, %c199_164], %228 {strides = array<i32>} : memref<4x384xf32, #tpu.memory_space<vmem>>, vector<4x16xf32>,
    %230 = vector.extract_strided_slice %205 {offsets = [0, 198], sizes = [4, 16], strides = [1, 1]} : vector<4x288xf32> to vector<4x16xf32>
    %c0_165 = arith.constant 0 : index
    %c217_166 = arith.constant 217 : index
    %231 = vector.load %arg11[%c0_165, %c217_166] : memref<4x384xf32, #tpu.memory_space<vmem>>, vector<4x16xf32>
    tpu.vector_store %arg11[%c0_165, %c217_166], %230 {strides = array<i32>} : memref<4x384xf32, #tpu.memory_space<vmem>>, vector<4x16xf32>,
    %232 = vector.extract_strided_slice %205 {offsets = [0, 216], sizes = [4, 16], strides = [1, 1]} : vector<4x288xf32> to vector<4x16xf32>
    %c0_167 = arith.constant 0 : index
    %c235_168 = arith.constant 235 : index
    %233 = vector.load %arg11[%c0_167, %c235_168] : memref<4x384xf32, #tpu.memory_space<vmem>>, vector<4x16xf32>
    tpu.vector_store %arg11[%c0_167, %c235_168], %232 {strides = array<i32>} : memref<4x384xf32, #tpu.memory_space<vmem>>, vector<4x16xf32>,
    %234 = vector.extract_strided_slice %205 {offsets = [0, 234], sizes = [4, 16], strides = [1, 1]} : vector<4x288xf32> to vector<4x16xf32>
    %c0_169 = arith.constant 0 : index
    %c253_170 = arith.constant 253 : index
    %235 = vector.load %arg11[%c0_169, %c253_170] : memref<4x384xf32, #tpu.memory_space<vmem>>, vector<4x16xf32>
    tpu.vector_store %arg11[%c0_169, %c253_170], %234 {strides = array<i32>} : memref<4x384xf32, #tpu.memory_space<vmem>>, vector<4x16xf32>,
    %236 = vector.extract_strided_slice %205 {offsets = [0, 252], sizes = [4, 16], strides = [1, 1]} : vector<4x288xf32> to vector<4x16xf32>
    %c0_171 = arith.constant 0 : index
    %c271_172 = arith.constant 271 : index
    %237 = vector.load %arg11[%c0_171, %c271_172] : memref<4x384xf32, #tpu.memory_space<vmem>>, vector<4x16xf32>
    tpu.vector_store %arg11[%c0_171, %c271_172], %236 {strides = array<i32>} : memref<4x384xf32, #tpu.memory_space<vmem>>, vector<4x16xf32>,
    %238 = vector.extract_strided_slice %205 {offsets = [0, 270], sizes = [4, 16], strides = [1, 1]} : vector<4x288xf32> to vector<4x16xf32>
    %c0_173 = arith.constant 0 : index
    %c289_174 = arith.constant 289 : index
    %239 = vector.load %arg11[%c0_173, %c289_174] : memref<4x384xf32, #tpu.memory_space<vmem>>, vector<4x16xf32>
    tpu.vector_store %arg11[%c0_173, %c289_174], %238 {strides = array<i32>} : memref<4x384xf32, #tpu.memory_space<vmem>>, vector<4x16xf32>,
    %c0_175 = arith.constant 0 : index
    %c0_176 = arith.constant 0 : index
    %240 = vector.load %arg6[%c0_175, %c0_176] : memref<4x36xf32, #tpu.memory_space<vmem>>, vector<4x36xf32>
    %cst_177 = arith.constant 0.000000e+00 : f32
    %241 = vector.broadcast %cst_177 : f32 to vector<4x288xf32>
    %242 = vector.extract_strided_slice %240 {offsets = [0, 0], sizes = [4, 4], strides = [1, 1]} : vector<4x36xf32> to vector<4x4xf32>
    %c0_178 = arith.constant 0 : index
    %c0_179 = arith.constant 0 : index
    %243 = vector.load %arg11[%c0_178, %c0_179] : memref<4x384xf32, #tpu.memory_space<vmem>>, vector<4x288xf32>
    %cst_180 = arith.constant dense<0.000000e+00> : vector<4x288xf32>
    %244 = tpu.matmul %242, %243, %cst_180 {dimension_numbers = #tpu.dot_dimension_numbers<[1], [0], [0], [1], [0, 0, 1, 1], [], []>} : vector<4x4xf32>, vector<4x288xf32>, vector<4x288xf32> -> vector<4x288xf32>
    %245 = arith.addf %241, %244 : vector<4x288xf32>
    %246 = vector.extract_strided_slice %240 {offsets = [0, 4], sizes = [4, 4], strides = [1, 1]} : vector<4x36xf32> to vector<4x4xf32>
    %c0_181 = arith.constant 0 : index
    %c1_182 = arith.constant 1 : index
    %247 = vector.load %arg11[%c0_181, %c1_182] : memref<4x384xf32, #tpu.memory_space<vmem>>, vector<4x288xf32>
    %cst_183 = arith.constant dense<0.000000e+00> : vector<4x288xf32>
    %248 = tpu.matmul %246, %247, %cst_183 {dimension_numbers = #tpu.dot_dimension_numbers<[1], [0], [0], [1], [0, 0, 1, 1], [], []>} : vector<4x4xf32>, vector<4x288xf32>, vector<4x288xf32> -> vector<4x288xf32>
    %249 = arith.addf %245, %248 : vector<4x288xf32>
    %250 = vector.extract_strided_slice %240 {offsets = [0, 8], sizes = [4, 4], strides = [1, 1]} : vector<4x36xf32> to vector<4x4xf32>
    %c0_184 = arith.constant 0 : index
    %c2_185 = arith.constant 2 : index
    %251 = vector.load %arg11[%c0_184, %c2_185] : memref<4x384xf32, #tpu.memory_space<vmem>>, vector<4x288xf32>
    %cst_186 = arith.constant dense<0.000000e+00> : vector<4x288xf32>
    %252 = tpu.matmul %250, %251, %cst_186 {dimension_numbers = #tpu.dot_dimension_numbers<[1], [0], [0], [1], [0, 0, 1, 1], [], []>} : vector<4x4xf32>, vector<4x288xf32>, vector<4x288xf32> -> vector<4x288xf32>
    %253 = arith.addf %249, %252 : vector<4x288xf32>
    %254 = vector.extract_strided_slice %240 {offsets = [0, 12], sizes = [4, 4], strides = [1, 1]} : vector<4x36xf32> to vector<4x4xf32>
    %c0_187 = arith.constant 0 : index
    %c18_188 = arith.constant 18 : index
    %255 = vector.load %arg11[%c0_187, %c18_188] : memref<4x384xf32, #tpu.memory_space<vmem>>, vector<4x288xf32>
    %cst_189 = arith.constant dense<0.000000e+00> : vector<4x288xf32>
    %256 = tpu.matmul %254, %255, %cst_189 {dimension_numbers = #tpu.dot_dimension_numbers<[1], [0], [0], [1], [0, 0, 1, 1], [], []>} : vector<4x4xf32>, vector<4x288xf32>, vector<4x288xf32> -> vector<4x288xf32>
    %257 = arith.addf %253, %256 : vector<4x288xf32>
    %258 = vector.extract_strided_slice %240 {offsets = [0, 16], sizes = [4, 4], strides = [1, 1]} : vector<4x36xf32> to vector<4x4xf32>
    %c0_190 = arith.constant 0 : index
    %c19_191 = arith.constant 19 : index
    %259 = vector.load %arg11[%c0_190, %c19_191] : memref<4x384xf32, #tpu.memory_space<vmem>>, vector<4x288xf32>
    %cst_192 = arith.constant dense<0.000000e+00> : vector<4x288xf32>
    %260 = tpu.matmul %258, %259, %cst_192 {dimension_numbers = #tpu.dot_dimension_numbers<[1], [0], [0], [1], [0, 0, 1, 1], [], []>} : vector<4x4xf32>, vector<4x288xf32>, vector<4x288xf32> -> vector<4x288xf32>
    %261 = arith.addf %257, %260 : vector<4x288xf32>
    %262 = vector.extract_strided_slice %240 {offsets = [0, 20], sizes = [4, 4], strides = [1, 1]} : vector<4x36xf32> to vector<4x4xf32>
    %c0_193 = arith.constant 0 : index
    %c20_194 = arith.constant 20 : index
    %263 = vector.load %arg11[%c0_193, %c20_194] : memref<4x384xf32, #tpu.memory_space<vmem>>, vector<4x288xf32>
    %cst_195 = arith.constant dense<0.000000e+00> : vector<4x288xf32>
    %264 = tpu.matmul %262, %263, %cst_195 {dimension_numbers = #tpu.dot_dimension_numbers<[1], [0], [0], [1], [0, 0, 1, 1], [], []>} : vector<4x4xf32>, vector<4x288xf32>, vector<4x288xf32> -> vector<4x288xf32>
    %265 = arith.addf %261, %264 : vector<4x288xf32>
    %266 = vector.extract_strided_slice %240 {offsets = [0, 24], sizes = [4, 4], strides = [1, 1]} : vector<4x36xf32> to vector<4x4xf32>
    %c0_196 = arith.constant 0 : index
    %c36_197 = arith.constant 36 : index
    %267 = vector.load %arg11[%c0_196, %c36_197] : memref<4x384xf32, #tpu.memory_space<vmem>>, vector<4x288xf32>
    %cst_198 = arith.constant dense<0.000000e+00> : vector<4x288xf32>
    %268 = tpu.matmul %266, %267, %cst_198 {dimension_numbers = #tpu.dot_dimension_numbers<[1], [0], [0], [1], [0, 0, 1, 1], [], []>} : vector<4x4xf32>, vector<4x288xf32>, vector<4x288xf32> -> vector<4x288xf32>
    %269 = arith.addf %265, %268 : vector<4x288xf32>
    %270 = vector.extract_strided_slice %240 {offsets = [0, 28], sizes = [4, 4], strides = [1, 1]} : vector<4x36xf32> to vector<4x4xf32>
    %c0_199 = arith.constant 0 : index
    %c37_200 = arith.constant 37 : index
    %271 = vector.load %arg11[%c0_199, %c37_200] : memref<4x384xf32, #tpu.memory_space<vmem>>, vector<4x288xf32>
    %cst_201 = arith.constant dense<0.000000e+00> : vector<4x288xf32>
    %272 = tpu.matmul %270, %271, %cst_201 {dimension_numbers = #tpu.dot_dimension_numbers<[1], [0], [0], [1], [0, 0, 1, 1], [], []>} : vector<4x4xf32>, vector<4x288xf32>, vector<4x288xf32> -> vector<4x288xf32>
    %273 = arith.addf %269, %272 : vector<4x288xf32>
    %274 = vector.extract_strided_slice %240 {offsets = [0, 32], sizes = [4, 4], strides = [1, 1]} : vector<4x36xf32> to vector<4x4xf32>
    %c0_202 = arith.constant 0 : index
    %c38_203 = arith.constant 38 : index
    %275 = vector.load %arg11[%c0_202, %c38_203] : memref<4x384xf32, #tpu.memory_space<vmem>>, vector<4x288xf32>
    %cst_204 = arith.constant dense<0.000000e+00> : vector<4x288xf32>
    %276 = tpu.matmul %274, %275, %cst_204 {dimension_numbers = #tpu.dot_dimension_numbers<[1], [0], [0], [1], [0, 0, 1, 1], [], []>} : vector<4x4xf32>, vector<4x288xf32>, vector<4x288xf32> -> vector<4x288xf32>
    %277 = arith.addf %273, %276 : vector<4x288xf32>
    %cst_205 = arith.constant 5.000000e-01 : f32
    %278 = vector.broadcast %cst_205 : f32 to vector<4x288xf32>
    %279 = arith.mulf %278, %277 : vector<4x288xf32>
    %cst_206 = arith.constant 0.707106769 : f32
    %280 = vector.broadcast %cst_206 : f32 to vector<4x288xf32>
    %281 = arith.mulf %277, %280 : vector<4x288xf32>
    %282 = math.erf %281 : vector<4x288xf32>
    %cst_207 = arith.constant 1.000000e+00 : f32
    %283 = vector.broadcast %cst_207 : f32 to vector<4x288xf32>
    %284 = arith.addf %283, %282 : vector<4x288xf32>
    %285 = arith.mulf %279, %284 : vector<4x288xf32>
    %286 = vector.extract_strided_slice %285 {offsets = [0, 0], sizes = [4, 16], strides = [1, 1]} : vector<4x288xf32> to vector<4x16xf32>
    %c0_208 = arith.constant 0 : index
    %c0_209 = arith.constant 0 : index
    %c0_210 = arith.constant 0 : index
    %287 = vector.load %arg9[%c0_208, %c0_209, %c0_210] : memref<1x4x256xf32, #tpu.memory_space<vmem>>, vector<1x4x16xf32>
    %288 = vector.shape_cast %287 : vector<1x4x16xf32> to vector<4x16xf32>
    %289 = vector.shape_cast %286 : vector<4x16xf32> to vector<1x4x16xf32>
    tpu.vector_store %arg9[%c0_208, %c0_209, %c0_210], %289 {strides = array<i32>} : memref<1x4x256xf32, #tpu.memory_space<vmem>>, vector<1x4x16xf32>,
    %290 = vector.extract_strided_slice %285 {offsets = [0, 18], sizes = [4, 16], strides = [1, 1]} : vector<4x288xf32> to vector<4x16xf32>
    %c0_211 = arith.constant 0 : index
    %c0_212 = arith.constant 0 : index
    %c16 = arith.constant 16 : index
    %291 = vector.load %arg9[%c0_211, %c0_212, %c16] : memref<1x4x256xf32, #tpu.memory_space<vmem>>, vector<1x4x16xf32>
    %292 = vector.shape_cast %291 : vector<1x4x16xf32> to vector<4x16xf32>
    %293 = vector.shape_cast %290 : vector<4x16xf32> to vector<1x4x16xf32>
    tpu.vector_store %arg9[%c0_211, %c0_212, %c16], %293 {strides = array<i32>} : memref<1x4x256xf32, #tpu.memory_space<vmem>>, vector<1x4x16xf32>,
    %294 = vector.extract_strided_slice %285 {offsets = [0, 36], sizes = [4, 16], strides = [1, 1]} : vector<4x288xf32> to vector<4x16xf32>
    %c0_213 = arith.constant 0 : index
    %c0_214 = arith.constant 0 : index
    %c32 = arith.constant 32 : index
    %295 = vector.load %arg9[%c0_213, %c0_214, %c32] : memref<1x4x256xf32, #tpu.memory_space<vmem>>, vector<1x4x16xf32>
    %296 = vector.shape_cast %295 : vector<1x4x16xf32> to vector<4x16xf32>
    %297 = vector.shape_cast %294 : vector<4x16xf32> to vector<1x4x16xf32>
    tpu.vector_store %arg9[%c0_213, %c0_214, %c32], %297 {strides = array<i32>} : memref<1x4x256xf32, #tpu.memory_space<vmem>>, vector<1x4x16xf32>,
    %298 = vector.extract_strided_slice %285 {offsets = [0, 54], sizes = [4, 16], strides = [1, 1]} : vector<4x288xf32> to vector<4x16xf32>
    %c0_215 = arith.constant 0 : index
    %c0_216 = arith.constant 0 : index
    %c48 = arith.constant 48 : index
    %299 = vector.load %arg9[%c0_215, %c0_216, %c48] : memref<1x4x256xf32, #tpu.memory_space<vmem>>, vector<1x4x16xf32>
    %300 = vector.shape_cast %299 : vector<1x4x16xf32> to vector<4x16xf32>
    %301 = vector.shape_cast %298 : vector<4x16xf32> to vector<1x4x16xf32>
    tpu.vector_store %arg9[%c0_215, %c0_216, %c48], %301 {strides = array<i32>} : memref<1x4x256xf32, #tpu.memory_space<vmem>>, vector<1x4x16xf32>,
    %302 = vector.extract_strided_slice %285 {offsets = [0, 72], sizes = [4, 16], strides = [1, 1]} : vector<4x288xf32> to vector<4x16xf32>
    %c0_217 = arith.constant 0 : index
    %c0_218 = arith.constant 0 : index
    %c64 = arith.constant 64 : index
    %303 = vector.load %arg9[%c0_217, %c0_218, %c64] : memref<1x4x256xf32, #tpu.memory_space<vmem>>, vector<1x4x16xf32>
    %304 = vector.shape_cast %303 : vector<1x4x16xf32> to vector<4x16xf32>
    %305 = vector.shape_cast %302 : vector<4x16xf32> to vector<1x4x16xf32>
    tpu.vector_store %arg9[%c0_217, %c0_218, %c64], %305 {strides = array<i32>} : memref<1x4x256xf32, #tpu.memory_space<vmem>>, vector<1x4x16xf32>,
    %306 = vector.extract_strided_slice %285 {offsets = [0, 90], sizes = [4, 16], strides = [1, 1]} : vector<4x288xf32> to vector<4x16xf32>
    %c0_219 = arith.constant 0 : index
    %c0_220 = arith.constant 0 : index
    %c80 = arith.constant 80 : index
    %307 = vector.load %arg9[%c0_219, %c0_220, %c80] : memref<1x4x256xf32, #tpu.memory_space<vmem>>, vector<1x4x16xf32>
    %308 = vector.shape_cast %307 : vector<1x4x16xf32> to vector<4x16xf32>
    %309 = vector.shape_cast %306 : vector<4x16xf32> to vector<1x4x16xf32>
    tpu.vector_store %arg9[%c0_219, %c0_220, %c80], %309 {strides = array<i32>} : memref<1x4x256xf32, #tpu.memory_space<vmem>>, vector<1x4x16xf32>,
    %310 = vector.extract_strided_slice %285 {offsets = [0, 108], sizes = [4, 16], strides = [1, 1]} : vector<4x288xf32> to vector<4x16xf32>
    %c0_221 = arith.constant 0 : index
    %c0_222 = arith.constant 0 : index
    %c96 = arith.constant 96 : index
    %311 = vector.load %arg9[%c0_221, %c0_222, %c96] : memref<1x4x256xf32, #tpu.memory_space<vmem>>, vector<1x4x16xf32>
    %312 = vector.shape_cast %311 : vector<1x4x16xf32> to vector<4x16xf32>
    %313 = vector.shape_cast %310 : vector<4x16xf32> to vector<1x4x16xf32>
    tpu.vector_store %arg9[%c0_221, %c0_222, %c96], %313 {strides = array<i32>} : memref<1x4x256xf32, #tpu.memory_space<vmem>>, vector<1x4x16xf32>,
    %314 = vector.extract_strided_slice %285 {offsets = [0, 126], sizes = [4, 16], strides = [1, 1]} : vector<4x288xf32> to vector<4x16xf32>
    %c0_223 = arith.constant 0 : index
    %c0_224 = arith.constant 0 : index
    %c112 = arith.constant 112 : index
    %315 = vector.load %arg9[%c0_223, %c0_224, %c112] : memref<1x4x256xf32, #tpu.memory_space<vmem>>, vector<1x4x16xf32>
    %316 = vector.shape_cast %315 : vector<1x4x16xf32> to vector<4x16xf32>
    %317 = vector.shape_cast %314 : vector<4x16xf32> to vector<1x4x16xf32>
    tpu.vector_store %arg9[%c0_223, %c0_224, %c112], %317 {strides = array<i32>} : memref<1x4x256xf32, #tpu.memory_space<vmem>>, vector<1x4x16xf32>,
    %318 = vector.extract_strided_slice %285 {offsets = [0, 144], sizes = [4, 16], strides = [1, 1]} : vector<4x288xf32> to vector<4x16xf32>
    %c0_225 = arith.constant 0 : index
    %c0_226 = arith.constant 0 : index
    %c128 = arith.constant 128 : index
    %319 = vector.load %arg9[%c0_225, %c0_226, %c128] : memref<1x4x256xf32, #tpu.memory_space<vmem>>, vector<1x4x16xf32>
    %320 = vector.shape_cast %319 : vector<1x4x16xf32> to vector<4x16xf32>
    %321 = vector.shape_cast %318 : vector<4x16xf32> to vector<1x4x16xf32>
    tpu.vector_store %arg9[%c0_225, %c0_226, %c128], %321 {strides = array<i32>} : memref<1x4x256xf32, #tpu.memory_space<vmem>>, vector<1x4x16xf32>,
    %322 = vector.extract_strided_slice %285 {offsets = [0, 162], sizes = [4, 16], strides = [1, 1]} : vector<4x288xf32> to vector<4x16xf32>
    %c0_227 = arith.constant 0 : index
    %c0_228 = arith.constant 0 : index
    %c144 = arith.constant 144 : index
    %323 = vector.load %arg9[%c0_227, %c0_228, %c144] : memref<1x4x256xf32, #tpu.memory_space<vmem>>, vector<1x4x16xf32>
    %324 = vector.shape_cast %323 : vector<1x4x16xf32> to vector<4x16xf32>
    %325 = vector.shape_cast %322 : vector<4x16xf32> to vector<1x4x16xf32>
    tpu.vector_store %arg9[%c0_227, %c0_228, %c144], %325 {strides = array<i32>} : memref<1x4x256xf32, #tpu.memory_space<vmem>>, vector<1x4x16xf32>,
    %326 = vector.extract_strided_slice %285 {offsets = [0, 180], sizes = [4, 16], strides = [1, 1]} : vector<4x288xf32> to vector<4x16xf32>
    %c0_229 = arith.constant 0 : index
    %c0_230 = arith.constant 0 : index
    %c160 = arith.constant 160 : index
    %327 = vector.load %arg9[%c0_229, %c0_230, %c160] : memref<1x4x256xf32, #tpu.memory_space<vmem>>, vector<1x4x16xf32>
    %328 = vector.shape_cast %327 : vector<1x4x16xf32> to vector<4x16xf32>
    %329 = vector.shape_cast %326 : vector<4x16xf32> to vector<1x4x16xf32>
    tpu.vector_store %arg9[%c0_229, %c0_230, %c160], %329 {strides = array<i32>} : memref<1x4x256xf32, #tpu.memory_space<vmem>>, vector<1x4x16xf32>,
    %330 = vector.extract_strided_slice %285 {offsets = [0, 198], sizes = [4, 16], strides = [1, 1]} : vector<4x288xf32> to vector<4x16xf32>
    %c0_231 = arith.constant 0 : index
    %c0_232 = arith.constant 0 : index
    %c176 = arith.constant 176 : index
    %331 = vector.load %arg9[%c0_231, %c0_232, %c176] : memref<1x4x256xf32, #tpu.memory_space<vmem>>, vector<1x4x16xf32>
    %332 = vector.shape_cast %331 : vector<1x4x16xf32> to vector<4x16xf32>
    %333 = vector.shape_cast %330 : vector<4x16xf32> to vector<1x4x16xf32>
    tpu.vector_store %arg9[%c0_231, %c0_232, %c176], %333 {strides = array<i32>} : memref<1x4x256xf32, #tpu.memory_space<vmem>>, vector<1x4x16xf32>,
    %334 = vector.extract_strided_slice %285 {offsets = [0, 216], sizes = [4, 16], strides = [1, 1]} : vector<4x288xf32> to vector<4x16xf32>
    %c0_233 = arith.constant 0 : index
    %c0_234 = arith.constant 0 : index
    %c192 = arith.constant 192 : index
    %335 = vector.load %arg9[%c0_233, %c0_234, %c192] : memref<1x4x256xf32, #tpu.memory_space<vmem>>, vector<1x4x16xf32>
    %336 = vector.shape_cast %335 : vector<1x4x16xf32> to vector<4x16xf32>
    %337 = vector.shape_cast %334 : vector<4x16xf32> to vector<1x4x16xf32>
    tpu.vector_store %arg9[%c0_233, %c0_234, %c192], %337 {strides = array<i32>} : memref<1x4x256xf32, #tpu.memory_space<vmem>>, vector<1x4x16xf32>,
    %338 = vector.extract_strided_slice %285 {offsets = [0, 234], sizes = [4, 16], strides = [1, 1]} : vector<4x288xf32> to vector<4x16xf32>
    %c0_235 = arith.constant 0 : index
    %c0_236 = arith.constant 0 : index
    %c208 = arith.constant 208 : index
    %339 = vector.load %arg9[%c0_235, %c0_236, %c208] : memref<1x4x256xf32, #tpu.memory_space<vmem>>, vector<1x4x16xf32>
    %340 = vector.shape_cast %339 : vector<1x4x16xf32> to vector<4x16xf32>
    %341 = vector.shape_cast %338 : vector<4x16xf32> to vector<1x4x16xf32>
    tpu.vector_store %arg9[%c0_235, %c0_236, %c208], %341 {strides = array<i32>} : memref<1x4x256xf32, #tpu.memory_space<vmem>>, vector<1x4x16xf32>,
    %342 = vector.extract_strided_slice %285 {offsets = [0, 252], sizes = [4, 16], strides = [1, 1]} : vector<4x288xf32> to vector<4x16xf32>
    %c0_237 = arith.constant 0 : index
    %c0_238 = arith.constant 0 : index
    %c224 = arith.constant 224 : index
    %343 = vector.load %arg9[%c0_237, %c0_238, %c224] : memref<1x4x256xf32, #tpu.memory_space<vmem>>, vector<1x4x16xf32>
    %344 = vector.shape_cast %343 : vector<1x4x16xf32> to vector<4x16xf32>
    %345 = vector.shape_cast %342 : vector<4x16xf32> to vector<1x4x16xf32>
    tpu.vector_store %arg9[%c0_237, %c0_238, %c224], %345 {strides = array<i32>} : memref<1x4x256xf32, #tpu.memory_space<vmem>>, vector<1x4x16xf32>,
    %346 = vector.extract_strided_slice %285 {offsets = [0, 270], sizes = [4, 16], strides = [1, 1]} : vector<4x288xf32> to vector<4x16xf32>
    %c0_239 = arith.constant 0 : index
    %c0_240 = arith.constant 0 : index
    %c240 = arith.constant 240 : index
    %347 = vector.load %arg9[%c0_239, %c0_240, %c240] : memref<1x4x256xf32, #tpu.memory_space<vmem>>, vector<1x4x16xf32>
    %348 = vector.shape_cast %347 : vector<1x4x16xf32> to vector<4x16xf32>
    %349 = vector.shape_cast %346 : vector<4x16xf32> to vector<1x4x16xf32>
    tpu.vector_store %arg9[%c0_239, %c0_240, %c240], %349 {strides = array<i32>} : memref<1x4x256xf32, #tpu.memory_space<vmem>>, vector<1x4x16xf32>,
    return
  }
  func.func @transform_0(%arg0: i32) -> (i32, i32, i32) {
    %c0_i32 = arith.constant 0 : i32
    %c0_i32_0 = arith.constant 0 : i32
    %c0_i32_1 = arith.constant 0 : i32
    return %arg0, %c0_i32, %c0_i32_0 : i32, i32, i32
  }
  func.func @transform_1(%arg0: i32) -> (i32, i32, i32) {
    %c0_i32 = arith.constant 0 : i32
    %c0_i32_0 = arith.constant 0 : i32
    %c0_i32_1 = arith.constant 0 : i32
    return %arg0, %c0_i32, %c0_i32_0 : i32, i32, i32
  }
  func.func @transform_2(%arg0: i32) -> (i32, i32) {
    %c0_i32 = arith.constant 0 : i32
    %c0_i32_0 = arith.constant 0 : i32
    %c0_i32_1 = arith.constant 0 : i32
    return %c0_i32, %c0_i32_0 : i32, i32
  }
  func.func @transform_3(%arg0: i32) -> (i32, i32) {
    %c0_i32 = arith.constant 0 : i32
    %c0_i32_0 = arith.constant 0 : i32
    %c0_i32_1 = arith.constant 0 : i32
    return %c0_i32, %c0_i32_0 : i32, i32
  }
  func.func @transform_4(%arg0: i32) -> (i32, i32) {
    %c0_i32 = arith.constant 0 : i32
    %c0_i32_0 = arith.constant 0 : i32
    %c0_i32_1 = arith.constant 0 : i32
    return %c0_i32, %c0_i32_0 : i32, i32
  }
  func.func @transform_5(%arg0: i32) -> (i32, i32) {
    %c0_i32 = arith.constant 0 : i32
    %c0_i32_0 = arith.constant 0 : i32
    %c0_i32_1 = arith.constant 0 : i32
    return %c0_i32, %c0_i32_0 : i32, i32
  }
  func.func @transform_6(%arg0: i32) -> (i32, i32) {
    %c0_i32 = arith.constant 0 : i32
    %c0_i32_0 = arith.constant 0 : i32
    %c0_i32_1 = arith.constant 0 : i32
    return %c0_i32, %c0_i32_0 : i32, i32
  }
  func.func @transform_7(%arg0: i32) -> (i32, i32) {
    %c0_i32 = arith.constant 0 : i32
    %c0_i32_0 = arith.constant 0 : i32
    %c0_i32_1 = arith.constant 0 : i32
    return %c0_i32, %c0_i32_0 : i32, i32
  }
  func.func @transform_8(%arg0: i32) -> (i32, i32, i32) {
    %c0_i32 = arith.constant 0 : i32
    %c0_i32_0 = arith.constant 0 : i32
    %c0_i32_1 = arith.constant 0 : i32
    return %arg0, %c0_i32, %c0_i32_0 : i32, i32, i32
  }
}

</mosaic_0001>

<llo_original>
// kernel: unet_up_forward.1
$region0: #{unet_up_forward.1}
  #allocation0 [shape = 'u32[]', space=smem, size = 0x4, offset = 0x4, fixed_abs, tag = 'smem constant byte address 0x4 - core index']
  #allocation1 [shape = 'u32[72,128]{1,0:T(1,128)}', space=vmem, size = 0x9000, scoped, tag = 'internal scratch']
  #allocation2 [shape = 'f32[4,384]{1,0:T(4,128)}', space=vmem, size = 0x1800, scoped, tag = 'scratch operand']
  #allocation3 [shape = 'f32[4,384]{1,0:T(4,128)}', space=vmem, size = 0x1800, scoped, tag = 'scratch operand']
  %s0 = inlined_call_operand.vmem [shape: f32[2,4,384], index: 0, kind: input, shape index: {}]
  %s1 = inlined_call_operand.vmem [shape: f32[2,8,384], index: 1, kind: input, shape index: {}]
  %s2 = inlined_call_operand.vmem [shape: f32[4,128], index: 2, kind: input, shape index: {}]
  %s3 = inlined_call_operand.vmem [shape: f32[4,36], index: 3, kind: input, shape index: {}]
  %s4 = inlined_call_operand.vmem [shape: f32[4,36], index: 4, kind: input, shape index: {}]
  %s5 = inlined_call_operand.vmem [shape: f32[4,36], index: 5, kind: input, shape index: {}]
  %s6 = inlined_call_operand.vmem [shape: f32[4,1], index: 6, kind: input, shape index: {}]
  %s7 = inlined_call_operand.vmem [shape: f32[4,1], index: 7, kind: input, shape index: {}]
  %s8 = inlined_call_operand.vmem [shape: f32[2,4,256], index: 8, kind: output, shape index: {}]
  %s9 = sld [smem:[#allocation0]]
  $region65: #{unet_up_forward.1} parent=0
    _
  %s11 = ssub.s32 1, %s9
  %s12 = scalar_select 0, %s11, %s9
  loop: start=0, step=1, limit=4
  $region2: #{unet_up_forward.1} parent=0 // loop_pre_header
    _
  $region3: #{unet_up_forward.1} parent=0 // loop_header
    %s14 = sphi 0, %s18
    %p15 = scmp.ge.s32.totalorder %s14, 4
    %s24 = sphi 0, %s26
    %s27 = sphi 0, %s24
    %s28 = sphi 0, %s27
    %s44 = sphi 0, %s28
    %s50 = sphi 0, %s52
    %s53 = sphi 0, %s50
    %s54 = sphi 0, %s53
    %s70 = sphi 0, %s54
    %s74 = sphi 0, %s74
    %s76 = sphi 0, %s74
    %s77 = sphi 0, %s76
    %s91 = sphi 0, %s77
    %s95 = sphi 0, %s95
    %s97 = sphi 0, %s95
    %s98 = sphi 0, %s97
    %s112 = sphi 0, %s98
    %s116 = sphi 0, %s116
    %s118 = sphi 0, %s116
    %s119 = sphi 0, %s118
    %s133 = sphi 0, %s119
    %s137 = sphi 0, %s137
    %s139 = sphi 0, %s137
    %s140 = sphi 0, %s139
    %s154 = sphi 0, %s140
    %s158 = sphi 0, %s158
    %s160 = sphi 0, %s158
    %s161 = sphi 0, %s160
    %s175 = sphi 0, %s161
    %s179 = sphi 0, %s179
    %s181 = sphi 0, %s179
    %s182 = sphi 0, %s181
    %s196 = sphi 0, %s182
    %s202 = sphi 0, %s204
    %s205 = sphi 0, %s202
    %s206 = sphi 0, %s205
    %s222 = sphi 0, %s206
  $region4: #{unet_up_forward.1} parent=0 // loop_header_branch
    %17 = sbr.rel (%p15) target = $region8
  $region5: #{unet_up_forward.1} parent=0 // loop_body
    %s19 = ssub.s32 %s14, 1
    %s20 = ssub.s32 %s14, 2
    %s21 = sadd.s32 %s14, 1
    %s22 = ssub.s32 %s14, %s21
    %p23 = scmp.eq.s32.totalorder %s22, 0
    %s25 = sadd.s32 %s24, 1
    %s26 = scalar_select %p23, %s24, %s25
    %p29 = pneg %p23
    %p30 = scmp.eq.s32.totalorder %s14, 1
    %p31 = por %p29, %p30
    %p32 = scmp.ne.s32.totalorder %s24, %s27
    %p33 = scmp.eq.s32.totalorder %s14, 0
    %p34 = por %p32, %p33
    %p35 = scmp.ne.s32.totalorder %s24, %s27
    %p36 = scmp.eq.s32.totalorder %s19, 1
    %p37 = por %p35, %p36
    %p38 = scmp.ne.s32.totalorder %s27, %s28
    %p39 = scmp.eq.s32.totalorder %s19, 0
    %p40 = por %p38, %p39
    %p41 = scmp.ne.s32.totalorder %s27, %s28
    %p42 = scmp.eq.s32.totalorder %s20, 1
    %p43 = por %p41, %p42
    %p45 = scmp.ne.s32.totalorder %s28, %s44
    %p46 = scmp.eq.s32.totalorder %s20, 0
    %p47 = por %p45, %p46
    %s48 = ssub.s32 %s14, %s21
    %p49 = scmp.eq.s32.totalorder %s48, 0
    %s51 = sadd.s32 %s50, 1
    %s52 = scalar_select %p49, %s50, %s51
    %p55 = pneg %p49
    %p56 = scmp.eq.s32.totalorder %s14, 1
    %p57 = por %p55, %p56
    %p58 = scmp.ne.s32.totalorder %s50, %s53
    %p59 = scmp.eq.s32.totalorder %s14, 0
    %p60 = por %p58, %p59
    %p61 = scmp.ne.s32.totalorder %s50, %s53
    %p62 = scmp.eq.s32.totalorder %s19, 1
    %p63 = por %p61, %p62
    %p64 = scmp.ne.s32.totalorder %s53, %s54
    %p65 = scmp.eq.s32.totalorder %s19, 0
    %p66 = por %p64, %p65
    %p67 = scmp.ne.s32.totalorder %s53, %s54
    %p68 = scmp.eq.s32.totalorder %s20, 1
    %p69 = por %p67, %p68
    %p71 = scmp.ne.s32.totalorder %s54, %s70
    %p72 = scmp.eq.s32.totalorder %s20, 0
    %p73 = por %p71, %p72
    %s75 = sadd.s32 %s74, 1
    %p78 = scmp.eq.s32.totalorder %s14, 1
    %p79 = scmp.ne.s32.totalorder %s74, %s76
    %p80 = scmp.eq.s32.totalorder %s14, 0
    %p81 = por %p79, %p80
    %p82 = scmp.ne.s32.totalorder %s74, %s76
    %p83 = scmp.eq.s32.totalorder %s19, 1
    %p84 = por %p82, %p83
    %p85 = scmp.ne.s32.totalorder %s76, %s77
    %p86 = scmp.eq.s32.totalorder %s19, 0
    %p87 = por %p85, %p86
    %p88 = scmp.ne.s32.totalorder %s76, %s77
    %p89 = scmp.eq.s32.totalorder %s20, 1
    %p90 = por %p88, %p89
    %p92 = scmp.ne.s32.totalorder %s77, %s91
    %p93 = scmp.eq.s32.totalorder %s20, 0
    %p94 = por %p92, %p93
    %s96 = sadd.s32 %s95, 1
    %p99 = scmp.eq.s32.totalorder %s14, 1
    %p100 = scmp.ne.s32.totalorder %s95, %s97
    %p101 = scmp.eq.s32.totalorder %s14, 0
    %p102 = por %p100, %p101
    %p103 = scmp.ne.s32.totalorder %s95, %s97
    %p104 = scmp.eq.s32.totalorder %s19, 1
    %p105 = por %p103, %p104
    %p106 = scmp.ne.s32.totalorder %s97, %s98
    %p107 = scmp.eq.s32.totalorder %s19, 0
    %p108 = por %p106, %p107
    %p109 = scmp.ne.s32.totalorder %s97, %s98
    %p110 = scmp.eq.s32.totalorder %s20, 1
    %p111 = por %p109, %p110
    %p113 = scmp.ne.s32.totalorder %s98, %s112
    %p114 = scmp.eq.s32.totalorder %s20, 0
    %p115 = por %p113, %p114
    %s117 = sadd.s32 %s116, 1
    %p120 = scmp.eq.s32.totalorder %s14, 1
    %p121 = scmp.ne.s32.totalorder %s116, %s118
    %p122 = scmp.eq.s32.totalorder %s14, 0
    %p123 = por %p121, %p122
    %p124 = scmp.ne.s32.totalorder %s116, %s118
    %p125 = scmp.eq.s32.totalorder %s19, 1
    %p126 = por %p124, %p125
    %p127 = scmp.ne.s32.totalorder %s118, %s119
    %p128 = scmp.eq.s32.totalorder %s19, 0
    %p129 = por %p127, %p128
    %p130 = scmp.ne.s32.totalorder %s118, %s119
    %p131 = scmp.eq.s32.totalorder %s20, 1
    %p132 = por %p130, %p131
    %p134 = scmp.ne.s32.totalorder %s119, %s133
    %p135 = scmp.eq.s32.totalorder %s20, 0
    %p136 = por %p134, %p135
    %s138 = sadd.s32 %s137, 1
    %p141 = scmp.eq.s32.totalorder %s14, 1
    %p142 = scmp.ne.s32.totalorder %s137, %s139
    %p143 = scmp.eq.s32.totalorder %s14, 0
    %p144 = por %p142, %p143
    %p145 = scmp.ne.s32.totalorder %s137, %s139
    %p146 = scmp.eq.s32.totalorder %s19, 1
    %p147 = por %p145, %p146
    %p148 = scmp.ne.s32.totalorder %s139, %s140
    %p149 = scmp.eq.s32.totalorder %s19, 0
    %p150 = por %p148, %p149
    %p151 = scmp.ne.s32.totalorder %s139, %s140
    %p152 = scmp.eq.s32.totalorder %s20, 1
    %p153 = por %p151, %p152
    %p155 = scmp.ne.s32.totalorder %s140, %s154
    %p156 = scmp.eq.s32.totalorder %s20, 0
    %p157 = por %p155, %p156
    %s159 = sadd.s32 %s158, 1
    %p162 = scmp.eq.s32.totalorder %s14, 1
    %p163 = scmp.ne.s32.totalorder %s158, %s160
    %p164 = scmp.eq.s32.totalorder %s14, 0
    %p165 = por %p163, %p164
    %p166 = scmp.ne.s32.totalorder %s158, %s160
    %p167 = scmp.eq.s32.totalorder %s19, 1
    %p168 = por %p166, %p167
    %p169 = scmp.ne.s32.totalorder %s160, %s161
    %p170 = scmp.eq.s32.totalorder %s19, 0
    %p171 = por %p169, %p170
    %p172 = scmp.ne.s32.totalorder %s160, %s161
    %p173 = scmp.eq.s32.totalorder %s20, 1
    %p174 = por %p172, %p173
    %p176 = scmp.ne.s32.totalorder %s161, %s175
    %p177 = scmp.eq.s32.totalorder %s20, 0
    %p178 = por %p176, %p177
    %s180 = sadd.s32 %s179, 1
    %p183 = scmp.eq.s32.totalorder %s14, 1
    %p184 = scmp.ne.s32.totalorder %s179, %s181
    %p185 = scmp.eq.s32.totalorder %s14, 0
    %p186 = por %p184, %p185
    %p187 = scmp.ne.s32.totalorder %s179, %s181
    %p188 = scmp.eq.s32.totalorder %s19, 1
    %p189 = por %p187, %p188
    %p190 = scmp.ne.s32.totalorder %s181, %s182
    %p191 = scmp.eq.s32.totalorder %s19, 0
    %p192 = por %p190, %p191
    %p193 = scmp.ne.s32.totalorder %s181, %s182
    %p194 = scmp.eq.s32.totalorder %s20, 1
    %p195 = por %p193, %p194
    %p197 = scmp.ne.s32.totalorder %s182, %s196
    %p198 = scmp.eq.s32.totalorder %s20, 0
    %p199 = por %p197, %p198
    %s200 = ssub.s32 %s14, %s21
    %p201 = scmp.eq.s32.totalorder %s200, 0
    %s203 = sadd.s32 %s202, 1
    %s204 = scalar_select %p201, %s202, %s203
    %p207 = pneg %p201
    %p208 = scmp.eq.s32.totalorder %s14, 1
    %p209 = por %p207, %p208
    %p210 = scmp.ne.s32.totalorder %s202, %s205
    %p211 = scmp.eq.s32.totalorder %s14, 0
    %p212 = por %p210, %p211
    %p213 = scmp.ne.s32.totalorder %s202, %s205
    %p214 = scmp.eq.s32.totalorder %s19, 1
    %p215 = por %p213, %p214
    %p216 = scmp.ne.s32.totalorder %s205, %s206
    %p217 = scmp.eq.s32.totalorder %s19, 0
    %p218 = por %p216, %p217
    %p219 = scmp.ne.s32.totalorder %s205, %s206
    %p220 = scmp.eq.s32.totalorder %s20, 1
    %p221 = por %p219, %p220
    %p223 = scmp.ne.s32.totalorder %s206, %s222
    %p224 = scmp.eq.s32.totalorder %s20, 0
    %p225 = por %p223, %p224
    %p226 = scmp.le.s32.totalorder 1, %s14
    %p227 = scmp.lt.s32.totalorder %s14, 3
    %p228 = pnand %p226, %p227
    %p229 = pneg %p228
    // Predicated region
    $region9: #{unet_up_forward.1} parent=5 // pred_check
      _
    $region10: #{unet_up_forward.1} parent=5 // pred_check_branch
      %231 = sbr.rel (%p228) target = $region12
    $region11: #{unet_up_forward.1} parent=5 // pred_region
      %s232 = ssub.s32 %s14, 1
      // Predicated region
      $region13: #{unet_up_forward.1} parent=11 // pred_check
        %p233 = pneg %p87
      $region14: #{unet_up_forward.1} parent=11 // pred_check_branch
        %235 = sbr.rel (%p233) target = $region16
      $region15: #{unet_up_forward.1} parent=11 // pred_region
        _
      $region16: #{unet_up_forward.1} parent=11 // pred_fallthru
        _
      // Predicated region
      $region17: #{unet_up_forward.1} parent=11 // pred_check
        %p236 = pneg %p108
      $region18: #{unet_up_forward.1} parent=11 // pred_check_branch
        %238 = sbr.rel (%p236) target = $region20
      $region19: #{unet_up_forward.1} parent=11 // pred_region
        _
      $region20: #{unet_up_forward.1} parent=11 // pred_fallthru
        _
      // Predicated region
      $region21: #{unet_up_forward.1} parent=11 // pred_check
        %p239 = pneg %p129
      $region22: #{unet_up_forward.1} parent=11 // pred_check_branch
        %241 = sbr.rel (%p239) target = $region24
      $region23: #{unet_up_forward.1} parent=11 // pred_region
        _
      $region24: #{unet_up_forward.1} parent=11 // pred_fallthru
        _
      // Predicated region
      $region25: #{unet_up_forward.1} parent=11 // pred_check
        %p242 = pneg %p150
      $region26: #{unet_up_forward.1} parent=11 // pred_check_branch
        %244 = sbr.rel (%p242) target = $region28
      $region27: #{unet_up_forward.1} parent=11 // pred_region
        _
      $region28: #{unet_up_forward.1} parent=11 // pred_fallthru
        _
      // Predicated region
      $region29: #{unet_up_forward.1} parent=11 // pred_check
        %p245 = pneg %p171
      $region30: #{unet_up_forward.1} parent=11 // pred_check_branch
        %247 = sbr.rel (%p245) target = $region32
      $region31: #{unet_up_forward.1} parent=11 // pred_region
        _
      $region32: #{unet_up_forward.1} parent=11 // pred_fallthru
        _
      // Predicated region
      $region33: #{unet_up_forward.1} parent=11 // pred_check
        %p248 = pneg %p192
      $region34: #{unet_up_forward.1} parent=11 // pred_check_branch
        %250 = sbr.rel (%p248) target = $region36
      $region35: #{unet_up_forward.1} parent=11 // pred_region
        _
      $region36: #{unet_up_forward.1} parent=11 // pred_fallthru
        _
    $region12: #{unet_up_forward.1} parent=5 // pred_fallthru
      _
    %p251 = scmp.lt.s32.totalorder %s14, 2
    // Predicated region
    $region37: #{unet_up_forward.1} parent=5 // pred_check
      %p252 = pneg %p251
    $region38: #{unet_up_forward.1} parent=5 // pred_check_branch
      %254 = sbr.rel (%p252) target = $region40
    $region39: #{unet_up_forward.1} parent=5 // pred_region
      // Predicated region
      $region41: #{unet_up_forward.1} parent=39 // pred_check
        %p255 = pneg %p34
      $region42: #{unet_up_forward.1} parent=39 // pred_check_branch
        %257 = sbr.rel (%p255) target = $region44
      $region43: #{unet_up_forward.1} parent=39 // pred_region
        %p258 = scmp.lt.s32.totalorder %s14, 1
        %s259 = scalar_select %p258, %s14, 1
        %s260 = smul.addr %s259, 3
        %s261 = smul.addr %s260, 4
        %s262 = scalar_lea.vmem %s0, %s261
      $region44: #{unet_up_forward.1} parent=39 // pred_fallthru
        _
      // Predicated region
      $region45: #{unet_up_forward.1} parent=39 // pred_check
        %p263 = pneg %p60
      $region46: #{unet_up_forward.1} parent=39 // pred_check_branch
        %265 = sbr.rel (%p263) target = $region48
      $region47: #{unet_up_forward.1} parent=39 // pred_region
        %p266 = scmp.lt.s32.totalorder %s14, 1
        %s267 = scalar_select %p266, %s14, 1
        %s268 = smul.addr %s267, 3
        %s269 = smul.addr %s268, 8
        %s270 = scalar_lea.vmem %s1, %s269
      $region48: #{unet_up_forward.1} parent=39 // pred_fallthru
        _
    $region40: #{unet_up_forward.1} parent=5 // pred_fallthru
      _
    %p271 = scmp.le.s32.totalorder 1, %s14
    %p272 = scmp.lt.s32.totalorder %s14, 3
    %p273 = pnand %p271, %p272
    %p274 = pneg %p273
    // Predicated region
    $region49: #{unet_up_forward.1} parent=5 // pred_check
      _
    $region50: #{unet_up_forward.1} parent=5 // pred_check_branch
      %276 = sbr.rel (%p273) target = $region52
    $region51: #{unet_up_forward.1} parent=5 // pred_region
      %s277 = ssub.s32 %s14, 1
      %p278 = scmp.lt.s32.totalorder %s19, 1
      %s279 = scalar_select %p278, %s19, 1
      %s280 = smul.addr %s279, 3
      %s281 = smul.addr %s280, 4
      %s282 = scalar_lea.vmem %s0, %s281
      %p283 = pneg %p40
      %p284 = pneg %p37
      %p285 = scmp.lt.s32.totalorder %s19, 1
      %s286 = scalar_select %p285, %s19, 1
      %s287 = smul.addr %s286, 3
      %s288 = smul.addr %s287, 8
      %s289 = scalar_lea.vmem %s1, %s288
      %p290 = pneg %p66
      %p291 = pneg %p63
      %p292 = pneg %p87
      %p293 = pneg %p84
      %p294 = pneg %p108
      %p295 = pneg %p105
      %p296 = pneg %p129
      %p297 = pneg %p126
      %p298 = pneg %p150
      %p299 = pneg %p147
      %p300 = pneg %p171
      %p301 = pneg %p168
      %p302 = pneg %p192
      %p303 = pneg %p189
      %p304 = pneg %p218
      %p305 = pneg %p215
      %p306 = scmp.lt.s32.totalorder %s19, 1
      %s307 = scalar_select %p306, %s19, 1
      %s308 = smul.addr %s307, 2
      %s309 = smul.addr %s308, 4
      %s310 = scalar_lea.vmem %s8, %s309
      %p311 = scmp.lt.s32.totalorder %s19, 1
      %s312 = scalar_select %p311, %s19, 1
      %s313 = smul.addr %s312, 3
      %s314 = smul.addr %s313, 4
      %s315 = scalar_lea.vmem %s0, %s314
      %p316 = scmp.lt.s32.totalorder %s19, 1
      %s317 = scalar_select %p316, %s19, 1
      %s318 = smul.addr %s317, 3
      %s319 = smul.addr %s318, 8
      %s320 = scalar_lea.vmem %s1, %s319
      %p321 = scmp.lt.s32.totalorder %s19, 1
      %s322 = scalar_select %p321, %s19, 1
      %s323 = smul.addr %s322, 2
      %s324 = smul.addr %s323, 4
      %s325 = scalar_lea.vmem %s8, %s324
      %v326 = vld [vmem:[%s2] sm:$0xf]
      %v327 = vld [vmem:[%s320] sm:$0xff]
      %v328 = vld [vmem:[%s320 + $0x8] sm:$0xff]
      %v329 = vld [vmem:[%s320 + $0x10] sm:$0xff]
      %331 = vrot.lane.b32.xlu0 %v326, 120
      %v332 = vpop.permute.xlu0 %331
      %336 = vrot.lane.b32.xlu0 %v327, 127
      %v337 = vpop.permute.xlu0 %336
      %338 = vrot.lane.b32.xlu0 %v328, 127
      %v339 = vpop.permute.xlu0 %338
      %340 = vrot.lane.b32.xlu0 %v329, 127
      %v341 = vpop.permute.xlu0 %340
      %vm342 = vcmask 1039360
      %v343 = vsel %vm342, %v337, %v339
      %v344 = vsel %vm342, %v339, %v341
      %vm348 = vcmask 64512
      %v349 = vsel %vm348, %v332, 0
      %351 = vmatpush.msra.mxu0 0.0
      %352 = vmatpush.msra.mxu0 0.0
      %353 = vmatpush.msra.mxu0 0.0
      %354 = vmatpush.msra.mxu0 0.0
      %355 = vmatpush.msra.mxu0 0.0
      %356 = vmatpush.msra.mxu0 0.0
      %357 = vmatpush.msra.mxu0 0.0
      %358 = vmatpush.msra.mxu0 0.0
      %359 = vmatpush.msra.mxu0 0.0
      %360 = vmatpush.msra.mxu0 0.0
      %361 = vmatpush.msra.mxu0 0.0
      %362 = vmatpush.msra.mxu0 0.0
      %363 = vmatpush.msra.mxu0 0.0
      %364 = vmatpush.msra.mxu0 0.0
      %365 = vmatpush.msra.mxu0 0.0
      %366 = vmatpush.msra.mxu0 %v343
      %367 = vmatmul.f32.gmra.mxu0 %v349
      %v368 = vpop.f32.mrf.mxu0
      %v369 = vadd.f32 0.0, %v368
      %370 = vdwg.mxu0
      %371 = vmatpush.msra.mxu0 0.0
      %372 = vmatpush.msra.mxu0 0.0
      %373 = vmatpush.msra.mxu0 0.0
      %374 = vmatpush.msra.mxu0 0.0
      %375 = vmatpush.msra.mxu0 0.0
      %376 = vmatpush.msra.mxu0 0.0
      %377 = vmatpush.msra.mxu0 0.0
      %378 = vmatpush.msra.mxu0 0.0
      %379 = vmatpush.msra.mxu0 0.0
      %380 = vmatpush.msra.mxu0 0.0
      %381 = vmatpush.msra.mxu0 0.0
      %382 = vmatpush.msra.mxu0 0.0
      %383 = vmatpush.msra.mxu0 0.0
      %384 = vmatpush.msra.mxu0 0.0
      %385 = vmatpush.msra.mxu0 0.0
      %386 = vmatpush.msra.mxu0 %v344
      %387 = vmatmul.f32.gmra.mxu0 %v349
      %v388 = vpop.f32.mrf.mxu0
      %v389 = vadd.f32 0.0, %v388
      %390 = vdwg.mxu0
      %391 = vmatpush.msra.mxu0 0.0
      %392 = vmatpush.msra.mxu0 0.0
      %393 = vmatpush.msra.mxu0 0.0
      %394 = vmatpush.msra.mxu0 0.0
      %395 = vmatpush.msra.mxu0 0.0
      %396 = vmatpush.msra.mxu0 0.0
      %397 = vmatpush.msra.mxu0 0.0
      %398 = vmatpush.msra.mxu0 0.0
      %399 = vmatpush.msra.mxu0 0.0
      %400 = vmatpush.msra.mxu0 0.0
      %401 = vmatpush.msra.mxu0 0.0
      %402 = vmatpush.msra.mxu0 0.0
      %403 = vmatpush.msra.mxu0 0.0
      %404 = vmatpush.msra.mxu0 0.0
      %405 = vmatpush.msra.mxu0 0.0
      %406 = vmatpush.msra.mxu0 %v341
      %407 = vmatmul.f32.gmra.mxu0 %v349
      %v408 = vpop.f32.mrf.mxu0
      %v409 = vadd.f32 0.0, %v408
      %410 = vdwg.mxu0
      %v411 = vsel %vm348, %v326, 0
      %413 = vmatpush.msra.mxu0 0.0
      %414 = vmatpush.msra.mxu0 0.0
      %415 = vmatpush.msra.mxu0 0.0
      %416 = vmatpush.msra.mxu0 0.0
      %417 = vmatpush.msra.mxu0 0.0
      %418 = vmatpush.msra.mxu0 0.0
      %419 = vmatpush.msra.mxu0 0.0
      %420 = vmatpush.msra.mxu0 0.0
      %421 = vmatpush.msra.mxu0 0.0
      %422 = vmatpush.msra.mxu0 0.0
      %423 = vmatpush.msra.mxu0 0.0
      %424 = vmatpush.msra.mxu0 0.0
      %425 = vmatpush.msra.mxu0 0.0
      %426 = vmatpush.msra.mxu0 0.0
      %427 = vmatpush.msra.mxu0 0.0
      %428 = vmatpush.msra.mxu0 %v327
      %429 = vmatmul.f32.gmra.mxu0 %v411
      %v430 = vpop.f32.mrf.mxu0
      %v431 = vadd.f32 %v369, %v430
      %432 = vdwg.mxu0
      %433 = vmatpush.msra.mxu0 0.0
      %434 = vmatpush.msra.mxu0 0.0
      %435 = vmatpush.msra.mxu0 0.0
      %436 = vmatpush.msra.mxu0 0.0
      %437 = vmatpush.msra.mxu0 0.0
      %438 = vmatpush.msra.mxu0 0.0
      %439 = vmatpush.msra.mxu0 0.0
      %440 = vmatpush.msra.mxu0 0.0
      %441 = vmatpush.msra.mxu0 0.0
      %442 = vmatpush.msra.mxu0 0.0
      %443 = vmatpush.msra.mxu0 0.0
      %444 = vmatpush.msra.mxu0 0.0
      %445 = vmatpush.msra.mxu0 0.0
      %446 = vmatpush.msra.mxu0 0.0
      %447 = vmatpush.msra.mxu0 0.0
      %448 = vmatpush.msra.mxu0 %v328
      %449 = vmatmul.f32.gmra.mxu0 %v411
      %v450 = vpop.f32.mrf.mxu0
      %v451 = vadd.f32 %v389, %v450
      %452 = vdwg.mxu0
      %453 = vmatpush.msra.mxu0 0.0
      %454 = vmatpush.msra.mxu0 0.0
      %455 = vmatpush.msra.mxu0 0.0
      %456 = vmatpush.msra.mxu0 0.0
      %457 = vmatpush.msra.mxu0 0.0
      %458 = vmatpush.msra.mxu0 0.0
      %459 = vmatpush.msra.mxu0 0.0
      %460 = vmatpush.msra.mxu0 0.0
      %461 = vmatpush.msra.mxu0 0.0
      %462 = vmatpush.msra.mxu0 0.0
      %463 = vmatpush.msra.mxu0 0.0
      %464 = vmatpush.msra.mxu0 0.0
      %465 = vmatpush.msra.mxu0 0.0
      %466 = vmatpush.msra.mxu0 0.0
      %467 = vmatpush.msra.mxu0 0.0
      %468 = vmatpush.msra.mxu0 %v329
      %469 = vmatmul.f32.gmra.mxu0 %v411
      %v470 = vpop.f32.mrf.mxu0
      %v471 = vadd.f32 %v409, %v470
      %472 = vdwg.mxu0
      %473 = vrot.lane.b32.xlu0 %v326, 112
      %v474 = vpop.permute.xlu0 %473
      %475 = vrot.lane.b32.xlu0 %v327, 126
      %v476 = vpop.permute.xlu0 %475
      %477 = vrot.lane.b32.xlu0 %v328, 126
      %v478 = vpop.permute.xlu0 %477
      %479 = vrot.lane.b32.xlu0 %v329, 126
      %v480 = vpop.permute.xlu0 %479
      %vm481 = vcmask 1031168
      %v482 = vsel %vm481, %v476, %v478
      %v483 = vsel %vm481, %v478, %v480
      %v487 = vsel %vm348, %v474, 0
      %489 = vmatpush.msra.mxu0 0.0
      %490 = vmatpush.msra.mxu0 0.0
      %491 = vmatpush.msra.mxu0 0.0
      %492 = vmatpush.msra.mxu0 0.0
      %493 = vmatpush.msra.mxu0 0.0
      %494 = vmatpush.msra.mxu0 0.0
      %495 = vmatpush.msra.mxu0 0.0
      %496 = vmatpush.msra.mxu0 0.0
      %497 = vmatpush.msra.mxu0 0.0
      %498 = vmatpush.msra.mxu0 0.0
      %499 = vmatpush.msra.mxu0 0.0
      %500 = vmatpush.msra.mxu0 0.0
      %501 = vmatpush.msra.mxu0 0.0
      %502 = vmatpush.msra.mxu0 0.0
      %503 = vmatpush.msra.mxu0 0.0
      %504 = vmatpush.msra.mxu0 %v482
      %505 = vmatmul.f32.gmra.mxu0 %v487
      %v506 = vpop.f32.mrf.mxu0
      %v507 = vadd.f32 0.0, %v506
      %508 = vdwg.mxu0
      %509 = vmatpush.msra.mxu0 0.0
      %510 = vmatpush.msra.mxu0 0.0
      %511 = vmatpush.msra.mxu0 0.0
      %512 = vmatpush.msra.mxu0 0.0
      %513 = vmatpush.msra.mxu0 0.0
      %514 = vmatpush.msra.mxu0 0.0
      %515 = vmatpush.msra.mxu0 0.0
      %516 = vmatpush.msra.mxu0 0.0
      %517 = vmatpush.msra.mxu0 0.0
      %518 = vmatpush.msra.mxu0 0.0
      %519 = vmatpush.msra.mxu0 0.0
      %520 = vmatpush.msra.mxu0 0.0
      %521 = vmatpush.msra.mxu0 0.0
      %522 = vmatpush.msra.mxu0 0.0
      %523 = vmatpush.msra.mxu0 0.0
      %524 = vmatpush.msra.mxu0 %v483
      %525 = vmatmul.f32.gmra.mxu0 %v487
      %v526 = vpop.f32.mrf.mxu0
      %v527 = vadd.f32 0.0, %v526
      %528 = vdwg.mxu0
      %529 = vmatpush.msra.mxu0 0.0
      %530 = vmatpush.msra.mxu0 0.0
      %531 = vmatpush.msra.mxu0 0.0
      %532 = vmatpush.msra.mxu0 0.0
      %533 = vmatpush.msra.mxu0 0.0
      %534 = vmatpush.msra.mxu0 0.0
      %535 = vmatpush.msra.mxu0 0.0
      %536 = vmatpush.msra.mxu0 0.0
      %537 = vmatpush.msra.mxu0 0.0
      %538 = vmatpush.msra.mxu0 0.0
      %539 = vmatpush.msra.mxu0 0.0
      %540 = vmatpush.msra.mxu0 0.0
      %541 = vmatpush.msra.mxu0 0.0
      %542 = vmatpush.msra.mxu0 0.0
      %543 = vmatpush.msra.mxu0 0.0
      %544 = vmatpush.msra.mxu0 %v480
      %545 = vmatmul.f32.gmra.mxu0 %v487
      %v546 = vpop.f32.mrf.mxu0
      %v547 = vadd.f32 0.0, %v546
      %548 = vdwg.mxu0
      %v549 = vadd.f32 %v431, %v507
      %v550 = vadd.f32 %v451, %v527
      %v551 = vadd.f32 %v471, %v547
      %552 = vrot.lane.b32.xlu0 %v326, 104
      %v553 = vpop.permute.xlu0 %552
      %554 = vrot.lane.b32.xlu0 %v327, 125
      %v555 = vpop.permute.xlu0 %554
      %556 = vrot.lane.b32.xlu0 %v328, 125
      %v557 = vpop.permute.xlu0 %556
      %558 = vrot.lane.b32.xlu0 %v329, 125
      %v559 = vpop.permute.xlu0 %558
      %vm560 = vcmask 1022976
      %v561 = vsel %vm560, %v555, %v557
      %v562 = vsel %vm560, %v557, %v559
      %v566 = vsel %vm348, %v553, 0
      %568 = vmatpush.msra.mxu0 0.0
      %569 = vmatpush.msra.mxu0 0.0
      %570 = vmatpush.msra.mxu0 0.0
      %571 = vmatpush.msra.mxu0 0.0
      %572 = vmatpush.msra.mxu0 0.0
      %573 = vmatpush.msra.mxu0 0.0
      %574 = vmatpush.msra.mxu0 0.0
      %575 = vmatpush.msra.mxu0 0.0
      %576 = vmatpush.msra.mxu0 0.0
      %577 = vmatpush.msra.mxu0 0.0
      %578 = vmatpush.msra.mxu0 0.0
      %579 = vmatpush.msra.mxu0 0.0
      %580 = vmatpush.msra.mxu0 0.0
      %581 = vmatpush.msra.mxu0 0.0
      %582 = vmatpush.msra.mxu0 0.0
      %583 = vmatpush.msra.mxu0 %v561
      %584 = vmatmul.f32.gmra.mxu0 %v566
      %v585 = vpop.f32.mrf.mxu0
      %v586 = vadd.f32 0.0, %v585
      %587 = vdwg.mxu0
      %588 = vmatpush.msra.mxu0 0.0
      %589 = vmatpush.msra.mxu0 0.0
      %590 = vmatpush.msra.mxu0 0.0
      %591 = vmatpush.msra.mxu0 0.0
      %592 = vmatpush.msra.mxu0 0.0
      %593 = vmatpush.msra.mxu0 0.0
      %594 = vmatpush.msra.mxu0 0.0
      %595 = vmatpush.msra.mxu0 0.0
      %596 = vmatpush.msra.mxu0 0.0
      %597 = vmatpush.msra.mxu0 0.0
      %598 = vmatpush.msra.mxu0 0.0
      %599 = vmatpush.msra.mxu0 0.0
      %600 = vmatpush.msra.mxu0 0.0
      %601 = vmatpush.msra.mxu0 0.0
      %602 = vmatpush.msra.mxu0 0.0
      %603 = vmatpush.msra.mxu0 %v562
      %604 = vmatmul.f32.gmra.mxu0 %v566
      %v605 = vpop.f32.mrf.mxu0
      %v606 = vadd.f32 0.0, %v605
      %607 = vdwg.mxu0
      %608 = vmatpush.msra.mxu0 0.0
      %609 = vmatpush.msra.mxu0 0.0
      %610 = vmatpush.msra.mxu0 0.0
      %611 = vmatpush.msra.mxu0 0.0
      %612 = vmatpush.msra.mxu0 0.0
      %613 = vmatpush.msra.mxu0 0.0
      %614 = vmatpush.msra.mxu0 0.0
      %615 = vmatpush.msra.mxu0 0.0
      %616 = vmatpush.msra.mxu0 0.0
      %617 = vmatpush.msra.mxu0 0.0
      %618 = vmatpush.msra.mxu0 0.0
      %619 = vmatpush.msra.mxu0 0.0
      %620 = vmatpush.msra.mxu0 0.0
      %621 = vmatpush.msra.mxu0 0.0
      %622 = vmatpush.msra.mxu0 0.0
      %623 = vmatpush.msra.mxu0 %v559
      %624 = vmatmul.f32.gmra.mxu0 %v566
      %v625 = vpop.f32.mrf.mxu0
      %v626 = vadd.f32 0.0, %v625
      %627 = vdwg.mxu0
      %v628 = vadd.f32 %v549, %v586
      %v629 = vadd.f32 %v550, %v606
      %v630 = vadd.f32 %v551, %v626
      %631 = vrot.lane.b32.xlu0 %v326, 96
      %v632 = vpop.permute.xlu0 %631
      %633 = vrot.lane.b32.xlu0 %v327, 109
      %v634 = vpop.permute.xlu0 %633
      %635 = vrot.lane.b32.xlu0 %v328, 109
      %v636 = vpop.permute.xlu0 %635
      %637 = vrot.lane.b32.xlu0 %v329, 109
      %v638 = vpop.permute.xlu0 %637
      %vm639 = vcmask 891904
      %v640 = vsel %vm639, %v634, %v636
      %v641 = vsel %vm639, %v636, %v638
      %v645 = vsel %vm348, %v632, 0
      %647 = vmatpush.msra.mxu0 0.0
      %648 = vmatpush.msra.mxu0 0.0
      %649 = vmatpush.msra.mxu0 0.0
      %650 = vmatpush.msra.mxu0 0.0
      %651 = vmatpush.msra.mxu0 0.0
      %652 = vmatpush.msra.mxu0 0.0
      %653 = vmatpush.msra.mxu0 0.0
      %654 = vmatpush.msra.mxu0 0.0
      %655 = vmatpush.msra.mxu0 0.0
      %656 = vmatpush.msra.mxu0 0.0
      %657 = vmatpush.msra.mxu0 0.0
      %658 = vmatpush.msra.mxu0 0.0
      %659 = vmatpush.msra.mxu0 0.0
      %660 = vmatpush.msra.mxu0 0.0
      %661 = vmatpush.msra.mxu0 0.0
      %662 = vmatpush.msra.mxu0 %v640
      %663 = vmatmul.f32.gmra.mxu0 %v645
      %v664 = vpop.f32.mrf.mxu0
      %v665 = vadd.f32 0.0, %v664
      %666 = vdwg.mxu0
      %667 = vmatpush.msra.mxu0 0.0
      %668 = vmatpush.msra.mxu0 0.0
      %669 = vmatpush.msra.mxu0 0.0
      %670 = vmatpush.msra.mxu0 0.0
      %671 = vmatpush.msra.mxu0 0.0
      %672 = vmatpush.msra.mxu0 0.0
      %673 = vmatpush.msra.mxu0 0.0
      %674 = vmatpush.msra.mxu0 0.0
      %675 = vmatpush.msra.mxu0 0.0
      %676 = vmatpush.msra.mxu0 0.0
      %677 = vmatpush.msra.mxu0 0.0
      %678 = vmatpush.msra.mxu0 0.0
      %679 = vmatpush.msra.mxu0 0.0
      %680 = vmatpush.msra.mxu0 0.0
      %681 = vmatpush.msra.mxu0 0.0
      %682 = vmatpush.msra.mxu0 %v641
      %683 = vmatmul.f32.gmra.mxu0 %v645
      %v684 = vpop.f32.mrf.mxu0
      %v685 = vadd.f32 0.0, %v684
      %686 = vdwg.mxu0
      %687 = vmatpush.msra.mxu0 0.0
      %688 = vmatpush.msra.mxu0 0.0
      %689 = vmatpush.msra.mxu0 0.0
      %690 = vmatpush.msra.mxu0 0.0
      %691 = vmatpush.msra.mxu0 0.0
      %692 = vmatpush.msra.mxu0 0.0
      %693 = vmatpush.msra.mxu0 0.0
      %694 = vmatpush.msra.mxu0 0.0
      %695 = vmatpush.msra.mxu0 0.0
      %696 = vmatpush.msra.mxu0 0.0
      %697 = vmatpush.msra.mxu0 0.0
      %698 = vmatpush.msra.mxu0 0.0
      %699 = vmatpush.msra.mxu0 0.0
      %700 = vmatpush.msra.mxu0 0.0
      %701 = vmatpush.msra.mxu0 0.0
      %702 = vmatpush.msra.mxu0 %v638
      %703 = vmatmul.f32.gmra.mxu0 %v645
      %v704 = vpop.f32.mrf.mxu0
      %v705 = vadd.f32 0.0, %v704
      %706 = vdwg.mxu0
      %v707 = vadd.f32 %v628, %v665
      %v708 = vadd.f32 %v629, %v685
      %v709 = vadd.f32 %v630, %v705
      %710 = vrot.lane.b32.xlu0 %v326, 88
      %v711 = vpop.permute.xlu0 %710
      %712 = vrot.lane.b32.xlu0 %v327, 108
      %v713 = vpop.permute.xlu0 %712
      %714 = vrot.lane.b32.xlu0 %v328, 108
      %v715 = vpop.permute.xlu0 %714
      %716 = vrot.lane.b32.xlu0 %v329, 108
      %v717 = vpop.permute.xlu0 %716
      %vm718 = vcmask 883712
      %v719 = vsel %vm718, %v713, %v715
      %v720 = vsel %vm718, %v715, %v717
      %v724 = vsel %vm348, %v711, 0
      %726 = vmatpush.msra.mxu0 0.0
      %727 = vmatpush.msra.mxu0 0.0
      %728 = vmatpush.msra.mxu0 0.0
      %729 = vmatpush.msra.mxu0 0.0
      %730 = vmatpush.msra.mxu0 0.0
      %731 = vmatpush.msra.mxu0 0.0
      %732 = vmatpush.msra.mxu0 0.0
      %733 = vmatpush.msra.mxu0 0.0
      %734 = vmatpush.msra.mxu0 0.0
      %735 = vmatpush.msra.mxu0 0.0
      %736 = vmatpush.msra.mxu0 0.0
      %737 = vmatpush.msra.mxu0 0.0
      %738 = vmatpush.msra.mxu0 0.0
      %739 = vmatpush.msra.mxu0 0.0
      %740 = vmatpush.msra.mxu0 0.0
      %741 = vmatpush.msra.mxu0 %v719
      %742 = vmatmul.f32.gmra.mxu0 %v724
      %v743 = vpop.f32.mrf.mxu0
      %v744 = vadd.f32 0.0, %v743
      %745 = vdwg.mxu0
      %746 = vmatpush.msra.mxu0 0.0
      %747 = vmatpush.msra.mxu0 0.0
      %748 = vmatpush.msra.mxu0 0.0
      %749 = vmatpush.msra.mxu0 0.0
      %750 = vmatpush.msra.mxu0 0.0
      %751 = vmatpush.msra.mxu0 0.0
      %752 = vmatpush.msra.mxu0 0.0
      %753 = vmatpush.msra.mxu0 0.0
      %754 = vmatpush.msra.mxu0 0.0
      %755 = vmatpush.msra.mxu0 0.0
      %756 = vmatpush.msra.mxu0 0.0
      %757 = vmatpush.msra.mxu0 0.0
      %758 = vmatpush.msra.mxu0 0.0
      %759 = vmatpush.msra.mxu0 0.0
      %760 = vmatpush.msra.mxu0 0.0
      %761 = vmatpush.msra.mxu0 %v720
      %762 = vmatmul.f32.gmra.mxu0 %v724
      %v763 = vpop.f32.mrf.mxu0
      %v764 = vadd.f32 0.0, %v763
      %765 = vdwg.mxu0
      %766 = vmatpush.msra.mxu0 0.0
      %767 = vmatpush.msra.mxu0 0.0
      %768 = vmatpush.msra.mxu0 0.0
      %769 = vmatpush.msra.mxu0 0.0
      %770 = vmatpush.msra.mxu0 0.0
      %771 = vmatpush.msra.mxu0 0.0
      %772 = vmatpush.msra.mxu0 0.0
      %773 = vmatpush.msra.mxu0 0.0
      %774 = vmatpush.msra.mxu0 0.0
      %775 = vmatpush.msra.mxu0 0.0
      %776 = vmatpush.msra.mxu0 0.0
      %777 = vmatpush.msra.mxu0 0.0
      %778 = vmatpush.msra.mxu0 0.0
      %779 = vmatpush.msra.mxu0 0.0
      %780 = vmatpush.msra.mxu0 0.0
      %781 = vmatpush.msra.mxu0 %v717
      %782 = vmatmul.f32.gmra.mxu0 %v724
      %v783 = vpop.f32.mrf.mxu0
      %v784 = vadd.f32 0.0, %v783
      %785 = vdwg.mxu0
      %v786 = vadd.f32 %v707, %v744
      %v787 = vadd.f32 %v708, %v764
      %v788 = vadd.f32 %v709, %v784
      %789 = vrot.lane.b32.xlu0 %v326, 80
      %v790 = vpop.permute.xlu0 %789
      %791 = vrot.lane.b32.xlu0 %v327, 107
      %v792 = vpop.permute.xlu0 %791
      %793 = vrot.lane.b32.xlu0 %v328, 107
      %v794 = vpop.permute.xlu0 %793
      %795 = vrot.lane.b32.xlu0 %v329, 107
      %v796 = vpop.permute.xlu0 %795
      %vm797 = vcmask 875520
      %v798 = vsel %vm797, %v792, %v794
      %v799 = vsel %vm797, %v794, %v796
      %v803 = vsel %vm348, %v790, 0
      %805 = vmatpush.msra.mxu0 0.0
      %806 = vmatpush.msra.mxu0 0.0
      %807 = vmatpush.msra.mxu0 0.0
      %808 = vmatpush.msra.mxu0 0.0
      %809 = vmatpush.msra.mxu0 0.0
      %810 = vmatpush.msra.mxu0 0.0
      %811 = vmatpush.msra.mxu0 0.0
      %812 = vmatpush.msra.mxu0 0.0
      %813 = vmatpush.msra.mxu0 0.0
      %814 = vmatpush.msra.mxu0 0.0
      %815 = vmatpush.msra.mxu0 0.0
      %816 = vmatpush.msra.mxu0 0.0
      %817 = vmatpush.msra.mxu0 0.0
      %818 = vmatpush.msra.mxu0 0.0
      %819 = vmatpush.msra.mxu0 0.0
      %820 = vmatpush.msra.mxu0 %v798
      %821 = vmatmul.f32.gmra.mxu0 %v803
      %v822 = vpop.f32.mrf.mxu0
      %v823 = vadd.f32 0.0, %v822
      %824 = vdwg.mxu0
      %825 = vmatpush.msra.mxu0 0.0
      %826 = vmatpush.msra.mxu0 0.0
      %827 = vmatpush.msra.mxu0 0.0
      %828 = vmatpush.msra.mxu0 0.0
      %829 = vmatpush.msra.mxu0 0.0
      %830 = vmatpush.msra.mxu0 0.0
      %831 = vmatpush.msra.mxu0 0.0
      %832 = vmatpush.msra.mxu0 0.0
      %833 = vmatpush.msra.mxu0 0.0
      %834 = vmatpush.msra.mxu0 0.0
      %835 = vmatpush.msra.mxu0 0.0
      %836 = vmatpush.msra.mxu0 0.0
      %837 = vmatpush.msra.mxu0 0.0
      %838 = vmatpush.msra.mxu0 0.0
      %839 = vmatpush.msra.mxu0 0.0
      %840 = vmatpush.msra.mxu0 %v799
      %841 = vmatmul.f32.gmra.mxu0 %v803
      %v842 = vpop.f32.mrf.mxu0
      %v843 = vadd.f32 0.0, %v842
      %844 = vdwg.mxu0
      %845 = vmatpush.msra.mxu0 0.0
      %846 = vmatpush.msra.mxu0 0.0
      %847 = vmatpush.msra.mxu0 0.0
      %848 = vmatpush.msra.mxu0 0.0
      %849 = vmatpush.msra.mxu0 0.0
      %850 = vmatpush.msra.mxu0 0.0
      %851 = vmatpush.msra.mxu0 0.0
      %852 = vmatpush.msra.mxu0 0.0
      %853 = vmatpush.msra.mxu0 0.0
      %854 = vmatpush.msra.mxu0 0.0
      %855 = vmatpush.msra.mxu0 0.0
      %856 = vmatpush.msra.mxu0 0.0
      %857 = vmatpush.msra.mxu0 0.0
      %858 = vmatpush.msra.mxu0 0.0
      %859 = vmatpush.msra.mxu0 0.0
      %860 = vmatpush.msra.mxu0 %v796
      %861 = vmatmul.f32.gmra.mxu0 %v803
      %v862 = vpop.f32.mrf.mxu0
      %v863 = vadd.f32 0.0, %v862
      %864 = vdwg.mxu0
      %v865 = vadd.f32 %v786, %v823
      %v866 = vadd.f32 %v787, %v843
      %v867 = vadd.f32 %v788, %v863
      %868 = vrot.lane.b32.xlu0 %v326, 72
      %v869 = vpop.permute.xlu0 %868
      %870 = vrot.lane.b32.xlu0 %v327, 106
      %v871 = vpop.permute.xlu0 %870
      %872 = vrot.lane.b32.xlu0 %v328, 106
      %v873 = vpop.permute.xlu0 %872
      %874 = vrot.lane.b32.xlu0 %v329, 106
      %v875 = vpop.permute.xlu0 %874
      %vm876 = vcmask 867328
      %v877 = vsel %vm876, %v871, %v873
      %v878 = vsel %vm876, %v873, %v875
      %v882 = vsel %vm348, %v869, 0
      %884 = vmatpush.msra.mxu0 0.0
      %885 = vmatpush.msra.mxu0 0.0
      %886 = vmatpush.msra.mxu0 0.0
      %887 = vmatpush.msra.mxu0 0.0
      %888 = vmatpush.msra.mxu0 0.0
      %889 = vmatpush.msra.mxu0 0.0
      %890 = vmatpush.msra.mxu0 0.0
      %891 = vmatpush.msra.mxu0 0.0
      %892 = vmatpush.msra.mxu0 0.0
      %893 = vmatpush.msra.mxu0 0.0
      %894 = vmatpush.msra.mxu0 0.0
      %895 = vmatpush.msra.mxu0 0.0
      %896 = vmatpush.msra.mxu0 0.0
      %897 = vmatpush.msra.mxu0 0.0
      %898 = vmatpush.msra.mxu0 0.0
      %899 = vmatpush.msra.mxu0 %v877
      %900 = vmatmul.f32.gmra.mxu0 %v882
      %v901 = vpop.f32.mrf.mxu0
      %v902 = vadd.f32 0.0, %v901
      %903 = vdwg.mxu0
      %904 = vmatpush.msra.mxu0 0.0
      %905 = vmatpush.msra.mxu0 0.0
      %906 = vmatpush.msra.mxu0 0.0
      %907 = vmatpush.msra.mxu0 0.0
      %908 = vmatpush.msra.mxu0 0.0
      %909 = vmatpush.msra.mxu0 0.0
      %910 = vmatpush.msra.mxu0 0.0
      %911 = vmatpush.msra.mxu0 0.0
      %912 = vmatpush.msra.mxu0 0.0
      %913 = vmatpush.msra.mxu0 0.0
      %914 = vmatpush.msra.mxu0 0.0
      %915 = vmatpush.msra.mxu0 0.0
      %916 = vmatpush.msra.mxu0 0.0
      %917 = vmatpush.msra.mxu0 0.0
      %918 = vmatpush.msra.mxu0 0.0
      %919 = vmatpush.msra.mxu0 %v878
      %920 = vmatmul.f32.gmra.mxu0 %v882
      %v921 = vpop.f32.mrf.mxu0
      %v922 = vadd.f32 0.0, %v921
      %923 = vdwg.mxu0
      %924 = vmatpush.msra.mxu0 0.0
      %925 = vmatpush.msra.mxu0 0.0
      %926 = vmatpush.msra.mxu0 0.0
      %927 = vmatpush.msra.mxu0 0.0
      %928 = vmatpush.msra.mxu0 0.0
      %929 = vmatpush.msra.mxu0 0.0
      %930 = vmatpush.msra.mxu0 0.0
      %931 = vmatpush.msra.mxu0 0.0
      %932 = vmatpush.msra.mxu0 0.0
      %933 = vmatpush.msra.mxu0 0.0
      %934 = vmatpush.msra.mxu0 0.0
      %935 = vmatpush.msra.mxu0 0.0
      %936 = vmatpush.msra.mxu0 0.0
      %937 = vmatpush.msra.mxu0 0.0
      %938 = vmatpush.msra.mxu0 0.0
      %939 = vmatpush.msra.mxu0 %v875
      %940 = vmatmul.f32.gmra.mxu0 %v882
      %v941 = vpop.f32.mrf.mxu0
      %v942 = vadd.f32 0.0, %v941
      %943 = vdwg.mxu0
      %v944 = vadd.f32 %v865, %v902
      %v945 = vadd.f32 %v866, %v922
      %v946 = vadd.f32 %v867, %v942
      %947 = vrot.lane.b32.xlu0 %v326, 64
      %v948 = vpop.permute.xlu0 %947
      %949 = vrot.lane.b32.xlu0 %v327, 90
      %v950 = vpop.permute.xlu0 %949
      %951 = vrot.lane.b32.xlu0 %v328, 90
      %v952 = vpop.permute.xlu0 %951
      %953 = vrot.lane.b32.xlu0 %v329, 90
      %v954 = vpop.permute.xlu0 %953
      %vm955 = vcmask 736256
      %v956 = vsel %vm955, %v950, %v952
      %v957 = vsel %vm955, %v952, %v954
      %v961 = vsel %vm348, %v948, 0
      %963 = vmatpush.msra.mxu0 0.0
      %964 = vmatpush.msra.mxu0 0.0
      %965 = vmatpush.msra.mxu0 0.0
      %966 = vmatpush.msra.mxu0 0.0
      %967 = vmatpush.msra.mxu0 0.0
      %968 = vmatpush.msra.mxu0 0.0
      %969 = vmatpush.msra.mxu0 0.0
      %970 = vmatpush.msra.mxu0 0.0
      %971 = vmatpush.msra.mxu0 0.0
      %972 = vmatpush.msra.mxu0 0.0
      %973 = vmatpush.msra.mxu0 0.0
      %974 = vmatpush.msra.mxu0 0.0
      %975 = vmatpush.msra.mxu0 0.0
      %976 = vmatpush.msra.mxu0 0.0
      %977 = vmatpush.msra.mxu0 0.0
      %978 = vmatpush.msra.mxu0 %v956
      %979 = vmatmul.f32.gmra.mxu0 %v961
      %v980 = vpop.f32.mrf.mxu0
      %v981 = vadd.f32 0.0, %v980
      %982 = vdwg.mxu0
      %983 = vmatpush.msra.mxu0 0.0
      %984 = vmatpush.msra.mxu0 0.0
      %985 = vmatpush.msra.mxu0 0.0
      %986 = vmatpush.msra.mxu0 0.0
      %987 = vmatpush.msra.mxu0 0.0
      %988 = vmatpush.msra.mxu0 0.0
      %989 = vmatpush.msra.mxu0 0.0
      %990 = vmatpush.msra.mxu0 0.0
      %991 = vmatpush.msra.mxu0 0.0
      %992 = vmatpush.msra.mxu0 0.0
      %993 = vmatpush.msra.mxu0 0.0
      %994 = vmatpush.msra.mxu0 0.0
      %995 = vmatpush.msra.mxu0 0.0
      %996 = vmatpush.msra.mxu0 0.0
      %997 = vmatpush.msra.mxu0 0.0
      %998 = vmatpush.msra.mxu0 %v957
      %999 = vmatmul.f32.gmra.mxu0 %v961
      %v1000 = vpop.f32.mrf.mxu0
      %v1001 = vadd.f32 0.0, %v1000
      %1002 = vdwg.mxu0
      %1003 = vmatpush.msra.mxu0 0.0
      %1004 = vmatpush.msra.mxu0 0.0
      %1005 = vmatpush.msra.mxu0 0.0
      %1006 = vmatpush.msra.mxu0 0.0
      %1007 = vmatpush.msra.mxu0 0.0
      %1008 = vmatpush.msra.mxu0 0.0
      %1009 = vmatpush.msra.mxu0 0.0
      %1010 = vmatpush.msra.mxu0 0.0
      %1011 = vmatpush.msra.mxu0 0.0
      %1012 = vmatpush.msra.mxu0 0.0
      %1013 = vmatpush.msra.mxu0 0.0
      %1014 = vmatpush.msra.mxu0 0.0
      %1015 = vmatpush.msra.mxu0 0.0
      %1016 = vmatpush.msra.mxu0 0.0
      %1017 = vmatpush.msra.mxu0 0.0
      %1018 = vmatpush.msra.mxu0 %v954
      %1019 = vmatmul.f32.gmra.mxu0 %v961
      %v1020 = vpop.f32.mrf.mxu0
      %v1021 = vadd.f32 0.0, %v1020
      %1022 = vdwg.mxu0
      %v1023 = vadd.f32 %v944, %v981
      %v1024 = vadd.f32 %v945, %v1001
      %v1025 = vadd.f32 %v946, %v1021
      %1026 = vrot.lane.b32.xlu0 %v326, 56
      %v1027 = vpop.permute.xlu0 %1026
      %1028 = vrot.lane.b32.xlu0 %v327, 89
      %v1029 = vpop.permute.xlu0 %1028
      %1030 = vrot.lane.b32.xlu0 %v328, 89
      %v1031 = vpop.permute.xlu0 %1030
      %1032 = vrot.lane.b32.xlu0 %v329, 89
      %v1033 = vpop.permute.xlu0 %1032
      %vm1034 = vcmask 728064
      %v1035 = vsel %vm1034, %v1029, %v1031
      %v1036 = vsel %vm1034, %v1031, %v1033
      %v1040 = vsel %vm348, %v1027, 0
      %1042 = vmatpush.msra.mxu0 0.0
      %1043 = vmatpush.msra.mxu0 0.0
      %1044 = vmatpush.msra.mxu0 0.0
      %1045 = vmatpush.msra.mxu0 0.0
      %1046 = vmatpush.msra.mxu0 0.0
      %1047 = vmatpush.msra.mxu0 0.0
      %1048 = vmatpush.msra.mxu0 0.0
      %1049 = vmatpush.msra.mxu0 0.0
      %1050 = vmatpush.msra.mxu0 0.0
      %1051 = vmatpush.msra.mxu0 0.0
      %1052 = vmatpush.msra.mxu0 0.0
      %1053 = vmatpush.msra.mxu0 0.0
      %1054 = vmatpush.msra.mxu0 0.0
      %1055 = vmatpush.msra.mxu0 0.0
      %1056 = vmatpush.msra.mxu0 0.0
      %1057 = vmatpush.msra.mxu0 %v1035
      %1058 = vmatmul.f32.gmra.mxu0 %v1040
      %v1059 = vpop.f32.mrf.mxu0
      %v1060 = vadd.f32 0.0, %v1059
      %1061 = vdwg.mxu0
      %1062 = vmatpush.msra.mxu0 0.0
      %1063 = vmatpush.msra.mxu0 0.0
      %1064 = vmatpush.msra.mxu0 0.0
      %1065 = vmatpush.msra.mxu0 0.0
      %1066 = vmatpush.msra.mxu0 0.0
      %1067 = vmatpush.msra.mxu0 0.0
      %1068 = vmatpush.msra.mxu0 0.0
      %1069 = vmatpush.msra.mxu0 0.0
      %1070 = vmatpush.msra.mxu0 0.0
      %1071 = vmatpush.msra.mxu0 0.0
      %1072 = vmatpush.msra.mxu0 0.0
      %1073 = vmatpush.msra.mxu0 0.0
      %1074 = vmatpush.msra.mxu0 0.0
      %1075 = vmatpush.msra.mxu0 0.0
      %1076 = vmatpush.msra.mxu0 0.0
      %1077 = vmatpush.msra.mxu0 %v1036
      %1078 = vmatmul.f32.gmra.mxu0 %v1040
      %v1079 = vpop.f32.mrf.mxu0
      %v1080 = vadd.f32 0.0, %v1079
      %1081 = vdwg.mxu0
      %1082 = vmatpush.msra.mxu0 0.0
      %1083 = vmatpush.msra.mxu0 0.0
      %1084 = vmatpush.msra.mxu0 0.0
      %1085 = vmatpush.msra.mxu0 0.0
      %1086 = vmatpush.msra.mxu0 0.0
      %1087 = vmatpush.msra.mxu0 0.0
      %1088 = vmatpush.msra.mxu0 0.0
      %1089 = vmatpush.msra.mxu0 0.0
      %1090 = vmatpush.msra.mxu0 0.0
      %1091 = vmatpush.msra.mxu0 0.0
      %1092 = vmatpush.msra.mxu0 0.0
      %1093 = vmatpush.msra.mxu0 0.0
      %1094 = vmatpush.msra.mxu0 0.0
      %1095 = vmatpush.msra.mxu0 0.0
      %1096 = vmatpush.msra.mxu0 0.0
      %1097 = vmatpush.msra.mxu0 %v1033
      %1098 = vmatmul.f32.gmra.mxu0 %v1040
      %v1099 = vpop.f32.mrf.mxu0
      %v1100 = vadd.f32 0.0, %v1099
      %1101 = vdwg.mxu0
      %v1102 = vadd.f32 %v1023, %v1060
      %v1103 = vadd.f32 %v1024, %v1080
      %v1104 = vadd.f32 %v1025, %v1100
      %1105 = vrot.lane.b32.xlu0 %v326, 48
      %v1106 = vpop.permute.xlu0 %1105
      %1107 = vrot.lane.b32.xlu0 %v327, 88
      %v1108 = vpop.permute.xlu0 %1107
      %1109 = vrot.lane.b32.xlu0 %v328, 88
      %v1110 = vpop.permute.xlu0 %1109
      %1111 = vrot.lane.b32.xlu0 %v329, 88
      %v1112 = vpop.permute.xlu0 %1111
      %vm1113 = vcmask 719872
      %v1114 = vsel %vm1113, %v1108, %v1110
      %v1115 = vsel %vm1113, %v1110, %v1112
      %v1119 = vsel %vm348, %v1106, 0
      %1121 = vmatpush.msra.mxu0 0.0
      %1122 = vmatpush.msra.mxu0 0.0
      %1123 = vmatpush.msra.mxu0 0.0
      %1124 = vmatpush.msra.mxu0 0.0
      %1125 = vmatpush.msra.mxu0 0.0
      %1126 = vmatpush.msra.mxu0 0.0
      %1127 = vmatpush.msra.mxu0 0.0
      %1128 = vmatpush.msra.mxu0 0.0
      %1129 = vmatpush.msra.mxu0 0.0
      %1130 = vmatpush.msra.mxu0 0.0
      %1131 = vmatpush.msra.mxu0 0.0
      %1132 = vmatpush.msra.mxu0 0.0
      %1133 = vmatpush.msra.mxu0 0.0
      %1134 = vmatpush.msra.mxu0 0.0
      %1135 = vmatpush.msra.mxu0 0.0
      %1136 = vmatpush.msra.mxu0 %v1114
      %1137 = vmatmul.f32.gmra.mxu0 %v1119
      %v1138 = vpop.f32.mrf.mxu0
      %v1139 = vadd.f32 0.0, %v1138
      %1140 = vdwg.mxu0
      %1141 = vmatpush.msra.mxu0 0.0
      %1142 = vmatpush.msra.mxu0 0.0
      %1143 = vmatpush.msra.mxu0 0.0
      %1144 = vmatpush.msra.mxu0 0.0
      %1145 = vmatpush.msra.mxu0 0.0
      %1146 = vmatpush.msra.mxu0 0.0
      %1147 = vmatpush.msra.mxu0 0.0
      %1148 = vmatpush.msra.mxu0 0.0
      %1149 = vmatpush.msra.mxu0 0.0
      %1150 = vmatpush.msra.mxu0 0.0
      %1151 = vmatpush.msra.mxu0 0.0
      %1152 = vmatpush.msra.mxu0 0.0
      %1153 = vmatpush.msra.mxu0 0.0
      %1154 = vmatpush.msra.mxu0 0.0
      %1155 = vmatpush.msra.mxu0 0.0
      %1156 = vmatpush.msra.mxu0 %v1115
      %1157 = vmatmul.f32.gmra.mxu0 %v1119
      %v1158 = vpop.f32.mrf.mxu0
      %v1159 = vadd.f32 0.0, %v1158
      %1160 = vdwg.mxu0
      %1161 = vmatpush.msra.mxu0 0.0
      %1162 = vmatpush.msra.mxu0 0.0
      %1163 = vmatpush.msra.mxu0 0.0
      %1164 = vmatpush.msra.mxu0 0.0
      %1165 = vmatpush.msra.mxu0 0.0
      %1166 = vmatpush.msra.mxu0 0.0
      %1167 = vmatpush.msra.mxu0 0.0
      %1168 = vmatpush.msra.mxu0 0.0
      %1169 = vmatpush.msra.mxu0 0.0
      %1170 = vmatpush.msra.mxu0 0.0
      %1171 = vmatpush.msra.mxu0 0.0
      %1172 = vmatpush.msra.mxu0 0.0
      %1173 = vmatpush.msra.mxu0 0.0
      %1174 = vmatpush.msra.mxu0 0.0
      %1175 = vmatpush.msra.mxu0 0.0
      %1176 = vmatpush.msra.mxu0 %v1112
      %1177 = vmatmul.f32.gmra.mxu0 %v1119
      %v1178 = vpop.f32.mrf.mxu0
      %v1179 = vadd.f32 0.0, %v1178
      %1180 = vdwg.mxu0
      %v1181 = vadd.f32 %v1102, %v1139
      %v1182 = vadd.f32 %v1103, %v1159
      %v1183 = vadd.f32 %v1104, %v1179
      %1184 = vrot.lane.b32.xlu0 %v326, 40
      %v1185 = vpop.permute.xlu0 %1184
      %1186 = vrot.lane.b32.xlu0 %v327, 87
      %v1187 = vpop.permute.xlu0 %1186
      %1188 = vrot.lane.b32.xlu0 %v328, 87
      %v1189 = vpop.permute.xlu0 %1188
      %1190 = vrot.lane.b32.xlu0 %v329, 87
      %v1191 = vpop.permute.xlu0 %1190
      %vm1192 = vcmask 711680
      %v1193 = vsel %vm1192, %v1187, %v1189
      %v1194 = vsel %vm1192, %v1189, %v1191
      %v1198 = vsel %vm348, %v1185, 0
      %1200 = vmatpush.msra.mxu0 0.0
      %1201 = vmatpush.msra.mxu0 0.0
      %1202 = vmatpush.msra.mxu0 0.0
      %1203 = vmatpush.msra.mxu0 0.0
      %1204 = vmatpush.msra.mxu0 0.0
      %1205 = vmatpush.msra.mxu0 0.0
      %1206 = vmatpush.msra.mxu0 0.0
      %1207 = vmatpush.msra.mxu0 0.0
      %1208 = vmatpush.msra.mxu0 0.0
      %1209 = vmatpush.msra.mxu0 0.0
      %1210 = vmatpush.msra.mxu0 0.0
      %1211 = vmatpush.msra.mxu0 0.0
      %1212 = vmatpush.msra.mxu0 0.0
      %1213 = vmatpush.msra.mxu0 0.0
      %1214 = vmatpush.msra.mxu0 0.0
      %1215 = vmatpush.msra.mxu0 %v1193
      %1216 = vmatmul.f32.gmra.mxu0 %v1198
      %v1217 = vpop.f32.mrf.mxu0
      %v1218 = vadd.f32 0.0, %v1217
      %1219 = vdwg.mxu0
      %1220 = vmatpush.msra.mxu0 0.0
      %1221 = vmatpush.msra.mxu0 0.0
      %1222 = vmatpush.msra.mxu0 0.0
      %1223 = vmatpush.msra.mxu0 0.0
      %1224 = vmatpush.msra.mxu0 0.0
      %1225 = vmatpush.msra.mxu0 0.0
      %1226 = vmatpush.msra.mxu0 0.0
      %1227 = vmatpush.msra.mxu0 0.0
      %1228 = vmatpush.msra.mxu0 0.0
      %1229 = vmatpush.msra.mxu0 0.0
      %1230 = vmatpush.msra.mxu0 0.0
      %1231 = vmatpush.msra.mxu0 0.0
      %1232 = vmatpush.msra.mxu0 0.0
      %1233 = vmatpush.msra.mxu0 0.0
      %1234 = vmatpush.msra.mxu0 0.0
      %1235 = vmatpush.msra.mxu0 %v1194
      %1236 = vmatmul.f32.gmra.mxu0 %v1198
      %v1237 = vpop.f32.mrf.mxu0
      %v1238 = vadd.f32 0.0, %v1237
      %1239 = vdwg.mxu0
      %1240 = vmatpush.msra.mxu0 0.0
      %1241 = vmatpush.msra.mxu0 0.0
      %1242 = vmatpush.msra.mxu0 0.0
      %1243 = vmatpush.msra.mxu0 0.0
      %1244 = vmatpush.msra.mxu0 0.0
      %1245 = vmatpush.msra.mxu0 0.0
      %1246 = vmatpush.msra.mxu0 0.0
      %1247 = vmatpush.msra.mxu0 0.0
      %1248 = vmatpush.msra.mxu0 0.0
      %1249 = vmatpush.msra.mxu0 0.0
      %1250 = vmatpush.msra.mxu0 0.0
      %1251 = vmatpush.msra.mxu0 0.0
      %1252 = vmatpush.msra.mxu0 0.0
      %1253 = vmatpush.msra.mxu0 0.0
      %1254 = vmatpush.msra.mxu0 0.0
      %1255 = vmatpush.msra.mxu0 %v1191
      %1256 = vmatmul.f32.gmra.mxu0 %v1198
      %v1257 = vpop.f32.mrf.mxu0
      %v1258 = vadd.f32 0.0, %v1257
      %1259 = vdwg.mxu0
      %v1260 = vadd.f32 %v1181, %v1218
      %v1261 = vadd.f32 %v1182, %v1238
      %v1262 = vadd.f32 %v1183, %v1258
      %1263 = vrot.lane.b32.xlu0 %v326, 32
      %v1264 = vpop.permute.xlu0 %1263
      %1265 = vrot.lane.b32.xlu0 %v327, 71
      %v1266 = vpop.permute.xlu0 %1265
      %1267 = vrot.lane.b32.xlu0 %v328, 71
      %v1268 = vpop.permute.xlu0 %1267
      %1269 = vrot.lane.b32.xlu0 %v329, 71
      %v1270 = vpop.permute.xlu0 %1269
      %vm1271 = vcmask 580608
      %v1272 = vsel %vm1271, %v1266, %v1268
      %v1273 = vsel %vm1271, %v1268, %v1270
      %v1277 = vsel %vm348, %v1264, 0
      %1279 = vmatpush.msra.mxu0 0.0
      %1280 = vmatpush.msra.mxu0 0.0
      %1281 = vmatpush.msra.mxu0 0.0
      %1282 = vmatpush.msra.mxu0 0.0
      %1283 = vmatpush.msra.mxu0 0.0
      %1284 = vmatpush.msra.mxu0 0.0
      %1285 = vmatpush.msra.mxu0 0.0
      %1286 = vmatpush.msra.mxu0 0.0
      %1287 = vmatpush.msra.mxu0 0.0
      %1288 = vmatpush.msra.mxu0 0.0
      %1289 = vmatpush.msra.mxu0 0.0
      %1290 = vmatpush.msra.mxu0 0.0
      %1291 = vmatpush.msra.mxu0 0.0
      %1292 = vmatpush.msra.mxu0 0.0
      %1293 = vmatpush.msra.mxu0 0.0
      %1294 = vmatpush.msra.mxu0 %v1272
      %1295 = vmatmul.f32.gmra.mxu0 %v1277
      %v1296 = vpop.f32.mrf.mxu0
      %v1297 = vadd.f32 0.0, %v1296
      %1298 = vdwg.mxu0
      %1299 = vmatpush.msra.mxu0 0.0
      %1300 = vmatpush.msra.mxu0 0.0
      %1301 = vmatpush.msra.mxu0 0.0
      %1302 = vmatpush.msra.mxu0 0.0
      %1303 = vmatpush.msra.mxu0 0.0
      %1304 = vmatpush.msra.mxu0 0.0
      %1305 = vmatpush.msra.mxu0 0.0
      %1306 = vmatpush.msra.mxu0 0.0
      %1307 = vmatpush.msra.mxu0 0.0
      %1308 = vmatpush.msra.mxu0 0.0
      %1309 = vmatpush.msra.mxu0 0.0
      %1310 = vmatpush.msra.mxu0 0.0
      %1311 = vmatpush.msra.mxu0 0.0
      %1312 = vmatpush.msra.mxu0 0.0
      %1313 = vmatpush.msra.mxu0 0.0
      %1314 = vmatpush.msra.mxu0 %v1273
      %1315 = vmatmul.f32.gmra.mxu0 %v1277
      %v1316 = vpop.f32.mrf.mxu0
      %v1317 = vadd.f32 0.0, %v1316
      %1318 = vdwg.mxu0
      %1319 = vmatpush.msra.mxu0 0.0
      %1320 = vmatpush.msra.mxu0 0.0
      %1321 = vmatpush.msra.mxu0 0.0
      %1322 = vmatpush.msra.mxu0 0.0
      %1323 = vmatpush.msra.mxu0 0.0
      %1324 = vmatpush.msra.mxu0 0.0
      %1325 = vmatpush.msra.mxu0 0.0
      %1326 = vmatpush.msra.mxu0 0.0
      %1327 = vmatpush.msra.mxu0 0.0
      %1328 = vmatpush.msra.mxu0 0.0
      %1329 = vmatpush.msra.mxu0 0.0
      %1330 = vmatpush.msra.mxu0 0.0
      %1331 = vmatpush.msra.mxu0 0.0
      %1332 = vmatpush.msra.mxu0 0.0
      %1333 = vmatpush.msra.mxu0 0.0
      %1334 = vmatpush.msra.mxu0 %v1270
      %1335 = vmatmul.f32.gmra.mxu0 %v1277
      %v1336 = vpop.f32.mrf.mxu0
      %v1337 = vadd.f32 0.0, %v1336
      %1338 = vdwg.mxu0
      %v1339 = vadd.f32 %v1260, %v1297
      %v1340 = vadd.f32 %v1261, %v1317
      %v1341 = vadd.f32 %v1262, %v1337
      %1342 = vrot.lane.b32.xlu0 %v326, 24
      %v1343 = vpop.permute.xlu0 %1342
      %1344 = vrot.lane.b32.xlu0 %v327, 70
      %v1345 = vpop.permute.xlu0 %1344
      %1346 = vrot.lane.b32.xlu0 %v328, 70
      %v1347 = vpop.permute.xlu0 %1346
      %1348 = vrot.lane.b32.xlu0 %v329, 70
      %v1349 = vpop.permute.xlu0 %1348
      %vm1350 = vcmask 572416
      %v1351 = vsel %vm1350, %v1345, %v1347
      %v1352 = vsel %vm1350, %v1347, %v1349
      %v1356 = vsel %vm348, %v1343, 0
      %1358 = vmatpush.msra.mxu0 0.0
      %1359 = vmatpush.msra.mxu0 0.0
      %1360 = vmatpush.msra.mxu0 0.0
      %1361 = vmatpush.msra.mxu0 0.0
      %1362 = vmatpush.msra.mxu0 0.0
      %1363 = vmatpush.msra.mxu0 0.0
      %1364 = vmatpush.msra.mxu0 0.0
      %1365 = vmatpush.msra.mxu0 0.0
      %1366 = vmatpush.msra.mxu0 0.0
      %1367 = vmatpush.msra.mxu0 0.0
      %1368 = vmatpush.msra.mxu0 0.0
      %1369 = vmatpush.msra.mxu0 0.0
      %1370 = vmatpush.msra.mxu0 0.0
      %1371 = vmatpush.msra.mxu0 0.0
      %1372 = vmatpush.msra.mxu0 0.0
      %1373 = vmatpush.msra.mxu0 %v1351
      %1374 = vmatmul.f32.gmra.mxu0 %v1356
      %v1375 = vpop.f32.mrf.mxu0
      %v1376 = vadd.f32 0.0, %v1375
      %1377 = vdwg.mxu0
      %1378 = vmatpush.msra.mxu0 0.0
      %1379 = vmatpush.msra.mxu0 0.0
      %1380 = vmatpush.msra.mxu0 0.0
      %1381 = vmatpush.msra.mxu0 0.0
      %1382 = vmatpush.msra.mxu0 0.0
      %1383 = vmatpush.msra.mxu0 0.0
      %1384 = vmatpush.msra.mxu0 0.0
      %1385 = vmatpush.msra.mxu0 0.0
      %1386 = vmatpush.msra.mxu0 0.0
      %1387 = vmatpush.msra.mxu0 0.0
      %1388 = vmatpush.msra.mxu0 0.0
      %1389 = vmatpush.msra.mxu0 0.0
      %1390 = vmatpush.msra.mxu0 0.0
      %1391 = vmatpush.msra.mxu0 0.0
      %1392 = vmatpush.msra.mxu0 0.0
      %1393 = vmatpush.msra.mxu0 %v1352
      %1394 = vmatmul.f32.gmra.mxu0 %v1356
      %v1395 = vpop.f32.mrf.mxu0
      %v1396 = vadd.f32 0.0, %v1395
      %1397 = vdwg.mxu0
      %1398 = vmatpush.msra.mxu0 0.0
      %1399 = vmatpush.msra.mxu0 0.0
      %1400 = vmatpush.msra.mxu0 0.0
      %1401 = vmatpush.msra.mxu0 0.0
      %1402 = vmatpush.msra.mxu0 0.0
      %1403 = vmatpush.msra.mxu0 0.0
      %1404 = vmatpush.msra.mxu0 0.0
      %1405 = vmatpush.msra.mxu0 0.0
      %1406 = vmatpush.msra.mxu0 0.0
      %1407 = vmatpush.msra.mxu0 0.0
      %1408 = vmatpush.msra.mxu0 0.0
      %1409 = vmatpush.msra.mxu0 0.0
      %1410 = vmatpush.msra.mxu0 0.0
      %1411 = vmatpush.msra.mxu0 0.0
      %1412 = vmatpush.msra.mxu0 0.0
      %1413 = vmatpush.msra.mxu0 %v1349
      %1414 = vmatmul.f32.gmra.mxu0 %v1356
      %v1415 = vpop.f32.mrf.mxu0
      %v1416 = vadd.f32 0.0, %v1415
      %1417 = vdwg.mxu0
      %v1418 = vadd.f32 %v1339, %v1376
      %v1419 = vadd.f32 %v1340, %v1396
      %v1420 = vadd.f32 %v1341, %v1416
      %1421 = vrot.lane.b32.xlu0 %v326, 16
      %v1422 = vpop.permute.xlu0 %1421
      %1423 = vrot.lane.b32.xlu0 %v327, 69
      %v1424 = vpop.permute.xlu0 %1423
      %1425 = vrot.lane.b32.xlu0 %v328, 69
      %v1426 = vpop.permute.xlu0 %1425
      %1427 = vrot.lane.b32.xlu0 %v329, 69
      %v1428 = vpop.permute.xlu0 %1427
      %vm1429 = vcmask 564224
      %v1430 = vsel %vm1429, %v1424, %v1426
      %v1431 = vsel %vm1429, %v1426, %v1428
      %v1435 = vsel %vm348, %v1422, 0
      %1437 = vmatpush.msra.mxu0 0.0
      %1438 = vmatpush.msra.mxu0 0.0
      %1439 = vmatpush.msra.mxu0 0.0
      %1440 = vmatpush.msra.mxu0 0.0
      %1441 = vmatpush.msra.mxu0 0.0
      %1442 = vmatpush.msra.mxu0 0.0
      %1443 = vmatpush.msra.mxu0 0.0
      %1444 = vmatpush.msra.mxu0 0.0
      %1445 = vmatpush.msra.mxu0 0.0
      %1446 = vmatpush.msra.mxu0 0.0
      %1447 = vmatpush.msra.mxu0 0.0
      %1448 = vmatpush.msra.mxu0 0.0
      %1449 = vmatpush.msra.mxu0 0.0
      %1450 = vmatpush.msra.mxu0 0.0
      %1451 = vmatpush.msra.mxu0 0.0
      %1452 = vmatpush.msra.mxu0 %v1430
      %1453 = vmatmul.f32.gmra.mxu0 %v1435
      %v1454 = vpop.f32.mrf.mxu0
      %v1455 = vadd.f32 0.0, %v1454
      %1456 = vdwg.mxu0
      %1457 = vmatpush.msra.mxu0 0.0
      %1458 = vmatpush.msra.mxu0 0.0
      %1459 = vmatpush.msra.mxu0 0.0
      %1460 = vmatpush.msra.mxu0 0.0
      %1461 = vmatpush.msra.mxu0 0.0
      %1462 = vmatpush.msra.mxu0 0.0
      %1463 = vmatpush.msra.mxu0 0.0
      %1464 = vmatpush.msra.mxu0 0.0
      %1465 = vmatpush.msra.mxu0 0.0
      %1466 = vmatpush.msra.mxu0 0.0
      %1467 = vmatpush.msra.mxu0 0.0
      %1468 = vmatpush.msra.mxu0 0.0
      %1469 = vmatpush.msra.mxu0 0.0
      %1470 = vmatpush.msra.mxu0 0.0
      %1471 = vmatpush.msra.mxu0 0.0
      %1472 = vmatpush.msra.mxu0 %v1431
      %1473 = vmatmul.f32.gmra.mxu0 %v1435
      %v1474 = vpop.f32.mrf.mxu0
      %v1475 = vadd.f32 0.0, %v1474
      %1476 = vdwg.mxu0
      %1477 = vmatpush.msra.mxu0 0.0
      %1478 = vmatpush.msra.mxu0 0.0
      %1479 = vmatpush.msra.mxu0 0.0
      %1480 = vmatpush.msra.mxu0 0.0
      %1481 = vmatpush.msra.mxu0 0.0
      %1482 = vmatpush.msra.mxu0 0.0
      %1483 = vmatpush.msra.mxu0 0.0
      %1484 = vmatpush.msra.mxu0 0.0
      %1485 = vmatpush.msra.mxu0 0.0
      %1486 = vmatpush.msra.mxu0 0.0
      %1487 = vmatpush.msra.mxu0 0.0
      %1488 = vmatpush.msra.mxu0 0.0
      %1489 = vmatpush.msra.mxu0 0.0
      %1490 = vmatpush.msra.mxu0 0.0
      %1491 = vmatpush.msra.mxu0 0.0
      %1492 = vmatpush.msra.mxu0 %v1428
      %1493 = vmatmul.f32.gmra.mxu0 %v1435
      %v1494 = vpop.f32.mrf.mxu0
      %v1495 = vadd.f32 0.0, %v1494
      %1496 = vdwg.mxu0
      %v1497 = vadd.f32 %v1418, %v1455
      %v1498 = vadd.f32 %v1419, %v1475
      %v1499 = vadd.f32 %v1420, %v1495
      %1500 = vrot.lane.b32.xlu0 %v326, 8
      %v1501 = vpop.permute.xlu0 %1500
      %1502 = vrot.lane.b32.xlu0 %v327, 68
      %v1503 = vpop.permute.xlu0 %1502
      %1504 = vrot.lane.b32.xlu0 %v328, 68
      %v1505 = vpop.permute.xlu0 %1504
      %1506 = vrot.lane.b32.xlu0 %v329, 68
      %v1507 = vpop.permute.xlu0 %1506
      %vm1508 = vcmask 556032
      %v1509 = vsel %vm1508, %v1503, %v1505
      %v1510 = vsel %vm1508, %v1505, %v1507
      %v1514 = vsel %vm348, %v1501, 0
      %1516 = vmatpush.msra.mxu0 0.0
      %1517 = vmatpush.msra.mxu0 0.0
      %1518 = vmatpush.msra.mxu0 0.0
      %1519 = vmatpush.msra.mxu0 0.0
      %1520 = vmatpush.msra.mxu0 0.0
      %1521 = vmatpush.msra.mxu0 0.0
      %1522 = vmatpush.msra.mxu0 0.0
      %1523 = vmatpush.msra.mxu0 0.0
      %1524 = vmatpush.msra.mxu0 0.0
      %1525 = vmatpush.msra.mxu0 0.0
      %1526 = vmatpush.msra.mxu0 0.0
      %1527 = vmatpush.msra.mxu0 0.0
      %1528 = vmatpush.msra.mxu0 0.0
      %1529 = vmatpush.msra.mxu0 0.0
      %1530 = vmatpush.msra.mxu0 0.0
      %1531 = vmatpush.msra.mxu0 %v1509
      %1532 = vmatmul.f32.gmra.mxu0 %v1514
      %v1533 = vpop.f32.mrf.mxu0
      %v1534 = vadd.f32 0.0, %v1533
      %1535 = vdwg.mxu0
      %1536 = vmatpush.msra.mxu0 0.0
      %1537 = vmatpush.msra.mxu0 0.0
      %1538 = vmatpush.msra.mxu0 0.0
      %1539 = vmatpush.msra.mxu0 0.0
      %1540 = vmatpush.msra.mxu0 0.0
      %1541 = vmatpush.msra.mxu0 0.0
      %1542 = vmatpush.msra.mxu0 0.0
      %1543 = vmatpush.msra.mxu0 0.0
      %1544 = vmatpush.msra.mxu0 0.0
      %1545 = vmatpush.msra.mxu0 0.0
      %1546 = vmatpush.msra.mxu0 0.0
      %1547 = vmatpush.msra.mxu0 0.0
      %1548 = vmatpush.msra.mxu0 0.0
      %1549 = vmatpush.msra.mxu0 0.0
      %1550 = vmatpush.msra.mxu0 0.0
      %1551 = vmatpush.msra.mxu0 %v1510
      %1552 = vmatmul.f32.gmra.mxu0 %v1514
      %v1553 = vpop.f32.mrf.mxu0
      %v1554 = vadd.f32 0.0, %v1553
      %1555 = vdwg.mxu0
      %1556 = vmatpush.msra.mxu0 0.0
      %1557 = vmatpush.msra.mxu0 0.0
      %1558 = vmatpush.msra.mxu0 0.0
      %1559 = vmatpush.msra.mxu0 0.0
      %1560 = vmatpush.msra.mxu0 0.0
      %1561 = vmatpush.msra.mxu0 0.0
      %1562 = vmatpush.msra.mxu0 0.0
      %1563 = vmatpush.msra.mxu0 0.0
      %1564 = vmatpush.msra.mxu0 0.0
      %1565 = vmatpush.msra.mxu0 0.0
      %1566 = vmatpush.msra.mxu0 0.0
      %1567 = vmatpush.msra.mxu0 0.0
      %1568 = vmatpush.msra.mxu0 0.0
      %1569 = vmatpush.msra.mxu0 0.0
      %1570 = vmatpush.msra.mxu0 0.0
      %1571 = vmatpush.msra.mxu0 %v1507
      %1572 = vmatmul.f32.gmra.mxu0 %v1514
      %v1573 = vpop.f32.mrf.mxu0
      %v1574 = vadd.f32 0.0, %v1573
      %1575 = vdwg.mxu0
      %v1576 = vadd.f32 %v1497, %v1534
      %v1577 = vadd.f32 %v1498, %v1554
      %v1578 = vadd.f32 %v1499, %v1574
      %1579 = vst [vmem:[#allocation2] sm:$0xff] 0.0
      %1580 = vst [vmem:[#allocation2 + $0x8] sm:$0xf] 0.0
      %1582 = vrot.lane.b32.xlu0 %v1576, 19
      %v1583 = vpop.permute.xlu0 %1582
      %vm1585 = vcmask 281752
      %1586 = vst.msk [vmem:[#allocation2] sm:$0xf] %vm1585, %v1583
      %1587 = vrot.lane.b32.xlu0 %v1576, 18
      %v1588 = vpop.permute.xlu0 %1587
      %vm1590 = vcmask 429352
      %1591 = vst.msk [vmem:[#allocation2] sm:$0xf] %vm1590, %v1588
      %1592 = vrot.lane.b32.xlu0 %v1576, 17
      %v1593 = vpop.permute.xlu0 %1592
      %vm1595 = vcmask 576952
      %1596 = vst.msk [vmem:[#allocation2] sm:$0xf] %vm1595, %v1593
      %1597 = vrot.lane.b32.xlu0 %v1576, 16
      %v1598 = vpop.permute.xlu0 %1597
      %vm1600 = vcmask 724552
      %1601 = vst.msk [vmem:[#allocation2] sm:$0xf] %vm1600, %v1598
      %1602 = vrot.lane.b32.xlu0 %v1576, 15
      %v1603 = vpop.permute.xlu0 %1602
      %vm1605 = vcmask 872152
      %1606 = vst.msk [vmem:[#allocation2] sm:$0xf] %vm1605, %v1603
      %1607 = vrot.lane.b32.xlu0 %v1576, 14
      %v1608 = vpop.permute.xlu0 %1607
      %vm1610 = vcmask 1019752
      %1611 = vst.msk [vmem:[#allocation2] sm:$0xf] %vm1610, %v1608
      %v1613 = vrot.slane %v1577, 4
      %vm1614 = vcmask 1043456
      %v1615 = vsel %vm1614, %v1576, %v1613
      %1616 = vrot.lane.b32.xlu0 %v1615, 13
      %v1617 = vpop.permute.xlu0 %1616
      %v1618 = vrot.slane %v1617, 4
      %vm1619 = vcmask 105472
      %v1620 = vsel %vm1619, %v1618, %v1617
      %vm1622 = vcmask 1044472
      %vm1623 = vcmask 121860
      %vm1624 = vmor %vm1623, %vm1622
      %1625 = vst.msk [vmem:[#allocation2] sm:$0xff] %vm1624, %v1620
      %1626 = vrot.lane.b32.xlu0 %v1577, 12
      %v1627 = vpop.permute.xlu0 %1626
      %vm1629 = vcmask 265352
      %1630 = vst.msk [vmem:[#allocation2 + $0x4] sm:$0xf] %vm1629, %v1627
      %1631 = vrot.lane.b32.xlu0 %v1577, 11
      %v1632 = vpop.permute.xlu0 %1631
      %vm1634 = vcmask 412952
      %1635 = vst.msk [vmem:[#allocation2 + $0x4] sm:$0xf] %vm1634, %v1632
      %1636 = vrot.lane.b32.xlu0 %v1577, 10
      %v1637 = vpop.permute.xlu0 %1636
      %vm1639 = vcmask 560552
      %1640 = vst.msk [vmem:[#allocation2 + $0x4] sm:$0xf] %vm1639, %v1637
      %1641 = vrot.lane.b32.xlu0 %v1577, 9
      %v1642 = vpop.permute.xlu0 %1641
      %vm1644 = vcmask 708152
      %1645 = vst.msk [vmem:[#allocation2 + $0x4] sm:$0xf] %vm1644, %v1642
      %1646 = vrot.lane.b32.xlu0 %v1577, 8
      %v1647 = vpop.permute.xlu0 %1646
      %vm1649 = vcmask 855752
      %1650 = vst.msk [vmem:[#allocation2 + $0x4] sm:$0xf] %vm1649, %v1647
      %1651 = vrot.lane.b32.xlu0 %v1577, 7
      %v1652 = vpop.permute.xlu0 %1651
      %vm1654 = vcmask 1003352
      %1655 = vst.msk [vmem:[#allocation2 + $0x4] sm:$0xf] %vm1654, %v1652
      %v1657 = vrot.slane %v1578, 4
      %v1658 = vsel %vm1614, %v1577, %v1657
      %1659 = vrot.lane.b32.xlu0 %v1658, 6
      %v1660 = vpop.permute.xlu0 %1659
      %v1661 = vrot.slane %v1660, 4
      %vm1662 = vcmask 48128
      %v1663 = vsel %vm1662, %v1661, %v1660
      %vm1665 = vcmask 1044456
      %vm1666 = vcmask 105476
      %vm1667 = vmor %vm1666, %vm1665
      %1668 = vst.msk [vmem:[#allocation2 + $0x4] sm:$0xff] %vm1667, %v1663
      %1669 = vrot.lane.b32.xlu0 %v1578, 5
      %v1670 = vpop.permute.xlu0 %1669
      %vm1672 = vcmask 248952
      %1673 = vst.msk [vmem:[#allocation2 + $0x8] sm:$0xf] %vm1672, %v1670
      %1674 = vrot.lane.b32.xlu0 %v1578, 4
      %v1675 = vpop.permute.xlu0 %1674
      %vm1677 = vcmask 396552
      %1678 = vst.msk [vmem:[#allocation2 + $0x8] sm:$0xf] %vm1677, %v1675
      %v1679 = vld [vmem:[%s3] sm:$0xf]
      %v1680 = vld [vmem:[%s4] sm:$0xf]
      %v1681 = vld [vmem:[%s315] sm:$0xff]
      %v1682 = vld [vmem:[%s315 + $0x8] sm:$0xf]
      %v1683 = vld [vmem:[#allocation2] sm:$0xff]
      %v1684 = vld [vmem:[#allocation2 + $0x8] sm:$0xf]
      %1687 = vst [vmem:[#allocation1] ss:$2 sm:$0xff] %v1683
      %s1688 = scalar_lea.vmem [#allocation1], 16
      %1689 = vst [vmem:[%s1688] ss:$2 sm:$0xff] %v1684
      %v1690 = vld.sshfl [vmem:[#allocation1] sm:$0xff pattern:$0x75316420]
      %v1691 = vld.sshfl [vmem:[#allocation1 + $0x8] sm:$0xff pattern:$0x75316420]
      %v1692 = vld.sshfl [vmem:[#allocation1 + $0x10] sm:$0xff pattern:$0x75316420]
      %vm1693 = vcmask 31744
      %v1695 = vsel %vm1693, %v1680, 0
      %v1697 = vsel %vm1614, %v1690, 0
      %v1699 = vsel %vm1614, %v1691, 0
      %v1701 = vsel %vm1614, %v1692, 0
      %1703 = vmatpush.msra.mxu0 0.0
      %1704 = vmatpush.msra.mxu0 0.0
      %1705 = vmatpush.msra.mxu0 0.0
      %1706 = vmatpush.msra.mxu0 0.0
      %1707 = vmatpush.msra.mxu0 0.0
      %1708 = vmatpush.msra.mxu0 0.0
      %1709 = vmatpush.msra.mxu0 0.0
      %1710 = vmatpush.msra.mxu0 0.0
      %1711 = vmatpush.msra.mxu0 0.0
      %1712 = vmatpush.msra.mxu0 0.0
      %1713 = vmatpush.msra.mxu0 0.0
      %1714 = vmatpush.msra.mxu0 0.0
      %1715 = vmatpush.msra.mxu0 0.0
      %1716 = vmatpush.msra.mxu0 0.0
      %1717 = vmatpush.msra.mxu0 0.0
      %1718 = vmatpush.msra.mxu0 %v1697
      %1719 = vmatmul.f32.gmra.mxu0 %v1695
      %v1720 = vpop.f32.mrf.mxu0
      %v1721 = vadd.f32 0.0, %v1720
      %1722 = vdwg.mxu0
      %1723 = vmatpush.msra.mxu0 0.0
      %1724 = vmatpush.msra.mxu0 0.0
      %1725 = vmatpush.msra.mxu0 0.0
      %1726 = vmatpush.msra.mxu0 0.0
      %1727 = vmatpush.msra.mxu0 0.0
      %1728 = vmatpush.msra.mxu0 0.0
      %1729 = vmatpush.msra.mxu0 0.0
      %1730 = vmatpush.msra.mxu0 0.0
      %1731 = vmatpush.msra.mxu0 0.0
      %1732 = vmatpush.msra.mxu0 0.0
      %1733 = vmatpush.msra.mxu0 0.0
      %1734 = vmatpush.msra.mxu0 0.0
      %1735 = vmatpush.msra.mxu0 0.0
      %1736 = vmatpush.msra.mxu0 0.0
      %1737 = vmatpush.msra.mxu0 0.0
      %1738 = vmatpush.msra.mxu0 %v1699
      %1739 = vmatmul.f32.gmra.mxu0 %v1695
      %v1740 = vpop.f32.mrf.mxu0
      %v1741 = vadd.f32 0.0, %v1740
      %1742 = vdwg.mxu0
      %1743 = vmatpush.msra.mxu0 0.0
      %1744 = vmatpush.msra.mxu0 0.0
      %1745 = vmatpush.msra.mxu0 0.0
      %1746 = vmatpush.msra.mxu0 0.0
      %1747 = vmatpush.msra.mxu0 0.0
      %1748 = vmatpush.msra.mxu0 0.0
      %1749 = vmatpush.msra.mxu0 0.0
      %1750 = vmatpush.msra.mxu0 0.0
      %1751 = vmatpush.msra.mxu0 0.0
      %1752 = vmatpush.msra.mxu0 0.0
      %1753 = vmatpush.msra.mxu0 0.0
      %1754 = vmatpush.msra.mxu0 0.0
      %1755 = vmatpush.msra.mxu0 0.0
      %1756 = vmatpush.msra.mxu0 0.0
      %1757 = vmatpush.msra.mxu0 0.0
      %1758 = vmatpush.msra.mxu0 %v1701
      %1759 = vmatmul.f32.gmra.mxu0 %v1695
      %v1760 = vpop.f32.mrf.mxu0
      %v1761 = vadd.f32 0.0, %v1760
      %1762 = vdwg.mxu0
      %1765 = vst [vmem:[#allocation1] ss:$2 sm:$0xff] %v1681
      %s1766 = scalar_lea.vmem [#allocation1], 16
      %1767 = vst [vmem:[%s1766] ss:$2 sm:$0xff] %v1682
      %v1768 = vld.sshfl [vmem:[#allocation1] sm:$0xff pattern:$0x75316420]
      %v1769 = vld.sshfl [vmem:[#allocation1 + $0x8] sm:$0xff pattern:$0x75316420]
      %v1770 = vld.sshfl [vmem:[#allocation1 + $0x10] sm:$0xff pattern:$0x75316420]
      %v1772 = vsel %vm1693, %v1679, 0
      %v1774 = vsel %vm1614, %v1768, 0
      %v1776 = vsel %vm1614, %v1769, 0
      %v1778 = vsel %vm1614, %v1770, 0
      %1780 = vmatpush.msra.mxu0 0.0
      %1781 = vmatpush.msra.mxu0 0.0
      %1782 = vmatpush.msra.mxu0 0.0
      %1783 = vmatpush.msra.mxu0 0.0
      %1784 = vmatpush.msra.mxu0 0.0
      %1785 = vmatpush.msra.mxu0 0.0
      %1786 = vmatpush.msra.mxu0 0.0
      %1787 = vmatpush.msra.mxu0 0.0
      %1788 = vmatpush.msra.mxu0 0.0
      %1789 = vmatpush.msra.mxu0 0.0
      %1790 = vmatpush.msra.mxu0 0.0
      %1791 = vmatpush.msra.mxu0 0.0
      %1792 = vmatpush.msra.mxu0 0.0
      %1793 = vmatpush.msra.mxu0 0.0
      %1794 = vmatpush.msra.mxu0 0.0
      %1795 = vmatpush.msra.mxu0 %v1774
      %1796 = vmatmul.f32.gmra.mxu0 %v1772
      %v1797 = vpop.f32.mrf.mxu0
      %v1798 = vadd.f32 %v1721, %v1797
      %1799 = vdwg.mxu0
      %1800 = vmatpush.msra.mxu0 0.0
      %1801 = vmatpush.msra.mxu0 0.0
      %1802 = vmatpush.msra.mxu0 0.0
      %1803 = vmatpush.msra.mxu0 0.0
      %1804 = vmatpush.msra.mxu0 0.0
      %1805 = vmatpush.msra.mxu0 0.0
      %1806 = vmatpush.msra.mxu0 0.0
      %1807 = vmatpush.msra.mxu0 0.0
      %1808 = vmatpush.msra.mxu0 0.0
      %1809 = vmatpush.msra.mxu0 0.0
      %1810 = vmatpush.msra.mxu0 0.0
      %1811 = vmatpush.msra.mxu0 0.0
      %1812 = vmatpush.msra.mxu0 0.0
      %1813 = vmatpush.msra.mxu0 0.0
      %1814 = vmatpush.msra.mxu0 0.0
      %1815 = vmatpush.msra.mxu0 %v1776
      %1816 = vmatmul.f32.gmra.mxu0 %v1772
      %v1817 = vpop.f32.mrf.mxu0
      %v1818 = vadd.f32 %v1741, %v1817
      %1819 = vdwg.mxu0
      %1820 = vmatpush.msra.mxu0 0.0
      %1821 = vmatpush.msra.mxu0 0.0
      %1822 = vmatpush.msra.mxu0 0.0
      %1823 = vmatpush.msra.mxu0 0.0
      %1824 = vmatpush.msra.mxu0 0.0
      %1825 = vmatpush.msra.mxu0 0.0
      %1826 = vmatpush.msra.mxu0 0.0
      %1827 = vmatpush.msra.mxu0 0.0
      %1828 = vmatpush.msra.mxu0 0.0
      %1829 = vmatpush.msra.mxu0 0.0
      %1830 = vmatpush.msra.mxu0 0.0
      %1831 = vmatpush.msra.mxu0 0.0
      %1832 = vmatpush.msra.mxu0 0.0
      %1833 = vmatpush.msra.mxu0 0.0
      %1834 = vmatpush.msra.mxu0 0.0
      %1835 = vmatpush.msra.mxu0 %v1778
      %1836 = vmatmul.f32.gmra.mxu0 %v1772
      %v1837 = vpop.f32.mrf.mxu0
      %v1838 = vadd.f32 %v1761, %v1837
      %1839 = vdwg.mxu0
      %v1840 = vld [vmem:[%s315] sm:$0xff]
      %v1841 = vld [vmem:[%s315 + $0x8] sm:$0xf]
      %1842 = vrot.lane.b32.xlu0 %v1679, 124
      %v1843 = vpop.permute.xlu0 %1842
      %1846 = vst [vmem:[#allocation1] ss:$2 sm:$0xff] %v1840
      %s1847 = scalar_lea.vmem [#allocation1], 16
      %1848 = vst [vmem:[%s1847] ss:$2 sm:$0xff] %v1841
      %v1849 = vld.sshfl [vmem:[#allocation1] sm:$0xff pattern:$0x75316420]
      %v1850 = vld.sshfl [vmem:[#allocation1 + $0x8] sm:$0xff pattern:$0x75316420]
      %v1851 = vld.sshfl [vmem:[#allocation1 + $0x10] sm:$0xff pattern:$0x75316420]
      %1852 = vrot.lane.b32.xlu0 %v1849, 127
      %v1853 = vpop.permute.xlu0 %1852
      %1854 = vrot.lane.b32.xlu0 %v1850, 127
      %v1855 = vpop.permute.xlu0 %1854
      %1856 = vrot.lane.b32.xlu0 %v1851, 127
      %v1857 = vpop.permute.xlu0 %1856
      %v1858 = vsel %vm342, %v1853, %v1855
      %v1859 = vsel %vm342, %v1855, %v1857
      %v1860 = vsel %vm1693, %v1843, 0
      %v1862 = vsel %vm1614, %v1858, 0
      %v1864 = vsel %vm1614, %v1859, 0
      %v1866 = vsel %vm1614, %v1857, 0
      %1868 = vmatpush.msra.mxu0 0.0
      %1869 = vmatpush.msra.mxu0 0.0
      %1870 = vmatpush.msra.mxu0 0.0
      %1871 = vmatpush.msra.mxu0 0.0
      %1872 = vmatpush.msra.mxu0 0.0
      %1873 = vmatpush.msra.mxu0 0.0
      %1874 = vmatpush.msra.mxu0 0.0
      %1875 = vmatpush.msra.mxu0 0.0
      %1876 = vmatpush.msra.mxu0 0.0
      %1877 = vmatpush.msra.mxu0 0.0
      %1878 = vmatpush.msra.mxu0 0.0
      %1879 = vmatpush.msra.mxu0 0.0
      %1880 = vmatpush.msra.mxu0 0.0
      %1881 = vmatpush.msra.mxu0 0.0
      %1882 = vmatpush.msra.mxu0 0.0
      %1883 = vmatpush.msra.mxu0 %v1862
      %1884 = vmatmul.f32.gmra.mxu0 %v1860
      %v1885 = vpop.f32.mrf.mxu0
      %v1886 = vadd.f32 0.0, %v1885
      %1887 = vdwg.mxu0
      %1888 = vmatpush.msra.mxu0 0.0
      %1889 = vmatpush.msra.mxu0 0.0
      %1890 = vmatpush.msra.mxu0 0.0
      %1891 = vmatpush.msra.mxu0 0.0
      %1892 = vmatpush.msra.mxu0 0.0
      %1893 = vmatpush.msra.mxu0 0.0
      %1894 = vmatpush.msra.mxu0 0.0
      %1895 = vmatpush.msra.mxu0 0.0
      %1896 = vmatpush.msra.mxu0 0.0
      %1897 = vmatpush.msra.mxu0 0.0
      %1898 = vmatpush.msra.mxu0 0.0
      %1899 = vmatpush.msra.mxu0 0.0
      %1900 = vmatpush.msra.mxu0 0.0
      %1901 = vmatpush.msra.mxu0 0.0
      %1902 = vmatpush.msra.mxu0 0.0
      %1903 = vmatpush.msra.mxu0 %v1864
      %1904 = vmatmul.f32.gmra.mxu0 %v1860
      %v1905 = vpop.f32.mrf.mxu0
      %v1906 = vadd.f32 0.0, %v1905
      %1907 = vdwg.mxu0
      %1908 = vmatpush.msra.mxu0 0.0
      %1909 = vmatpush.msra.mxu0 0.0
      %1910 = vmatpush.msra.mxu0 0.0
      %1911 = vmatpush.msra.mxu0 0.0
      %1912 = vmatpush.msra.mxu0 0.0
      %1913 = vmatpush.msra.mxu0 0.0
      %1914 = vmatpush.msra.mxu0 0.0
      %1915 = vmatpush.msra.mxu0 0.0
      %1916 = vmatpush.msra.mxu0 0.0
      %1917 = vmatpush.msra.mxu0 0.0
      %1918 = vmatpush.msra.mxu0 0.0
      %1919 = vmatpush.msra.mxu0 0.0
      %1920 = vmatpush.msra.mxu0 0.0
      %1921 = vmatpush.msra.mxu0 0.0
      %1922 = vmatpush.msra.mxu0 0.0
      %1923 = vmatpush.msra.mxu0 %v1866
      %1924 = vmatmul.f32.gmra.mxu0 %v1860
      %v1925 = vpop.f32.mrf.mxu0
      %v1926 = vadd.f32 0.0, %v1925
      %1927 = vdwg.mxu0
      %v1928 = vadd.f32 %v1798, %v1886
      %v1929 = vadd.f32 %v1818, %v1906
      %v1930 = vadd.f32 %v1838, %v1926
      %v1931 = vld [vmem:[#allocation2] sm:$0xff]
      %v1932 = vld [vmem:[#allocation2 + $0x8] sm:$0xf]
      %1933 = vrot.lane.b32.xlu0 %v1680, 124
      %v1934 = vpop.permute.xlu0 %1933
      %1937 = vst [vmem:[#allocation1] ss:$2 sm:$0xff] %v1931
      %s1938 = scalar_lea.vmem [#allocation1], 16
      %1939 = vst [vmem:[%s1938] ss:$2 sm:$0xff] %v1932
      %v1940 = vld.sshfl [vmem:[#allocation1] sm:$0xff pattern:$0x75316420]
      %v1941 = vld.sshfl [vmem:[#allocation1 + $0x8] sm:$0xff pattern:$0x75316420]
      %v1942 = vld.sshfl [vmem:[#allocation1 + $0x10] sm:$0xff pattern:$0x75316420]
      %1943 = vrot.lane.b32.xlu0 %v1940, 127
      %v1944 = vpop.permute.xlu0 %1943
      %1945 = vrot.lane.b32.xlu0 %v1941, 127
      %v1946 = vpop.permute.xlu0 %1945
      %1947 = vrot.lane.b32.xlu0 %v1942, 127
      %v1948 = vpop.permute.xlu0 %1947
      %v1949 = vsel %vm342, %v1944, %v1946
      %v1950 = vsel %vm342, %v1946, %v1948
      %v1951 = vsel %vm1693, %v1934, 0
      %v1953 = vsel %vm1614, %v1949, 0
      %v1955 = vsel %vm1614, %v1950, 0
      %v1957 = vsel %vm1614, %v1948, 0
      %1959 = vmatpush.msra.mxu0 0.0
      %1960 = vmatpush.msra.mxu0 0.0
      %1961 = vmatpush.msra.mxu0 0.0
      %1962 = vmatpush.msra.mxu0 0.0
      %1963 = vmatpush.msra.mxu0 0.0
      %1964 = vmatpush.msra.mxu0 0.0
      %1965 = vmatpush.msra.mxu0 0.0
      %1966 = vmatpush.msra.mxu0 0.0
      %1967 = vmatpush.msra.mxu0 0.0
      %1968 = vmatpush.msra.mxu0 0.0
      %1969 = vmatpush.msra.mxu0 0.0
      %1970 = vmatpush.msra.mxu0 0.0
      %1971 = vmatpush.msra.mxu0 0.0
      %1972 = vmatpush.msra.mxu0 0.0
      %1973 = vmatpush.msra.mxu0 0.0
      %1974 = vmatpush.msra.mxu0 %v1953
      %1975 = vmatmul.f32.gmra.mxu0 %v1951
      %v1976 = vpop.f32.mrf.mxu0
      %v1977 = vadd.f32 0.0, %v1976
      %1978 = vdwg.mxu0
      %1979 = vmatpush.msra.mxu0 0.0
      %1980 = vmatpush.msra.mxu0 0.0
      %1981 = vmatpush.msra.mxu0 0.0
      %1982 = vmatpush.msra.mxu0 0.0
      %1983 = vmatpush.msra.mxu0 0.0
      %1984 = vmatpush.msra.mxu0 0.0
      %1985 = vmatpush.msra.mxu0 0.0
      %1986 = vmatpush.msra.mxu0 0.0
      %1987 = vmatpush.msra.mxu0 0.0
      %1988 = vmatpush.msra.mxu0 0.0
      %1989 = vmatpush.msra.mxu0 0.0
      %1990 = vmatpush.msra.mxu0 0.0
      %1991 = vmatpush.msra.mxu0 0.0
      %1992 = vmatpush.msra.mxu0 0.0
      %1993 = vmatpush.msra.mxu0 0.0
      %1994 = vmatpush.msra.mxu0 %v1955
      %1995 = vmatmul.f32.gmra.mxu0 %v1951
      %v1996 = vpop.f32.mrf.mxu0
      %v1997 = vadd.f32 0.0, %v1996
      %1998 = vdwg.mxu0
      %1999 = vmatpush.msra.mxu0 0.0
      %2000 = vmatpush.msra.mxu0 0.0
      %2001 = vmatpush.msra.mxu0 0.0
      %2002 = vmatpush.msra.mxu0 0.0
      %2003 = vmatpush.msra.mxu0 0.0
      %2004 = vmatpush.msra.mxu0 0.0
      %2005 = vmatpush.msra.mxu0 0.0
      %2006 = vmatpush.msra.mxu0 0.0
      %2007 = vmatpush.msra.mxu0 0.0
      %2008 = vmatpush.msra.mxu0 0.0
      %2009 = vmatpush.msra.mxu0 0.0
      %2010 = vmatpush.msra.mxu0 0.0
      %2011 = vmatpush.msra.mxu0 0.0
      %2012 = vmatpush.msra.mxu0 0.0
      %2013 = vmatpush.msra.mxu0 0.0
      %2014 = vmatpush.msra.mxu0 %v1957
      %2015 = vmatmul.f32.gmra.mxu0 %v1951
      %v2016 = vpop.f32.mrf.mxu0
      %v2017 = vadd.f32 0.0, %v2016
      %2018 = vdwg.mxu0
      %v2019 = vadd.f32 %v1928, %v1977
      %v2020 = vadd.f32 %v1929, %v1997
      %v2021 = vadd.f32 %v1930, %v2017
      %v2022 = vld [vmem:[%s315] sm:$0xff]
      %v2023 = vld [vmem:[%s315 + $0x8] sm:$0xf]
      %2024 = vrot.lane.b32.xlu0 %v1679, 120
      %v2025 = vpop.permute.xlu0 %2024
      %2028 = vst [vmem:[#allocation1] ss:$2 sm:$0xff] %v2022
      %s2029 = scalar_lea.vmem [#allocation1], 16
      %2030 = vst [vmem:[%s2029] ss:$2 sm:$0xff] %v2023
      %v2031 = vld.sshfl [vmem:[#allocation1] sm:$0xff pattern:$0x75316420]
      %v2032 = vld.sshfl [vmem:[#allocation1 + $0x8] sm:$0xff pattern:$0x75316420]
      %v2033 = vld.sshfl [vmem:[#allocation1 + $0x10] sm:$0xff pattern:$0x75316420]
      %2034 = vrot.lane.b32.xlu0 %v2031, 126
      %v2035 = vpop.permute.xlu0 %2034
      %2036 = vrot.lane.b32.xlu0 %v2032, 126
      %v2037 = vpop.permute.xlu0 %2036
      %2038 = vrot.lane.b32.xlu0 %v2033, 126
      %v2039 = vpop.permute.xlu0 %2038
      %v2040 = vsel %vm481, %v2035, %v2037
      %v2041 = vsel %vm481, %v2037, %v2039
      %v2042 = vsel %vm1693, %v2025, 0
      %v2044 = vsel %vm1614, %v2040, 0
      %v2046 = vsel %vm1614, %v2041, 0
      %v2048 = vsel %vm1614, %v2039, 0
      %2050 = vmatpush.msra.mxu0 0.0
      %2051 = vmatpush.msra.mxu0 0.0
      %2052 = vmatpush.msra.mxu0 0.0
      %2053 = vmatpush.msra.mxu0 0.0
      %2054 = vmatpush.msra.mxu0 0.0
      %2055 = vmatpush.msra.mxu0 0.0
      %2056 = vmatpush.msra.mxu0 0.0
      %2057 = vmatpush.msra.mxu0 0.0
      %2058 = vmatpush.msra.mxu0 0.0
      %2059 = vmatpush.msra.mxu0 0.0
      %2060 = vmatpush.msra.mxu0 0.0
      %2061 = vmatpush.msra.mxu0 0.0
      %2062 = vmatpush.msra.mxu0 0.0
      %2063 = vmatpush.msra.mxu0 0.0
      %2064 = vmatpush.msra.mxu0 0.0
      %2065 = vmatpush.msra.mxu0 %v2044
      %2066 = vmatmul.f32.gmra.mxu0 %v2042
      %v2067 = vpop.f32.mrf.mxu0
      %v2068 = vadd.f32 0.0, %v2067
      %2069 = vdwg.mxu0
      %2070 = vmatpush.msra.mxu0 0.0
      %2071 = vmatpush.msra.mxu0 0.0
      %2072 = vmatpush.msra.mxu0 0.0
      %2073 = vmatpush.msra.mxu0 0.0
      %2074 = vmatpush.msra.mxu0 0.0
      %2075 = vmatpush.msra.mxu0 0.0
      %2076 = vmatpush.msra.mxu0 0.0
      %2077 = vmatpush.msra.mxu0 0.0
      %2078 = vmatpush.msra.mxu0 0.0
      %2079 = vmatpush.msra.mxu0 0.0
      %2080 = vmatpush.msra.mxu0 0.0
      %2081 = vmatpush.msra.mxu0 0.0
      %2082 = vmatpush.msra.mxu0 0.0
      %2083 = vmatpush.msra.mxu0 0.0
      %2084 = vmatpush.msra.mxu0 0.0
      %2085 = vmatpush.msra.mxu0 %v2046
      %2086 = vmatmul.f32.gmra.mxu0 %v2042
      %v2087 = vpop.f32.mrf.mxu0
      %v2088 = vadd.f32 0.0, %v2087
      %2089 = vdwg.mxu0
      %2090 = vmatpush.msra.mxu0 0.0
      %2091 = vmatpush.msra.mxu0 0.0
      %2092 = vmatpush.msra.mxu0 0.0
      %2093 = vmatpush.msra.mxu0 0.0
      %2094 = vmatpush.msra.mxu0 0.0
      %2095 = vmatpush.msra.mxu0 0.0
      %2096 = vmatpush.msra.mxu0 0.0
      %2097 = vmatpush.msra.mxu0 0.0
      %2098 = vmatpush.msra.mxu0 0.0
      %2099 = vmatpush.msra.mxu0 0.0
      %2100 = vmatpush.msra.mxu0 0.0
      %2101 = vmatpush.msra.mxu0 0.0
      %2102 = vmatpush.msra.mxu0 0.0
      %2103 = vmatpush.msra.mxu0 0.0
      %2104 = vmatpush.msra.mxu0 0.0
      %2105 = vmatpush.msra.mxu0 %v2048
      %2106 = vmatmul.f32.gmra.mxu0 %v2042
      %v2107 = vpop.f32.mrf.mxu0
      %v2108 = vadd.f32 0.0, %v2107
      %2109 = vdwg.mxu0
      %v2110 = vadd.f32 %v2019, %v2068
      %v2111 = vadd.f32 %v2020, %v2088
      %v2112 = vadd.f32 %v2021, %v2108
      %v2113 = vld [vmem:[#allocation2] sm:$0xff]
      %v2114 = vld [vmem:[#allocation2 + $0x8] sm:$0xf]
      %2115 = vrot.lane.b32.xlu0 %v1680, 120
      %v2116 = vpop.permute.xlu0 %2115
      %2119 = vst [vmem:[#allocation1] ss:$2 sm:$0xff] %v2113
      %s2120 = scalar_lea.vmem [#allocation1], 16
      %2121 = vst [vmem:[%s2120] ss:$2 sm:$0xff] %v2114
      %v2122 = vld.sshfl [vmem:[#allocation1] sm:$0xff pattern:$0x75316420]
      %v2123 = vld.sshfl [vmem:[#allocation1 + $0x8] sm:$0xff pattern:$0x75316420]
      %v2124 = vld.sshfl [vmem:[#allocation1 + $0x10] sm:$0xff pattern:$0x75316420]
      %2125 = vrot.lane.b32.xlu0 %v2122, 126
      %v2126 = vpop.permute.xlu0 %2125
      %2127 = vrot.lane.b32.xlu0 %v2123, 126
      %v2128 = vpop.permute.xlu0 %2127
      %2129 = vrot.lane.b32.xlu0 %v2124, 126
      %v2130 = vpop.permute.xlu0 %2129
      %v2131 = vsel %vm481, %v2126, %v2128
      %v2132 = vsel %vm481, %v2128, %v2130
      %v2133 = vsel %vm1693, %v2116, 0
      %v2135 = vsel %vm1614, %v2131, 0
      %v2137 = vsel %vm1614, %v2132, 0
      %v2139 = vsel %vm1614, %v2130, 0
      %2141 = vmatpush.msra.mxu0 0.0
      %2142 = vmatpush.msra.mxu0 0.0
      %2143 = vmatpush.msra.mxu0 0.0
      %2144 = vmatpush.msra.mxu0 0.0
      %2145 = vmatpush.msra.mxu0 0.0
      %2146 = vmatpush.msra.mxu0 0.0
      %2147 = vmatpush.msra.mxu0 0.0
      %2148 = vmatpush.msra.mxu0 0.0
      %2149 = vmatpush.msra.mxu0 0.0
      %2150 = vmatpush.msra.mxu0 0.0
      %2151 = vmatpush.msra.mxu0 0.0
      %2152 = vmatpush.msra.mxu0 0.0
      %2153 = vmatpush.msra.mxu0 0.0
      %2154 = vmatpush.msra.mxu0 0.0
      %2155 = vmatpush.msra.mxu0 0.0
      %2156 = vmatpush.msra.mxu0 %v2135
      %2157 = vmatmul.f32.gmra.mxu0 %v2133
      %v2158 = vpop.f32.mrf.mxu0
      %v2159 = vadd.f32 0.0, %v2158
      %2160 = vdwg.mxu0
      %2161 = vmatpush.msra.mxu0 0.0
      %2162 = vmatpush.msra.mxu0 0.0
      %2163 = vmatpush.msra.mxu0 0.0
      %2164 = vmatpush.msra.mxu0 0.0
      %2165 = vmatpush.msra.mxu0 0.0
      %2166 = vmatpush.msra.mxu0 0.0
      %2167 = vmatpush.msra.mxu0 0.0
      %2168 = vmatpush.msra.mxu0 0.0
      %2169 = vmatpush.msra.mxu0 0.0
      %2170 = vmatpush.msra.mxu0 0.0
      %2171 = vmatpush.msra.mxu0 0.0
      %2172 = vmatpush.msra.mxu0 0.0
      %2173 = vmatpush.msra.mxu0 0.0
      %2174 = vmatpush.msra.mxu0 0.0
      %2175 = vmatpush.msra.mxu0 0.0
      %2176 = vmatpush.msra.mxu0 %v2137
      %2177 = vmatmul.f32.gmra.mxu0 %v2133
      %v2178 = vpop.f32.mrf.mxu0
      %v2179 = vadd.f32 0.0, %v2178
      %2180 = vdwg.mxu0
      %2181 = vmatpush.msra.mxu0 0.0
      %2182 = vmatpush.msra.mxu0 0.0
      %2183 = vmatpush.msra.mxu0 0.0
      %2184 = vmatpush.msra.mxu0 0.0
      %2185 = vmatpush.msra.mxu0 0.0
      %2186 = vmatpush.msra.mxu0 0.0
      %2187 = vmatpush.msra.mxu0 0.0
      %2188 = vmatpush.msra.mxu0 0.0
      %2189 = vmatpush.msra.mxu0 0.0
      %2190 = vmatpush.msra.mxu0 0.0
      %2191 = vmatpush.msra.mxu0 0.0
      %2192 = vmatpush.msra.mxu0 0.0
      %2193 = vmatpush.msra.mxu0 0.0
      %2194 = vmatpush.msra.mxu0 0.0
      %2195 = vmatpush.msra.mxu0 0.0
      %2196 = vmatpush.msra.mxu0 %v2139
      %2197 = vmatmul.f32.gmra.mxu0 %v2133
      %v2198 = vpop.f32.mrf.mxu0
      %v2199 = vadd.f32 0.0, %v2198
      %2200 = vdwg.mxu0
      %v2201 = vadd.f32 %v2110, %v2159
      %v2202 = vadd.f32 %v2111, %v2179
      %v2203 = vadd.f32 %v2112, %v2199
      %v2204 = vld [vmem:[%s315] sm:$0xff]
      %v2205 = vld [vmem:[%s315 + $0x8] sm:$0xf]
      %2206 = vrot.lane.b32.xlu0 %v1679, 116
      %v2207 = vpop.permute.xlu0 %2206
      %2210 = vst [vmem:[#allocation1] ss:$2 sm:$0xff] %v2204
      %s2211 = scalar_lea.vmem [#allocation1], 16
      %2212 = vst [vmem:[%s2211] ss:$2 sm:$0xff] %v2205
      %v2213 = vld.sshfl [vmem:[#allocation1] sm:$0xff pattern:$0x75316420]
      %v2214 = vld.sshfl [vmem:[#allocation1 + $0x8] sm:$0xff pattern:$0x75316420]
      %v2215 = vld.sshfl [vmem:[#allocation1 + $0x10] sm:$0xff pattern:$0x75316420]
      %2216 = vrot.lane.b32.xlu0 %v2213, 110
      %v2217 = vpop.permute.xlu0 %2216
      %2218 = vrot.lane.b32.xlu0 %v2214, 110
      %v2219 = vpop.permute.xlu0 %2218
      %2220 = vrot.lane.b32.xlu0 %v2215, 110
      %v2221 = vpop.permute.xlu0 %2220
      %vm2222 = vcmask 900096
      %v2223 = vsel %vm2222, %v2217, %v2219
      %v2224 = vsel %vm2222, %v2219, %v2221
      %v2225 = vsel %vm1693, %v2207, 0
      %v2227 = vsel %vm1614, %v2223, 0
      %v2229 = vsel %vm1614, %v2224, 0
      %v2231 = vsel %vm1614, %v2221, 0
      %2233 = vmatpush.msra.mxu0 0.0
      %2234 = vmatpush.msra.mxu0 0.0
      %2235 = vmatpush.msra.mxu0 0.0
      %2236 = vmatpush.msra.mxu0 0.0
      %2237 = vmatpush.msra.mxu0 0.0
      %2238 = vmatpush.msra.mxu0 0.0
      %2239 = vmatpush.msra.mxu0 0.0
      %2240 = vmatpush.msra.mxu0 0.0
      %2241 = vmatpush.msra.mxu0 0.0
      %2242 = vmatpush.msra.mxu0 0.0
      %2243 = vmatpush.msra.mxu0 0.0
      %2244 = vmatpush.msra.mxu0 0.0
      %2245 = vmatpush.msra.mxu0 0.0
      %2246 = vmatpush.msra.mxu0 0.0
      %2247 = vmatpush.msra.mxu0 0.0
      %2248 = vmatpush.msra.mxu0 %v2227
      %2249 = vmatmul.f32.gmra.mxu0 %v2225
      %v2250 = vpop.f32.mrf.mxu0
      %v2251 = vadd.f32 0.0, %v2250
      %2252 = vdwg.mxu0
      %2253 = vmatpush.msra.mxu0 0.0
      %2254 = vmatpush.msra.mxu0 0.0
      %2255 = vmatpush.msra.mxu0 0.0
      %2256 = vmatpush.msra.mxu0 0.0
      %2257 = vmatpush.msra.mxu0 0.0
      %2258 = vmatpush.msra.mxu0 0.0
      %2259 = vmatpush.msra.mxu0 0.0
      %2260 = vmatpush.msra.mxu0 0.0
      %2261 = vmatpush.msra.mxu0 0.0
      %2262 = vmatpush.msra.mxu0 0.0
      %2263 = vmatpush.msra.mxu0 0.0
      %2264 = vmatpush.msra.mxu0 0.0
      %2265 = vmatpush.msra.mxu0 0.0
      %2266 = vmatpush.msra.mxu0 0.0
      %2267 = vmatpush.msra.mxu0 0.0
      %2268 = vmatpush.msra.mxu0 %v2229
      %2269 = vmatmul.f32.gmra.mxu0 %v2225
      %v2270 = vpop.f32.mrf.mxu0
      %v2271 = vadd.f32 0.0, %v2270
      %2272 = vdwg.mxu0
      %2273 = vmatpush.msra.mxu0 0.0
      %2274 = vmatpush.msra.mxu0 0.0
      %2275 = vmatpush.msra.mxu0 0.0
      %2276 = vmatpush.msra.mxu0 0.0
      %2277 = vmatpush.msra.mxu0 0.0
      %2278 = vmatpush.msra.mxu0 0.0
      %2279 = vmatpush.msra.mxu0 0.0
      %2280 = vmatpush.msra.mxu0 0.0
      %2281 = vmatpush.msra.mxu0 0.0
      %2282 = vmatpush.msra.mxu0 0.0
      %2283 = vmatpush.msra.mxu0 0.0
      %2284 = vmatpush.msra.mxu0 0.0
      %2285 = vmatpush.msra.mxu0 0.0
      %2286 = vmatpush.msra.mxu0 0.0
      %2287 = vmatpush.msra.mxu0 0.0
      %2288 = vmatpush.msra.mxu0 %v2231
      %2289 = vmatmul.f32.gmra.mxu0 %v2225
      %v2290 = vpop.f32.mrf.mxu0
      %v2291 = vadd.f32 0.0, %v2290
      %2292 = vdwg.mxu0
      %v2293 = vadd.f32 %v2201, %v2251
      %v2294 = vadd.f32 %v2202, %v2271
      %v2295 = vadd.f32 %v2203, %v2291
      %v2296 = vld [vmem:[#allocation2] sm:$0xff]
      %v2297 = vld [vmem:[#allocation2 + $0x8] sm:$0xf]
      %2298 = vrot.lane.b32.xlu0 %v1680, 116
      %v2299 = vpop.permute.xlu0 %2298
      %2302 = vst [vmem:[#allocation1] ss:$2 sm:$0xff] %v2296
      %s2303 = scalar_lea.vmem [#allocation1], 16
      %2304 = vst [vmem:[%s2303] ss:$2 sm:$0xff] %v2297
      %v2305 = vld.sshfl [vmem:[#allocation1] sm:$0xff pattern:$0x75316420]
      %v2306 = vld.sshfl [vmem:[#allocation1 + $0x8] sm:$0xff pattern:$0x75316420]
      %v2307 = vld.sshfl [vmem:[#allocation1 + $0x10] sm:$0xff pattern:$0x75316420]
      %2308 = vrot.lane.b32.xlu0 %v2305, 110
      %v2309 = vpop.permute.xlu0 %2308
      %2310 = vrot.lane.b32.xlu0 %v2306, 110
      %v2311 = vpop.permute.xlu0 %2310
      %2312 = vrot.lane.b32.xlu0 %v2307, 110
      %v2313 = vpop.permute.xlu0 %2312
      %v2314 = vsel %vm2222, %v2309, %v2311
      %v2315 = vsel %vm2222, %v2311, %v2313
      %v2316 = vsel %vm1693, %v2299, 0
      %v2318 = vsel %vm1614, %v2314, 0
      %v2320 = vsel %vm1614, %v2315, 0
      %v2322 = vsel %vm1614, %v2313, 0
      %2324 = vmatpush.msra.mxu0 0.0
      %2325 = vmatpush.msra.mxu0 0.0
      %2326 = vmatpush.msra.mxu0 0.0
      %2327 = vmatpush.msra.mxu0 0.0
      %2328 = vmatpush.msra.mxu0 0.0
      %2329 = vmatpush.msra.mxu0 0.0
      %2330 = vmatpush.msra.mxu0 0.0
      %2331 = vmatpush.msra.mxu0 0.0
      %2332 = vmatpush.msra.mxu0 0.0
      %2333 = vmatpush.msra.mxu0 0.0
      %2334 = vmatpush.msra.mxu0 0.0
      %2335 = vmatpush.msra.mxu0 0.0
      %2336 = vmatpush.msra.mxu0 0.0
      %2337 = vmatpush.msra.mxu0 0.0
      %2338 = vmatpush.msra.mxu0 0.0
      %2339 = vmatpush.msra.mxu0 %v2318
      %2340 = vmatmul.f32.gmra.mxu0 %v2316
      %v2341 = vpop.f32.mrf.mxu0
      %v2342 = vadd.f32 0.0, %v2341
      %2343 = vdwg.mxu0
      %2344 = vmatpush.msra.mxu0 0.0
      %2345 = vmatpush.msra.mxu0 0.0
      %2346 = vmatpush.msra.mxu0 0.0
      %2347 = vmatpush.msra.mxu0 0.0
      %2348 = vmatpush.msra.mxu0 0.0
      %2349 = vmatpush.msra.mxu0 0.0
      %2350 = vmatpush.msra.mxu0 0.0
      %2351 = vmatpush.msra.mxu0 0.0
      %2352 = vmatpush.msra.mxu0 0.0
      %2353 = vmatpush.msra.mxu0 0.0
      %2354 = vmatpush.msra.mxu0 0.0
      %2355 = vmatpush.msra.mxu0 0.0
      %2356 = vmatpush.msra.mxu0 0.0
      %2357 = vmatpush.msra.mxu0 0.0
      %2358 = vmatpush.msra.mxu0 0.0
      %2359 = vmatpush.msra.mxu0 %v2320
      %2360 = vmatmul.f32.gmra.mxu0 %v2316
      %v2361 = vpop.f32.mrf.mxu0
      %v2362 = vadd.f32 0.0, %v2361
      %2363 = vdwg.mxu0
      %2364 = vmatpush.msra.mxu0 0.0
      %2365 = vmatpush.msra.mxu0 0.0
      %2366 = vmatpush.msra.mxu0 0.0
      %2367 = vmatpush.msra.mxu0 0.0
      %2368 = vmatpush.msra.mxu0 0.0
      %2369 = vmatpush.msra.mxu0 0.0
      %2370 = vmatpush.msra.mxu0 0.0
      %2371 = vmatpush.msra.mxu0 0.0
      %2372 = vmatpush.msra.mxu0 0.0
      %2373 = vmatpush.msra.mxu0 0.0
      %2374 = vmatpush.msra.mxu0 0.0
      %2375 = vmatpush.msra.mxu0 0.0
      %2376 = vmatpush.msra.mxu0 0.0
      %2377 = vmatpush.msra.mxu0 0.0
      %2378 = vmatpush.msra.mxu0 0.0
      %2379 = vmatpush.msra.mxu0 %v2322
      %2380 = vmatmul.f32.gmra.mxu0 %v2316
      %v2381 = vpop.f32.mrf.mxu0
      %v2382 = vadd.f32 0.0, %v2381
      %2383 = vdwg.mxu0
      %v2384 = vadd.f32 %v2293, %v2342
      %v2385 = vadd.f32 %v2294, %v2362
      %v2386 = vadd.f32 %v2295, %v2382
      %v2387 = vld [vmem:[%s315] sm:$0xff]
      %v2388 = vld [vmem:[%s315 + $0x8] sm:$0xf]
      %2389 = vrot.lane.b32.xlu0 %v1679, 112
      %v2390 = vpop.permute.xlu0 %2389
      %2393 = vst [vmem:[#allocation1] ss:$2 sm:$0xff] %v2387
      %s2394 = scalar_lea.vmem [#allocation1], 16
      %2395 = vst [vmem:[%s2394] ss:$2 sm:$0xff] %v2388
      %v2396 = vld.sshfl [vmem:[#allocation1] sm:$0xff pattern:$0x75316420]
      %v2397 = vld.sshfl [vmem:[#allocation1 + $0x8] sm:$0xff pattern:$0x75316420]
      %v2398 = vld.sshfl [vmem:[#allocation1 + $0x10] sm:$0xff pattern:$0x75316420]
      %2399 = vrot.lane.b32.xlu0 %v2396, 109
      %v2400 = vpop.permute.xlu0 %2399
      %2401 = vrot.lane.b32.xlu0 %v2397, 109
      %v2402 = vpop.permute.xlu0 %2401
      %2403 = vrot.lane.b32.xlu0 %v2398, 109
      %v2404 = vpop.permute.xlu0 %2403
      %v2405 = vsel %vm639, %v2400, %v2402
      %v2406 = vsel %vm639, %v2402, %v2404
      %v2407 = vsel %vm1693, %v2390, 0
      %v2409 = vsel %vm1614, %v2405, 0
      %v2411 = vsel %vm1614, %v2406, 0
      %v2413 = vsel %vm1614, %v2404, 0
      %2415 = vmatpush.msra.mxu0 0.0
      %2416 = vmatpush.msra.mxu0 0.0
      %2417 = vmatpush.msra.mxu0 0.0
      %2418 = vmatpush.msra.mxu0 0.0
      %2419 = vmatpush.msra.mxu0 0.0
      %2420 = vmatpush.msra.mxu0 0.0
      %2421 = vmatpush.msra.mxu0 0.0
      %2422 = vmatpush.msra.mxu0 0.0
      %2423 = vmatpush.msra.mxu0 0.0
      %2424 = vmatpush.msra.mxu0 0.0
      %2425 = vmatpush.msra.mxu0 0.0
      %2426 = vmatpush.msra.mxu0 0.0
      %2427 = vmatpush.msra.mxu0 0.0
      %2428 = vmatpush.msra.mxu0 0.0
      %2429 = vmatpush.msra.mxu0 0.0
      %2430 = vmatpush.msra.mxu0 %v2409
      %2431 = vmatmul.f32.gmra.mxu0 %v2407
      %v2432 = vpop.f32.mrf.mxu0
      %v2433 = vadd.f32 0.0, %v2432
      %2434 = vdwg.mxu0
      %2435 = vmatpush.msra.mxu0 0.0
      %2436 = vmatpush.msra.mxu0 0.0
      %2437 = vmatpush.msra.mxu0 0.0
      %2438 = vmatpush.msra.mxu0 0.0
      %2439 = vmatpush.msra.mxu0 0.0
      %2440 = vmatpush.msra.mxu0 0.0
      %2441 = vmatpush.msra.mxu0 0.0
      %2442 = vmatpush.msra.mxu0 0.0
      %2443 = vmatpush.msra.mxu0 0.0
      %2444 = vmatpush.msra.mxu0 0.0
      %2445 = vmatpush.msra.mxu0 0.0
      %2446 = vmatpush.msra.mxu0 0.0
      %2447 = vmatpush.msra.mxu0 0.0
      %2448 = vmatpush.msra.mxu0 0.0
      %2449 = vmatpush.msra.mxu0 0.0
      %2450 = vmatpush.msra.mxu0 %v2411
      %2451 = vmatmul.f32.gmra.mxu0 %v2407
      %v2452 = vpop.f32.mrf.mxu0
      %v2453 = vadd.f32 0.0, %v2452
      %2454 = vdwg.mxu0
      %2455 = vmatpush.msra.mxu0 0.0
      %2456 = vmatpush.msra.mxu0 0.0
      %2457 = vmatpush.msra.mxu0 0.0
      %2458 = vmatpush.msra.mxu0 0.0
      %2459 = vmatpush.msra.mxu0 0.0
      %2460 = vmatpush.msra.mxu0 0.0
      %2461 = vmatpush.msra.mxu0 0.0
      %2462 = vmatpush.msra.mxu0 0.0
      %2463 = vmatpush.msra.mxu0 0.0
      %2464 = vmatpush.msra.mxu0 0.0
      %2465 = vmatpush.msra.mxu0 0.0
      %2466 = vmatpush.msra.mxu0 0.0
      %2467 = vmatpush.msra.mxu0 0.0
      %2468 = vmatpush.msra.mxu0 0.0
      %2469 = vmatpush.msra.mxu0 0.0
      %2470 = vmatpush.msra.mxu0 %v2413
      %2471 = vmatmul.f32.gmra.mxu0 %v2407
      %v2472 = vpop.f32.mrf.mxu0
      %v2473 = vadd.f32 0.0, %v2472
      %2474 = vdwg.mxu0
      %v2475 = vadd.f32 %v2384, %v2433
      %v2476 = vadd.f32 %v2385, %v2453
      %v2477 = vadd.f32 %v2386, %v2473
      %v2478 = vld [vmem:[#allocation2] sm:$0xff]
      %v2479 = vld [vmem:[#allocation2 + $0x8] sm:$0xf]
      %2480 = vrot.lane.b32.xlu0 %v1680, 112
      %v2481 = vpop.permute.xlu0 %2480
      %2484 = vst [vmem:[#allocation1] ss:$2 sm:$0xff] %v2478
      %s2485 = scalar_lea.vmem [#allocation1], 16
      %2486 = vst [vmem:[%s2485] ss:$2 sm:$0xff] %v2479
      %v2487 = vld.sshfl [vmem:[#allocation1] sm:$0xff pattern:$0x75316420]
      %v2488 = vld.sshfl [vmem:[#allocation1 + $0x8] sm:$0xff pattern:$0x75316420]
      %v2489 = vld.sshfl [vmem:[#allocation1 + $0x10] sm:$0xff pattern:$0x75316420]
      %2490 = vrot.lane.b32.xlu0 %v2487, 109
      %v2491 = vpop.permute.xlu0 %2490
      %2492 = vrot.lane.b32.xlu0 %v2488, 109
      %v2493 = vpop.permute.xlu0 %2492
      %2494 = vrot.lane.b32.xlu0 %v2489, 109
      %v2495 = vpop.permute.xlu0 %2494
      %v2496 = vsel %vm639, %v2491, %v2493
      %v2497 = vsel %vm639, %v2493, %v2495
      %v2498 = vsel %vm1693, %v2481, 0
      %v2500 = vsel %vm1614, %v2496, 0
      %v2502 = vsel %vm1614, %v2497, 0
      %v2504 = vsel %vm1614, %v2495, 0
      %2506 = vmatpush.msra.mxu0 0.0
      %2507 = vmatpush.msra.mxu0 0.0
      %2508 = vmatpush.msra.mxu0 0.0
      %2509 = vmatpush.msra.mxu0 0.0
      %2510 = vmatpush.msra.mxu0 0.0
      %2511 = vmatpush.msra.mxu0 0.0
      %2512 = vmatpush.msra.mxu0 0.0
      %2513 = vmatpush.msra.mxu0 0.0
      %2514 = vmatpush.msra.mxu0 0.0
      %2515 = vmatpush.msra.mxu0 0.0
      %2516 = vmatpush.msra.mxu0 0.0
      %2517 = vmatpush.msra.mxu0 0.0
      %2518 = vmatpush.msra.mxu0 0.0
      %2519 = vmatpush.msra.mxu0 0.0
      %2520 = vmatpush.msra.mxu0 0.0
      %2521 = vmatpush.msra.mxu0 %v2500
      %2522 = vmatmul.f32.gmra.mxu0 %v2498
      %v2523 = vpop.f32.mrf.mxu0
      %v2524 = vadd.f32 0.0, %v2523
      %2525 = vdwg.mxu0
      %2526 = vmatpush.msra.mxu0 0.0
      %2527 = vmatpush.msra.mxu0 0.0
      %2528 = vmatpush.msra.mxu0 0.0
      %2529 = vmatpush.msra.mxu0 0.0
      %2530 = vmatpush.msra.mxu0 0.0
      %2531 = vmatpush.msra.mxu0 0.0
      %2532 = vmatpush.msra.mxu0 0.0
      %2533 = vmatpush.msra.mxu0 0.0
      %2534 = vmatpush.msra.mxu0 0.0
      %2535 = vmatpush.msra.mxu0 0.0
      %2536 = vmatpush.msra.mxu0 0.0
      %2537 = vmatpush.msra.mxu0 0.0
      %2538 = vmatpush.msra.mxu0 0.0
      %2539 = vmatpush.msra.mxu0 0.0
      %2540 = vmatpush.msra.mxu0 0.0
      %2541 = vmatpush.msra.mxu0 %v2502
      %2542 = vmatmul.f32.gmra.mxu0 %v2498
      %v2543 = vpop.f32.mrf.mxu0
      %v2544 = vadd.f32 0.0, %v2543
      %2545 = vdwg.mxu0
      %2546 = vmatpush.msra.mxu0 0.0
      %2547 = vmatpush.msra.mxu0 0.0
      %2548 = vmatpush.msra.mxu0 0.0
      %2549 = vmatpush.msra.mxu0 0.0
      %2550 = vmatpush.msra.mxu0 0.0
      %2551 = vmatpush.msra.mxu0 0.0
      %2552 = vmatpush.msra.mxu0 0.0
      %2553 = vmatpush.msra.mxu0 0.0
      %2554 = vmatpush.msra.mxu0 0.0
      %2555 = vmatpush.msra.mxu0 0.0
      %2556 = vmatpush.msra.mxu0 0.0
      %2557 = vmatpush.msra.mxu0 0.0
      %2558 = vmatpush.msra.mxu0 0.0
      %2559 = vmatpush.msra.mxu0 0.0
      %2560 = vmatpush.msra.mxu0 0.0
      %2561 = vmatpush.msra.mxu0 %v2504
      %2562 = vmatmul.f32.gmra.mxu0 %v2498
      %v2563 = vpop.f32.mrf.mxu0
      %v2564 = vadd.f32 0.0, %v2563
      %2565 = vdwg.mxu0
      %v2566 = vadd.f32 %v2475, %v2524
      %v2567 = vadd.f32 %v2476, %v2544
      %v2568 = vadd.f32 %v2477, %v2564
      %v2569 = vld [vmem:[%s315] sm:$0xff]
      %v2570 = vld [vmem:[%s315 + $0x8] sm:$0xf]
      %2571 = vrot.lane.b32.xlu0 %v1679, 108
      %v2572 = vpop.permute.xlu0 %2571
      %2575 = vst [vmem:[#allocation1] ss:$2 sm:$0xff] %v2569
      %s2576 = scalar_lea.vmem [#allocation1], 16
      %2577 = vst [vmem:[%s2576] ss:$2 sm:$0xff] %v2570
      %v2578 = vld.sshfl [vmem:[#allocation1] sm:$0xff pattern:$0x75316420]
      %v2579 = vld.sshfl [vmem:[#allocation1 + $0x8] sm:$0xff pattern:$0x75316420]
      %v2580 = vld.sshfl [vmem:[#allocation1 + $0x10] sm:$0xff pattern:$0x75316420]
      %2581 = vrot.lane.b32.xlu0 %v2578, 108
      %v2582 = vpop.permute.xlu0 %2581
      %2583 = vrot.lane.b32.xlu0 %v2579, 108
      %v2584 = vpop.permute.xlu0 %2583
      %2585 = vrot.lane.b32.xlu0 %v2580, 108
      %v2586 = vpop.permute.xlu0 %2585
      %v2587 = vsel %vm718, %v2582, %v2584
      %v2588 = vsel %vm718, %v2584, %v2586
      %v2589 = vsel %vm1693, %v2572, 0
      %v2591 = vsel %vm1614, %v2587, 0
      %v2593 = vsel %vm1614, %v2588, 0
      %v2595 = vsel %vm1614, %v2586, 0
      %2597 = vmatpush.msra.mxu0 0.0
      %2598 = vmatpush.msra.mxu0 0.0
      %2599 = vmatpush.msra.mxu0 0.0
      %2600 = vmatpush.msra.mxu0 0.0
      %2601 = vmatpush.msra.mxu0 0.0
      %2602 = vmatpush.msra.mxu0 0.0
      %2603 = vmatpush.msra.mxu0 0.0
      %2604 = vmatpush.msra.mxu0 0.0
      %2605 = vmatpush.msra.mxu0 0.0
      %2606 = vmatpush.msra.mxu0 0.0
      %2607 = vmatpush.msra.mxu0 0.0
      %2608 = vmatpush.msra.mxu0 0.0
      %2609 = vmatpush.msra.mxu0 0.0
      %2610 = vmatpush.msra.mxu0 0.0
      %2611 = vmatpush.msra.mxu0 0.0
      %2612 = vmatpush.msra.mxu0 %v2591
      %2613 = vmatmul.f32.gmra.mxu0 %v2589
      %v2614 = vpop.f32.mrf.mxu0
      %v2615 = vadd.f32 0.0, %v2614
      %2616 = vdwg.mxu0
      %2617 = vmatpush.msra.mxu0 0.0
      %2618 = vmatpush.msra.mxu0 0.0
      %2619 = vmatpush.msra.mxu0 0.0
      %2620 = vmatpush.msra.mxu0 0.0
      %2621 = vmatpush.msra.mxu0 0.0
      %2622 = vmatpush.msra.mxu0 0.0
      %2623 = vmatpush.msra.mxu0 0.0
      %2624 = vmatpush.msra.mxu0 0.0
      %2625 = vmatpush.msra.mxu0 0.0
      %2626 = vmatpush.msra.mxu0 0.0
      %2627 = vmatpush.msra.mxu0 0.0
      %2628 = vmatpush.msra.mxu0 0.0
      %2629 = vmatpush.msra.mxu0 0.0
      %2630 = vmatpush.msra.mxu0 0.0
      %2631 = vmatpush.msra.mxu0 0.0
      %2632 = vmatpush.msra.mxu0 %v2593
      %2633 = vmatmul.f32.gmra.mxu0 %v2589
      %v2634 = vpop.f32.mrf.mxu0
      %v2635 = vadd.f32 0.0, %v2634
      %2636 = vdwg.mxu0
      %2637 = vmatpush.msra.mxu0 0.0
      %2638 = vmatpush.msra.mxu0 0.0
      %2639 = vmatpush.msra.mxu0 0.0
      %2640 = vmatpush.msra.mxu0 0.0
      %2641 = vmatpush.msra.mxu0 0.0
      %2642 = vmatpush.msra.mxu0 0.0
      %2643 = vmatpush.msra.mxu0 0.0
      %2644 = vmatpush.msra.mxu0 0.0
      %2645 = vmatpush.msra.mxu0 0.0
      %2646 = vmatpush.msra.mxu0 0.0
      %2647 = vmatpush.msra.mxu0 0.0
      %2648 = vmatpush.msra.mxu0 0.0
      %2649 = vmatpush.msra.mxu0 0.0
      %2650 = vmatpush.msra.mxu0 0.0
      %2651 = vmatpush.msra.mxu0 0.0
      %2652 = vmatpush.msra.mxu0 %v2595
      %2653 = vmatmul.f32.gmra.mxu0 %v2589
      %v2654 = vpop.f32.mrf.mxu0
      %v2655 = vadd.f32 0.0, %v2654
      %2656 = vdwg.mxu0
      %v2657 = vadd.f32 %v2566, %v2615
      %v2658 = vadd.f32 %v2567, %v2635
      %v2659 = vadd.f32 %v2568, %v2655
      %v2660 = vld [vmem:[#allocation2] sm:$0xff]
      %v2661 = vld [vmem:[#allocation2 + $0x8] sm:$0xf]
      %2662 = vrot.lane.b32.xlu0 %v1680, 108
      %v2663 = vpop.permute.xlu0 %2662
      %2666 = vst [vmem:[#allocation1] ss:$2 sm:$0xff] %v2660
      %s2667 = scalar_lea.vmem [#allocation1], 16
      %2668 = vst [vmem:[%s2667] ss:$2 sm:$0xff] %v2661
      %v2669 = vld.sshfl [vmem:[#allocation1] sm:$0xff pattern:$0x75316420]
      %v2670 = vld.sshfl [vmem:[#allocation1 + $0x8] sm:$0xff pattern:$0x75316420]
      %v2671 = vld.sshfl [vmem:[#allocation1 + $0x10] sm:$0xff pattern:$0x75316420]
      %2672 = vrot.lane.b32.xlu0 %v2669, 108
      %v2673 = vpop.permute.xlu0 %2672
      %2674 = vrot.lane.b32.xlu0 %v2670, 108
      %v2675 = vpop.permute.xlu0 %2674
      %2676 = vrot.lane.b32.xlu0 %v2671, 108
      %v2677 = vpop.permute.xlu0 %2676
      %v2678 = vsel %vm718, %v2673, %v2675
      %v2679 = vsel %vm718, %v2675, %v2677
      %v2680 = vsel %vm1693, %v2663, 0
      %v2682 = vsel %vm1614, %v2678, 0
      %v2684 = vsel %vm1614, %v2679, 0
      %v2686 = vsel %vm1614, %v2677, 0
      %2688 = vmatpush.msra.mxu0 0.0
      %2689 = vmatpush.msra.mxu0 0.0
      %2690 = vmatpush.msra.mxu0 0.0
      %2691 = vmatpush.msra.mxu0 0.0
      %2692 = vmatpush.msra.mxu0 0.0
      %2693 = vmatpush.msra.mxu0 0.0
      %2694 = vmatpush.msra.mxu0 0.0
      %2695 = vmatpush.msra.mxu0 0.0
      %2696 = vmatpush.msra.mxu0 0.0
      %2697 = vmatpush.msra.mxu0 0.0
      %2698 = vmatpush.msra.mxu0 0.0
      %2699 = vmatpush.msra.mxu0 0.0
      %2700 = vmatpush.msra.mxu0 0.0
      %2701 = vmatpush.msra.mxu0 0.0
      %2702 = vmatpush.msra.mxu0 0.0
      %2703 = vmatpush.msra.mxu0 %v2682
      %2704 = vmatmul.f32.gmra.mxu0 %v2680
      %v2705 = vpop.f32.mrf.mxu0
      %v2706 = vadd.f32 0.0, %v2705
      %2707 = vdwg.mxu0
      %2708 = vmatpush.msra.mxu0 0.0
      %2709 = vmatpush.msra.mxu0 0.0
      %2710 = vmatpush.msra.mxu0 0.0
      %2711 = vmatpush.msra.mxu0 0.0
      %2712 = vmatpush.msra.mxu0 0.0
      %2713 = vmatpush.msra.mxu0 0.0
      %2714 = vmatpush.msra.mxu0 0.0
      %2715 = vmatpush.msra.mxu0 0.0
      %2716 = vmatpush.msra.mxu0 0.0
      %2717 = vmatpush.msra.mxu0 0.0
      %2718 = vmatpush.msra.mxu0 0.0
      %2719 = vmatpush.msra.mxu0 0.0
      %2720 = vmatpush.msra.mxu0 0.0
      %2721 = vmatpush.msra.mxu0 0.0
      %2722 = vmatpush.msra.mxu0 0.0
      %2723 = vmatpush.msra.mxu0 %v2684
      %2724 = vmatmul.f32.gmra.mxu0 %v2680
      %v2725 = vpop.f32.mrf.mxu0
      %v2726 = vadd.f32 0.0, %v2725
      %2727 = vdwg.mxu0
      %2728 = vmatpush.msra.mxu0 0.0
      %2729 = vmatpush.msra.mxu0 0.0
      %2730 = vmatpush.msra.mxu0 0.0
      %2731 = vmatpush.msra.mxu0 0.0
      %2732 = vmatpush.msra.mxu0 0.0
      %2733 = vmatpush.msra.mxu0 0.0
      %2734 = vmatpush.msra.mxu0 0.0
      %2735 = vmatpush.msra.mxu0 0.0
      %2736 = vmatpush.msra.mxu0 0.0
      %2737 = vmatpush.msra.mxu0 0.0
      %2738 = vmatpush.msra.mxu0 0.0
      %2739 = vmatpush.msra.mxu0 0.0
      %2740 = vmatpush.msra.mxu0 0.0
      %2741 = vmatpush.msra.mxu0 0.0
      %2742 = vmatpush.msra.mxu0 0.0
      %2743 = vmatpush.msra.mxu0 %v2686
      %2744 = vmatmul.f32.gmra.mxu0 %v2680
      %v2745 = vpop.f32.mrf.mxu0
      %v2746 = vadd.f32 0.0, %v2745
      %2747 = vdwg.mxu0
      %v2748 = vadd.f32 %v2657, %v2706
      %v2749 = vadd.f32 %v2658, %v2726
      %v2750 = vadd.f32 %v2659, %v2746
      %v2751 = vld [vmem:[%s315] sm:$0xff]
      %v2752 = vld [vmem:[%s315 + $0x8] sm:$0xf]
      %2753 = vrot.lane.b32.xlu0 %v1679, 104
      %v2754 = vpop.permute.xlu0 %2753
      %2757 = vst [vmem:[#allocation1] ss:$2 sm:$0xff] %v2751
      %s2758 = scalar_lea.vmem [#allocation1], 16
      %2759 = vst [vmem:[%s2758] ss:$2 sm:$0xff] %v2752
      %v2760 = vld.sshfl [vmem:[#allocation1] sm:$0xff pattern:$0x75316420]
      %v2761 = vld.sshfl [vmem:[#allocation1 + $0x8] sm:$0xff pattern:$0x75316420]
      %v2762 = vld.sshfl [vmem:[#allocation1 + $0x10] sm:$0xff pattern:$0x75316420]
      %2763 = vrot.lane.b32.xlu0 %v2760, 92
      %v2764 = vpop.permute.xlu0 %2763
      %2765 = vrot.lane.b32.xlu0 %v2761, 92
      %v2766 = vpop.permute.xlu0 %2765
      %2767 = vrot.lane.b32.xlu0 %v2762, 92
      %v2768 = vpop.permute.xlu0 %2767
      %vm2769 = vcmask 752640
      %v2770 = vsel %vm2769, %v2764, %v2766
      %v2771 = vsel %vm2769, %v2766, %v2768
      %v2772 = vsel %vm1693, %v2754, 0
      %v2774 = vsel %vm1614, %v2770, 0
      %v2776 = vsel %vm1614, %v2771, 0
      %v2778 = vsel %vm1614, %v2768, 0
      %2780 = vmatpush.msra.mxu0 0.0
      %2781 = vmatpush.msra.mxu0 0.0
      %2782 = vmatpush.msra.mxu0 0.0
      %2783 = vmatpush.msra.mxu0 0.0
      %2784 = vmatpush.msra.mxu0 0.0
      %2785 = vmatpush.msra.mxu0 0.0
      %2786 = vmatpush.msra.mxu0 0.0
      %2787 = vmatpush.msra.mxu0 0.0
      %2788 = vmatpush.msra.mxu0 0.0
      %2789 = vmatpush.msra.mxu0 0.0
      %2790 = vmatpush.msra.mxu0 0.0
      %2791 = vmatpush.msra.mxu0 0.0
      %2792 = vmatpush.msra.mxu0 0.0
      %2793 = vmatpush.msra.mxu0 0.0
      %2794 = vmatpush.msra.mxu0 0.0
      %2795 = vmatpush.msra.mxu0 %v2774
      %2796 = vmatmul.f32.gmra.mxu0 %v2772
      %v2797 = vpop.f32.mrf.mxu0
      %v2798 = vadd.f32 0.0, %v2797
      %2799 = vdwg.mxu0
      %2800 = vmatpush.msra.mxu0 0.0
      %2801 = vmatpush.msra.mxu0 0.0
      %2802 = vmatpush.msra.mxu0 0.0
      %2803 = vmatpush.msra.mxu0 0.0
      %2804 = vmatpush.msra.mxu0 0.0
      %2805 = vmatpush.msra.mxu0 0.0
      %2806 = vmatpush.msra.mxu0 0.0
      %2807 = vmatpush.msra.mxu0 0.0
      %2808 = vmatpush.msra.mxu0 0.0
      %2809 = vmatpush.msra.mxu0 0.0
      %2810 = vmatpush.msra.mxu0 0.0
      %2811 = vmatpush.msra.mxu0 0.0
      %2812 = vmatpush.msra.mxu0 0.0
      %2813 = vmatpush.msra.mxu0 0.0
      %2814 = vmatpush.msra.mxu0 0.0
      %2815 = vmatpush.msra.mxu0 %v2776
      %2816 = vmatmul.f32.gmra.mxu0 %v2772
      %v2817 = vpop.f32.mrf.mxu0
      %v2818 = vadd.f32 0.0, %v2817
      %2819 = vdwg.mxu0
      %2820 = vmatpush.msra.mxu0 0.0
      %2821 = vmatpush.msra.mxu0 0.0
      %2822 = vmatpush.msra.mxu0 0.0
      %2823 = vmatpush.msra.mxu0 0.0
      %2824 = vmatpush.msra.mxu0 0.0
      %2825 = vmatpush.msra.mxu0 0.0
      %2826 = vmatpush.msra.mxu0 0.0
      %2827 = vmatpush.msra.mxu0 0.0
      %2828 = vmatpush.msra.mxu0 0.0
      %2829 = vmatpush.msra.mxu0 0.0
      %2830 = vmatpush.msra.mxu0 0.0
      %2831 = vmatpush.msra.mxu0 0.0
      %2832 = vmatpush.msra.mxu0 0.0
      %2833 = vmatpush.msra.mxu0 0.0
      %2834 = vmatpush.msra.mxu0 0.0
      %2835 = vmatpush.msra.mxu0 %v2778
      %2836 = vmatmul.f32.gmra.mxu0 %v2772
      %v2837 = vpop.f32.mrf.mxu0
      %v2838 = vadd.f32 0.0, %v2837
      %2839 = vdwg.mxu0
      %v2840 = vadd.f32 %v2748, %v2798
      %v2841 = vadd.f32 %v2749, %v2818
      %v2842 = vadd.f32 %v2750, %v2838
      %v2843 = vld [vmem:[#allocation2] sm:$0xff]
      %v2844 = vld [vmem:[#allocation2 + $0x8] sm:$0xf]
      %2845 = vrot.lane.b32.xlu0 %v1680, 104
      %v2846 = vpop.permute.xlu0 %2845
      %2849 = vst [vmem:[#allocation1] ss:$2 sm:$0xff] %v2843
      %s2850 = scalar_lea.vmem [#allocation1], 16
      %2851 = vst [vmem:[%s2850] ss:$2 sm:$0xff] %v2844
      %v2852 = vld.sshfl [vmem:[#allocation1] sm:$0xff pattern:$0x75316420]
      %v2853 = vld.sshfl [vmem:[#allocation1 + $0x8] sm:$0xff pattern:$0x75316420]
      %v2854 = vld.sshfl [vmem:[#allocation1 + $0x10] sm:$0xff pattern:$0x75316420]
      %2855 = vrot.lane.b32.xlu0 %v2852, 92
      %v2856 = vpop.permute.xlu0 %2855
      %2857 = vrot.lane.b32.xlu0 %v2853, 92
      %v2858 = vpop.permute.xlu0 %2857
      %2859 = vrot.lane.b32.xlu0 %v2854, 92
      %v2860 = vpop.permute.xlu0 %2859
      %v2861 = vsel %vm2769, %v2856, %v2858
      %v2862 = vsel %vm2769, %v2858, %v2860
      %v2863 = vsel %vm1693, %v2846, 0
      %v2865 = vsel %vm1614, %v2861, 0
      %v2867 = vsel %vm1614, %v2862, 0
      %v2869 = vsel %vm1614, %v2860, 0
      %2871 = vmatpush.msra.mxu0 0.0
      %2872 = vmatpush.msra.mxu0 0.0
      %2873 = vmatpush.msra.mxu0 0.0
      %2874 = vmatpush.msra.mxu0 0.0
      %2875 = vmatpush.msra.mxu0 0.0
      %2876 = vmatpush.msra.mxu0 0.0
      %2877 = vmatpush.msra.mxu0 0.0
      %2878 = vmatpush.msra.mxu0 0.0
      %2879 = vmatpush.msra.mxu0 0.0
      %2880 = vmatpush.msra.mxu0 0.0
      %2881 = vmatpush.msra.mxu0 0.0
      %2882 = vmatpush.msra.mxu0 0.0
      %2883 = vmatpush.msra.mxu0 0.0
      %2884 = vmatpush.msra.mxu0 0.0
      %2885 = vmatpush.msra.mxu0 0.0
      %2886 = vmatpush.msra.mxu0 %v2865
      %2887 = vmatmul.f32.gmra.mxu0 %v2863
      %v2888 = vpop.f32.mrf.mxu0
      %v2889 = vadd.f32 0.0, %v2888
      %2890 = vdwg.mxu0
      %2891 = vmatpush.msra.mxu0 0.0
      %2892 = vmatpush.msra.mxu0 0.0
      %2893 = vmatpush.msra.mxu0 0.0
      %2894 = vmatpush.msra.mxu0 0.0
      %2895 = vmatpush.msra.mxu0 0.0
      %2896 = vmatpush.msra.mxu0 0.0
      %2897 = vmatpush.msra.mxu0 0.0
      %2898 = vmatpush.msra.mxu0 0.0
      %2899 = vmatpush.msra.mxu0 0.0
      %2900 = vmatpush.msra.mxu0 0.0
      %2901 = vmatpush.msra.mxu0 0.0
      %2902 = vmatpush.msra.mxu0 0.0
      %2903 = vmatpush.msra.mxu0 0.0
      %2904 = vmatpush.msra.mxu0 0.0
      %2905 = vmatpush.msra.mxu0 0.0
      %2906 = vmatpush.msra.mxu0 %v2867
      %2907 = vmatmul.f32.gmra.mxu0 %v2863
      %v2908 = vpop.f32.mrf.mxu0
      %v2909 = vadd.f32 0.0, %v2908
      %2910 = vdwg.mxu0
      %2911 = vmatpush.msra.mxu0 0.0
      %2912 = vmatpush.msra.mxu0 0.0
      %2913 = vmatpush.msra.mxu0 0.0
      %2914 = vmatpush.msra.mxu0 0.0
      %2915 = vmatpush.msra.mxu0 0.0
      %2916 = vmatpush.msra.mxu0 0.0
      %2917 = vmatpush.msra.mxu0 0.0
      %2918 = vmatpush.msra.mxu0 0.0
      %2919 = vmatpush.msra.mxu0 0.0
      %2920 = vmatpush.msra.mxu0 0.0
      %2921 = vmatpush.msra.mxu0 0.0
      %2922 = vmatpush.msra.mxu0 0.0
      %2923 = vmatpush.msra.mxu0 0.0
      %2924 = vmatpush.msra.mxu0 0.0
      %2925 = vmatpush.msra.mxu0 0.0
      %2926 = vmatpush.msra.mxu0 %v2869
      %2927 = vmatmul.f32.gmra.mxu0 %v2863
      %v2928 = vpop.f32.mrf.mxu0
      %v2929 = vadd.f32 0.0, %v2928
      %2930 = vdwg.mxu0
      %v2931 = vadd.f32 %v2840, %v2889
      %v2932 = vadd.f32 %v2841, %v2909
      %v2933 = vadd.f32 %v2842, %v2929
      %v2934 = vld [vmem:[%s315] sm:$0xff]
      %v2935 = vld [vmem:[%s315 + $0x8] sm:$0xf]
      %2936 = vrot.lane.b32.xlu0 %v1679, 100
      %v2937 = vpop.permute.xlu0 %2936
      %2940 = vst [vmem:[#allocation1] ss:$2 sm:$0xff] %v2934
      %s2941 = scalar_lea.vmem [#allocation1], 16
      %2942 = vst [vmem:[%s2941] ss:$2 sm:$0xff] %v2935
      %v2943 = vld.sshfl [vmem:[#allocation1] sm:$0xff pattern:$0x75316420]
      %v2944 = vld.sshfl [vmem:[#allocation1 + $0x8] sm:$0xff pattern:$0x75316420]
      %v2945 = vld.sshfl [vmem:[#allocation1 + $0x10] sm:$0xff pattern:$0x75316420]
      %2946 = vrot.lane.b32.xlu0 %v2943, 91
      %v2947 = vpop.permute.xlu0 %2946
      %2948 = vrot.lane.b32.xlu0 %v2944, 91
      %v2949 = vpop.permute.xlu0 %2948
      %2950 = vrot.lane.b32.xlu0 %v2945, 91
      %v2951 = vpop.permute.xlu0 %2950
      %vm2952 = vcmask 744448
      %v2953 = vsel %vm2952, %v2947, %v2949
      %v2954 = vsel %vm2952, %v2949, %v2951
      %v2955 = vsel %vm1693, %v2937, 0
      %v2957 = vsel %vm1614, %v2953, 0
      %v2959 = vsel %vm1614, %v2954, 0
      %v2961 = vsel %vm1614, %v2951, 0
      %2963 = vmatpush.msra.mxu0 0.0
      %2964 = vmatpush.msra.mxu0 0.0
      %2965 = vmatpush.msra.mxu0 0.0
      %2966 = vmatpush.msra.mxu0 0.0
      %2967 = vmatpush.msra.mxu0 0.0
      %2968 = vmatpush.msra.mxu0 0.0
      %2969 = vmatpush.msra.mxu0 0.0
      %2970 = vmatpush.msra.mxu0 0.0
      %2971 = vmatpush.msra.mxu0 0.0
      %2972 = vmatpush.msra.mxu0 0.0
      %2973 = vmatpush.msra.mxu0 0.0
      %2974 = vmatpush.msra.mxu0 0.0
      %2975 = vmatpush.msra.mxu0 0.0
      %2976 = vmatpush.msra.mxu0 0.0
      %2977 = vmatpush.msra.mxu0 0.0
      %2978 = vmatpush.msra.mxu0 %v2957
      %2979 = vmatmul.f32.gmra.mxu0 %v2955
      %v2980 = vpop.f32.mrf.mxu0
      %v2981 = vadd.f32 0.0, %v2980
      %2982 = vdwg.mxu0
      %2983 = vmatpush.msra.mxu0 0.0
      %2984 = vmatpush.msra.mxu0 0.0
      %2985 = vmatpush.msra.mxu0 0.0
      %2986 = vmatpush.msra.mxu0 0.0
      %2987 = vmatpush.msra.mxu0 0.0
      %2988 = vmatpush.msra.mxu0 0.0
      %2989 = vmatpush.msra.mxu0 0.0
      %2990 = vmatpush.msra.mxu0 0.0
      %2991 = vmatpush.msra.mxu0 0.0
      %2992 = vmatpush.msra.mxu0 0.0
      %2993 = vmatpush.msra.mxu0 0.0
      %2994 = vmatpush.msra.mxu0 0.0
      %2995 = vmatpush.msra.mxu0 0.0
      %2996 = vmatpush.msra.mxu0 0.0
      %2997 = vmatpush.msra.mxu0 0.0
      %2998 = vmatpush.msra.mxu0 %v2959
      %2999 = vmatmul.f32.gmra.mxu0 %v2955
      %v3000 = vpop.f32.mrf.mxu0
      %v3001 = vadd.f32 0.0, %v3000
      %3002 = vdwg.mxu0
      %3003 = vmatpush.msra.mxu0 0.0
      %3004 = vmatpush.msra.mxu0 0.0
      %3005 = vmatpush.msra.mxu0 0.0
      %3006 = vmatpush.msra.mxu0 0.0
      %3007 = vmatpush.msra.mxu0 0.0
      %3008 = vmatpush.msra.mxu0 0.0
      %3009 = vmatpush.msra.mxu0 0.0
      %3010 = vmatpush.msra.mxu0 0.0
      %3011 = vmatpush.msra.mxu0 0.0
      %3012 = vmatpush.msra.mxu0 0.0
      %3013 = vmatpush.msra.mxu0 0.0
      %3014 = vmatpush.msra.mxu0 0.0
      %3015 = vmatpush.msra.mxu0 0.0
      %3016 = vmatpush.msra.mxu0 0.0
      %3017 = vmatpush.msra.mxu0 0.0
      %3018 = vmatpush.msra.mxu0 %v2961
      %3019 = vmatmul.f32.gmra.mxu0 %v2955
      %v3020 = vpop.f32.mrf.mxu0
      %v3021 = vadd.f32 0.0, %v3020
      %3022 = vdwg.mxu0
      %v3023 = vadd.f32 %v2931, %v2981
      %v3024 = vadd.f32 %v2932, %v3001
      %v3025 = vadd.f32 %v2933, %v3021
      %v3026 = vld [vmem:[#allocation2] sm:$0xff]
      %v3027 = vld [vmem:[#allocation2 + $0x8] sm:$0xf]
      %3028 = vrot.lane.b32.xlu0 %v1680, 100
      %v3029 = vpop.permute.xlu0 %3028
      %3032 = vst [vmem:[#allocation1] ss:$2 sm:$0xff] %v3026
      %s3033 = scalar_lea.vmem [#allocation1], 16
      %3034 = vst [vmem:[%s3033] ss:$2 sm:$0xff] %v3027
      %v3035 = vld.sshfl [vmem:[#allocation1] sm:$0xff pattern:$0x75316420]
      %v3036 = vld.sshfl [vmem:[#allocation1 + $0x8] sm:$0xff pattern:$0x75316420]
      %v3037 = vld.sshfl [vmem:[#allocation1 + $0x10] sm:$0xff pattern:$0x75316420]
      %3038 = vrot.lane.b32.xlu0 %v3035, 91
      %v3039 = vpop.permute.xlu0 %3038
      %3040 = vrot.lane.b32.xlu0 %v3036, 91
      %v3041 = vpop.permute.xlu0 %3040
      %3042 = vrot.lane.b32.xlu0 %v3037, 91
      %v3043 = vpop.permute.xlu0 %3042
      %v3044 = vsel %vm2952, %v3039, %v3041
      %v3045 = vsel %vm2952, %v3041, %v3043
      %v3046 = vsel %vm1693, %v3029, 0
      %v3048 = vsel %vm1614, %v3044, 0
      %v3050 = vsel %vm1614, %v3045, 0
      %v3052 = vsel %vm1614, %v3043, 0
      %3054 = vmatpush.msra.mxu0 0.0
      %3055 = vmatpush.msra.mxu0 0.0
      %3056 = vmatpush.msra.mxu0 0.0
      %3057 = vmatpush.msra.mxu0 0.0
      %3058 = vmatpush.msra.mxu0 0.0
      %3059 = vmatpush.msra.mxu0 0.0
      %3060 = vmatpush.msra.mxu0 0.0
      %3061 = vmatpush.msra.mxu0 0.0
      %3062 = vmatpush.msra.mxu0 0.0
      %3063 = vmatpush.msra.mxu0 0.0
      %3064 = vmatpush.msra.mxu0 0.0
      %3065 = vmatpush.msra.mxu0 0.0
      %3066 = vmatpush.msra.mxu0 0.0
      %3067 = vmatpush.msra.mxu0 0.0
      %3068 = vmatpush.msra.mxu0 0.0
      %3069 = vmatpush.msra.mxu0 %v3048
      %3070 = vmatmul.f32.gmra.mxu0 %v3046
      %v3071 = vpop.f32.mrf.mxu0
      %v3072 = vadd.f32 0.0, %v3071
      %3073 = vdwg.mxu0
      %3074 = vmatpush.msra.mxu0 0.0
      %3075 = vmatpush.msra.mxu0 0.0
      %3076 = vmatpush.msra.mxu0 0.0
      %3077 = vmatpush.msra.mxu0 0.0
      %3078 = vmatpush.msra.mxu0 0.0
      %3079 = vmatpush.msra.mxu0 0.0
      %3080 = vmatpush.msra.mxu0 0.0
      %3081 = vmatpush.msra.mxu0 0.0
      %3082 = vmatpush.msra.mxu0 0.0
      %3083 = vmatpush.msra.mxu0 0.0
      %3084 = vmatpush.msra.mxu0 0.0
      %3085 = vmatpush.msra.mxu0 0.0
      %3086 = vmatpush.msra.mxu0 0.0
      %3087 = vmatpush.msra.mxu0 0.0
      %3088 = vmatpush.msra.mxu0 0.0
      %3089 = vmatpush.msra.mxu0 %v3050
      %3090 = vmatmul.f32.gmra.mxu0 %v3046
      %v3091 = vpop.f32.mrf.mxu0
      %v3092 = vadd.f32 0.0, %v3091
      %3093 = vdwg.mxu0
      %3094 = vmatpush.msra.mxu0 0.0
      %3095 = vmatpush.msra.mxu0 0.0
      %3096 = vmatpush.msra.mxu0 0.0
      %3097 = vmatpush.msra.mxu0 0.0
      %3098 = vmatpush.msra.mxu0 0.0
      %3099 = vmatpush.msra.mxu0 0.0
      %3100 = vmatpush.msra.mxu0 0.0
      %3101 = vmatpush.msra.mxu0 0.0
      %3102 = vmatpush.msra.mxu0 0.0
      %3103 = vmatpush.msra.mxu0 0.0
      %3104 = vmatpush.msra.mxu0 0.0
      %3105 = vmatpush.msra.mxu0 0.0
      %3106 = vmatpush.msra.mxu0 0.0
      %3107 = vmatpush.msra.mxu0 0.0
      %3108 = vmatpush.msra.mxu0 0.0
      %3109 = vmatpush.msra.mxu0 %v3052
      %3110 = vmatmul.f32.gmra.mxu0 %v3046
      %v3111 = vpop.f32.mrf.mxu0
      %v3112 = vadd.f32 0.0, %v3111
      %3113 = vdwg.mxu0
      %v3114 = vadd.f32 %v3023, %v3072
      %v3115 = vadd.f32 %v3024, %v3092
      %v3116 = vadd.f32 %v3025, %v3112
      %v3117 = vld [vmem:[%s315] sm:$0xff]
      %v3118 = vld [vmem:[%s315 + $0x8] sm:$0xf]
      %3119 = vrot.lane.b32.xlu0 %v1679, 96
      %v3120 = vpop.permute.xlu0 %3119
      %3123 = vst [vmem:[#allocation1] ss:$2 sm:$0xff] %v3117
      %s3124 = scalar_lea.vmem [#allocation1], 16
      %3125 = vst [vmem:[%s3124] ss:$2 sm:$0xff] %v3118
      %v3126 = vld.sshfl [vmem:[#allocation1] sm:$0xff pattern:$0x75316420]
      %v3127 = vld.sshfl [vmem:[#allocation1 + $0x8] sm:$0xff pattern:$0x75316420]
      %v3128 = vld.sshfl [vmem:[#allocation1 + $0x10] sm:$0xff pattern:$0x75316420]
      %3129 = vrot.lane.b32.xlu0 %v3126, 90
      %v3130 = vpop.permute.xlu0 %3129
      %3131 = vrot.lane.b32.xlu0 %v3127, 90
      %v3132 = vpop.permute.xlu0 %3131
      %3133 = vrot.lane.b32.xlu0 %v3128, 90
      %v3134 = vpop.permute.xlu0 %3133
      %v3135 = vsel %vm955, %v3130, %v3132
      %v3136 = vsel %vm955, %v3132, %v3134
      %v3137 = vsel %vm1693, %v3120, 0
      %v3139 = vsel %vm1614, %v3135, 0
      %v3141 = vsel %vm1614, %v3136, 0
      %v3143 = vsel %vm1614, %v3134, 0
      %3145 = vmatpush.msra.mxu0 0.0
      %3146 = vmatpush.msra.mxu0 0.0
      %3147 = vmatpush.msra.mxu0 0.0
      %3148 = vmatpush.msra.mxu0 0.0
      %3149 = vmatpush.msra.mxu0 0.0
      %3150 = vmatpush.msra.mxu0 0.0
      %3151 = vmatpush.msra.mxu0 0.0
      %3152 = vmatpush.msra.mxu0 0.0
      %3153 = vmatpush.msra.mxu0 0.0
      %3154 = vmatpush.msra.mxu0 0.0
      %3155 = vmatpush.msra.mxu0 0.0
      %3156 = vmatpush.msra.mxu0 0.0
      %3157 = vmatpush.msra.mxu0 0.0
      %3158 = vmatpush.msra.mxu0 0.0
      %3159 = vmatpush.msra.mxu0 0.0
      %3160 = vmatpush.msra.mxu0 %v3139
      %3161 = vmatmul.f32.gmra.mxu0 %v3137
      %v3162 = vpop.f32.mrf.mxu0
      %v3163 = vadd.f32 0.0, %v3162
      %3164 = vdwg.mxu0
      %3165 = vmatpush.msra.mxu0 0.0
      %3166 = vmatpush.msra.mxu0 0.0
      %3167 = vmatpush.msra.mxu0 0.0
      %3168 = vmatpush.msra.mxu0 0.0
      %3169 = vmatpush.msra.mxu0 0.0
      %3170 = vmatpush.msra.mxu0 0.0
      %3171 = vmatpush.msra.mxu0 0.0
      %3172 = vmatpush.msra.mxu0 0.0
      %3173 = vmatpush.msra.mxu0 0.0
      %3174 = vmatpush.msra.mxu0 0.0
      %3175 = vmatpush.msra.mxu0 0.0
      %3176 = vmatpush.msra.mxu0 0.0
      %3177 = vmatpush.msra.mxu0 0.0
      %3178 = vmatpush.msra.mxu0 0.0
      %3179 = vmatpush.msra.mxu0 0.0
      %3180 = vmatpush.msra.mxu0 %v3141
      %3181 = vmatmul.f32.gmra.mxu0 %v3137
      %v3182 = vpop.f32.mrf.mxu0
      %v3183 = vadd.f32 0.0, %v3182
      %3184 = vdwg.mxu0
      %3185 = vmatpush.msra.mxu0 0.0
      %3186 = vmatpush.msra.mxu0 0.0
      %3187 = vmatpush.msra.mxu0 0.0
      %3188 = vmatpush.msra.mxu0 0.0
      %3189 = vmatpush.msra.mxu0 0.0
      %3190 = vmatpush.msra.mxu0 0.0
      %3191 = vmatpush.msra.mxu0 0.0
      %3192 = vmatpush.msra.mxu0 0.0
      %3193 = vmatpush.msra.mxu0 0.0
      %3194 = vmatpush.msra.mxu0 0.0
      %3195 = vmatpush.msra.mxu0 0.0
      %3196 = vmatpush.msra.mxu0 0.0
      %3197 = vmatpush.msra.mxu0 0.0
      %3198 = vmatpush.msra.mxu0 0.0
      %3199 = vmatpush.msra.mxu0 0.0
      %3200 = vmatpush.msra.mxu0 %v3143
      %3201 = vmatmul.f32.gmra.mxu0 %v3137
      %v3202 = vpop.f32.mrf.mxu0
      %v3203 = vadd.f32 0.0, %v3202
      %3204 = vdwg.mxu0
      %v3205 = vadd.f32 %v3114, %v3163
      %v3206 = vadd.f32 %v3115, %v3183
      %v3207 = vadd.f32 %v3116, %v3203
      %v3208 = vld [vmem:[#allocation2] sm:$0xff]
      %v3209 = vld [vmem:[#allocation2 + $0x8] sm:$0xf]
      %3210 = vrot.lane.b32.xlu0 %v1680, 96
      %v3211 = vpop.permute.xlu0 %3210
      %3214 = vst [vmem:[#allocation1] ss:$2 sm:$0xff] %v3208
      %s3215 = scalar_lea.vmem [#allocation1], 16
      %3216 = vst [vmem:[%s3215] ss:$2 sm:$0xff] %v3209
      %v3217 = vld.sshfl [vmem:[#allocation1] sm:$0xff pattern:$0x75316420]
      %v3218 = vld.sshfl [vmem:[#allocation1 + $0x8] sm:$0xff pattern:$0x75316420]
      %v3219 = vld.sshfl [vmem:[#allocation1 + $0x10] sm:$0xff pattern:$0x75316420]
      %3220 = vrot.lane.b32.xlu0 %v3217, 90
      %v3221 = vpop.permute.xlu0 %3220
      %3222 = vrot.lane.b32.xlu0 %v3218, 90
      %v3223 = vpop.permute.xlu0 %3222
      %3224 = vrot.lane.b32.xlu0 %v3219, 90
      %v3225 = vpop.permute.xlu0 %3224
      %v3226 = vsel %vm955, %v3221, %v3223
      %v3227 = vsel %vm955, %v3223, %v3225
      %v3228 = vsel %vm1693, %v3211, 0
      %v3230 = vsel %vm1614, %v3226, 0
      %v3232 = vsel %vm1614, %v3227, 0
      %v3234 = vsel %vm1614, %v3225, 0
      %3236 = vmatpush.msra.mxu0 0.0
      %3237 = vmatpush.msra.mxu0 0.0
      %3238 = vmatpush.msra.mxu0 0.0
      %3239 = vmatpush.msra.mxu0 0.0
      %3240 = vmatpush.msra.mxu0 0.0
      %3241 = vmatpush.msra.mxu0 0.0
      %3242 = vmatpush.msra.mxu0 0.0
      %3243 = vmatpush.msra.mxu0 0.0
      %3244 = vmatpush.msra.mxu0 0.0
      %3245 = vmatpush.msra.mxu0 0.0
      %3246 = vmatpush.msra.mxu0 0.0
      %3247 = vmatpush.msra.mxu0 0.0
      %3248 = vmatpush.msra.mxu0 0.0
      %3249 = vmatpush.msra.mxu0 0.0
      %3250 = vmatpush.msra.mxu0 0.0
      %3251 = vmatpush.msra.mxu0 %v3230
      %3252 = vmatmul.f32.gmra.mxu0 %v3228
      %v3253 = vpop.f32.mrf.mxu0
      %v3254 = vadd.f32 0.0, %v3253
      %3255 = vdwg.mxu0
      %3256 = vmatpush.msra.mxu0 0.0
      %3257 = vmatpush.msra.mxu0 0.0
      %3258 = vmatpush.msra.mxu0 0.0
      %3259 = vmatpush.msra.mxu0 0.0
      %3260 = vmatpush.msra.mxu0 0.0
      %3261 = vmatpush.msra.mxu0 0.0
      %3262 = vmatpush.msra.mxu0 0.0
      %3263 = vmatpush.msra.mxu0 0.0
      %3264 = vmatpush.msra.mxu0 0.0
      %3265 = vmatpush.msra.mxu0 0.0
      %3266 = vmatpush.msra.mxu0 0.0
      %3267 = vmatpush.msra.mxu0 0.0
      %3268 = vmatpush.msra.mxu0 0.0
      %3269 = vmatpush.msra.mxu0 0.0
      %3270 = vmatpush.msra.mxu0 0.0
      %3271 = vmatpush.msra.mxu0 %v3232
      %3272 = vmatmul.f32.gmra.mxu0 %v3228
      %v3273 = vpop.f32.mrf.mxu0
      %v3274 = vadd.f32 0.0, %v3273
      %3275 = vdwg.mxu0
      %3276 = vmatpush.msra.mxu0 0.0
      %3277 = vmatpush.msra.mxu0 0.0
      %3278 = vmatpush.msra.mxu0 0.0
      %3279 = vmatpush.msra.mxu0 0.0
      %3280 = vmatpush.msra.mxu0 0.0
      %3281 = vmatpush.msra.mxu0 0.0
      %3282 = vmatpush.msra.mxu0 0.0
      %3283 = vmatpush.msra.mxu0 0.0
      %3284 = vmatpush.msra.mxu0 0.0
      %3285 = vmatpush.msra.mxu0 0.0
      %3286 = vmatpush.msra.mxu0 0.0
      %3287 = vmatpush.msra.mxu0 0.0
      %3288 = vmatpush.msra.mxu0 0.0
      %3289 = vmatpush.msra.mxu0 0.0
      %3290 = vmatpush.msra.mxu0 0.0
      %3291 = vmatpush.msra.mxu0 %v3234
      %3292 = vmatmul.f32.gmra.mxu0 %v3228
      %v3293 = vpop.f32.mrf.mxu0
      %v3294 = vadd.f32 0.0, %v3293
      %3295 = vdwg.mxu0
      %v3296 = vadd.f32 %v3205, %v3254
      %v3297 = vadd.f32 %v3206, %v3274
      %v3298 = vadd.f32 %v3207, %v3294
      %v3299 = vld [vmem:[%s6] sm:$0xf]
      %3301 = vset.pattern.permute.xlu0 0
      %3302 = vperm.xlu0 %3301, %v3299
      %v3303 = vpop.permute.xlu0 %3302
      %v3305 = vmul.f32 %v3296, %v3303
      %v3306 = vmul.f32 %v3297, %v3303
      %v3307 = vmul.f32 %v3298, %v3303
      %v3308 = vld [vmem:[%s7] sm:$0xf]
      %3310 = vset.pattern.permute.xlu0 0
      %3311 = vperm.xlu0 %3310, %v3308
      %v3312 = vpop.permute.xlu0 %3311
      %v3314 = vadd.f32 %v3305, %v3312
      %v3315 = vadd.f32 %v3306, %v3312
      %v3316 = vadd.f32 %v3307, %v3312
      %3317 = vst [vmem:[#allocation3] sm:$0xff] 0.0
      %3318 = vst [vmem:[#allocation3 + $0x8] sm:$0xf] 0.0
      %3320 = vrot.lane.b32.xlu0 %v3314, 19
      %v3321 = vpop.permute.xlu0 %3320
      %3323 = vst.msk [vmem:[#allocation3] sm:$0xf] %vm1585, %v3321
      %3324 = vst.msk [vmem:[#allocation3] sm:$0xf] %vm1590, %v3321
      %3325 = vst.msk [vmem:[#allocation3] sm:$0xf] %vm1595, %v3321
      %3326 = vst.msk [vmem:[#allocation3] sm:$0xf] %vm1600, %v3321
      %3327 = vst.msk [vmem:[#allocation3] sm:$0xf] %vm1605, %v3321
      %3328 = vst.msk [vmem:[#allocation3] sm:$0xf] %vm1610, %v3321
      %v3329 = vrot.slane %v3321, 4
      %vm3330 = vcmask 154624
      %v3331 = vsel %vm3330, %v3329, %v3321
      %3333 = vst.msk [vmem:[#allocation3] sm:$0xff] %vm1624, %v3331
      %v3335 = vrot.slane %v3315, 4
      %v3336 = vsel %vm1614, %v3314, %v3335
      %3337 = vrot.lane.b32.xlu0 %v3336, 19
      %v3338 = vpop.permute.xlu0 %3337
      %v3339 = vrot.slane %v3338, 4
      %v3340 = vsel %vm3330, %v3338, %v3339
      %3342 = vst.msk [vmem:[#allocation3 + $0x4] sm:$0xf] %vm1629, %v3340
      %3343 = vrot.lane.b32.xlu0 %v3315, 19
      %v3344 = vpop.permute.xlu0 %3343
      %3346 = vst.msk [vmem:[#allocation3 + $0x4] sm:$0xf] %vm1634, %v3344
      %3347 = vst.msk [vmem:[#allocation3 + $0x4] sm:$0xf] %vm1639, %v3344
      %3348 = vst.msk [vmem:[#allocation3 + $0x4] sm:$0xf] %vm1644, %v3344
      %3349 = vst.msk [vmem:[#allocation3 + $0x4] sm:$0xf] %vm1649, %v3344
      %3350 = vst.msk [vmem:[#allocation3 + $0x4] sm:$0xf] %vm1654, %v3344
      %v3351 = vrot.slane %v3344, 4
      %v3352 = vsel %vm3330, %v3351, %v3344
      %3354 = vst.msk [vmem:[#allocation3 + $0x4] sm:$0xff] %vm1667, %v3352
      %v3356 = vrot.slane %v3316, 4
      %v3357 = vsel %vm1614, %v3315, %v3356
      %3358 = vrot.lane.b32.xlu0 %v3357, 19
      %v3359 = vpop.permute.xlu0 %3358
      %v3360 = vrot.slane %v3359, 4
      %v3361 = vsel %vm3330, %v3359, %v3360
      %3363 = vst.msk [vmem:[#allocation3 + $0x8] sm:$0xf] %vm1672, %v3361
      %3364 = vrot.lane.b32.xlu0 %v3316, 19
      %v3365 = vpop.permute.xlu0 %3364
      %3367 = vst.msk [vmem:[#allocation3 + $0x8] sm:$0xf] %vm1677, %v3365
      %v3368 = vld [vmem:[%s5] sm:$0xf]
      %v3369 = vld [vmem:[#allocation3] sm:$0xff]
      %v3370 = vld [vmem:[#allocation3 + $0x8] sm:$0xf]
      %3372 = vrot.lane.b32.xlu0 %v3368, 124
      %v3373 = vpop.permute.xlu0 %3372
      %3376 = vst [vmem:[#allocation1] ss:$2 sm:$0xff] %v3369
      %s3377 = scalar_lea.vmem [#allocation1], 16
      %3378 = vst [vmem:[%s3377] ss:$2 sm:$0xff] %v3370
      %v3379 = vld.sshfl [vmem:[#allocation1] sm:$0xff pattern:$0x75316420]
      %v3380 = vld.sshfl [vmem:[#allocation1 + $0x8] sm:$0xff pattern:$0x75316420]
      %v3381 = vld.sshfl [vmem:[#allocation1 + $0x10] sm:$0xff pattern:$0x75316420]
      %3382 = vrot.lane.b32.xlu0 %v3379, 127
      %v3383 = vpop.permute.xlu0 %3382
      %3384 = vrot.lane.b32.xlu0 %v3380, 127
      %v3385 = vpop.permute.xlu0 %3384
      %3386 = vrot.lane.b32.xlu0 %v3381, 127
      %v3387 = vpop.permute.xlu0 %3386
      %v3388 = vsel %vm342, %v3383, %v3385
      %v3389 = vsel %vm342, %v3385, %v3387
      %v3390 = vsel %vm1693, %v3373, 0
      %v3392 = vsel %vm1614, %v3388, 0
      %v3394 = vsel %vm1614, %v3389, 0
      %v3396 = vsel %vm1614, %v3387, 0
      %3398 = vmatpush.msra.mxu0 0.0
      %3399 = vmatpush.msra.mxu0 0.0
      %3400 = vmatpush.msra.mxu0 0.0
      %3401 = vmatpush.msra.mxu0 0.0
      %3402 = vmatpush.msra.mxu0 0.0
      %3403 = vmatpush.msra.mxu0 0.0
      %3404 = vmatpush.msra.mxu0 0.0
      %3405 = vmatpush.msra.mxu0 0.0
      %3406 = vmatpush.msra.mxu0 0.0
      %3407 = vmatpush.msra.mxu0 0.0
      %3408 = vmatpush.msra.mxu0 0.0
      %3409 = vmatpush.msra.mxu0 0.0
      %3410 = vmatpush.msra.mxu0 0.0
      %3411 = vmatpush.msra.mxu0 0.0
      %3412 = vmatpush.msra.mxu0 0.0
      %3413 = vmatpush.msra.mxu0 %v3392
      %3414 = vmatmul.f32.gmra.mxu0 %v3390
      %v3415 = vpop.f32.mrf.mxu0
      %v3416 = vadd.f32 0.0, %v3415
      %3417 = vdwg.mxu0
      %3418 = vmatpush.msra.mxu0 0.0
      %3419 = vmatpush.msra.mxu0 0.0
      %3420 = vmatpush.msra.mxu0 0.0
      %3421 = vmatpush.msra.mxu0 0.0
      %3422 = vmatpush.msra.mxu0 0.0
      %3423 = vmatpush.msra.mxu0 0.0
      %3424 = vmatpush.msra.mxu0 0.0
      %3425 = vmatpush.msra.mxu0 0.0
      %3426 = vmatpush.msra.mxu0 0.0
      %3427 = vmatpush.msra.mxu0 0.0
      %3428 = vmatpush.msra.mxu0 0.0
      %3429 = vmatpush.msra.mxu0 0.0
      %3430 = vmatpush.msra.mxu0 0.0
      %3431 = vmatpush.msra.mxu0 0.0
      %3432 = vmatpush.msra.mxu0 0.0
      %3433 = vmatpush.msra.mxu0 %v3394
      %3434 = vmatmul.f32.gmra.mxu0 %v3390
      %v3435 = vpop.f32.mrf.mxu0
      %v3436 = vadd.f32 0.0, %v3435
      %3437 = vdwg.mxu0
      %3438 = vmatpush.msra.mxu0 0.0
      %3439 = vmatpush.msra.mxu0 0.0
      %3440 = vmatpush.msra.mxu0 0.0
      %3441 = vmatpush.msra.mxu0 0.0
      %3442 = vmatpush.msra.mxu0 0.0
      %3443 = vmatpush.msra.mxu0 0.0
      %3444 = vmatpush.msra.mxu0 0.0
      %3445 = vmatpush.msra.mxu0 0.0
      %3446 = vmatpush.msra.mxu0 0.0
      %3447 = vmatpush.msra.mxu0 0.0
      %3448 = vmatpush.msra.mxu0 0.0
      %3449 = vmatpush.msra.mxu0 0.0
      %3450 = vmatpush.msra.mxu0 0.0
      %3451 = vmatpush.msra.mxu0 0.0
      %3452 = vmatpush.msra.mxu0 0.0
      %3453 = vmatpush.msra.mxu0 %v3396
      %3454 = vmatmul.f32.gmra.mxu0 %v3390
      %v3455 = vpop.f32.mrf.mxu0
      %v3456 = vadd.f32 0.0, %v3455
      %3457 = vdwg.mxu0
      %3458 = vst [vmem:[#allocation1] ss:$2 sm:$0xff] %v3369
      %s3459 = scalar_lea.vmem [#allocation1], 16
      %3460 = vst [vmem:[%s3459] ss:$2 sm:$0xff] %v3370
      %v3461 = vld.sshfl [vmem:[#allocation1] sm:$0xff pattern:$0x75316420]
      %v3462 = vld.sshfl [vmem:[#allocation1 + $0x8] sm:$0xff pattern:$0x75316420]
      %v3463 = vld.sshfl [vmem:[#allocation1 + $0x10] sm:$0xff pattern:$0x75316420]
      %v3464 = vsel %vm1693, %v3368, 0
      %v3466 = vsel %vm1614, %v3461, 0
      %v3468 = vsel %vm1614, %v3462, 0
      %v3470 = vsel %vm1614, %v3463, 0
      %3472 = vmatpush.msra.mxu0 0.0
      %3473 = vmatpush.msra.mxu0 0.0
      %3474 = vmatpush.msra.mxu0 0.0
      %3475 = vmatpush.msra.mxu0 0.0
      %3476 = vmatpush.msra.mxu0 0.0
      %3477 = vmatpush.msra.mxu0 0.0
      %3478 = vmatpush.msra.mxu0 0.0
      %3479 = vmatpush.msra.mxu0 0.0
      %3480 = vmatpush.msra.mxu0 0.0
      %3481 = vmatpush.msra.mxu0 0.0
      %3482 = vmatpush.msra.mxu0 0.0
      %3483 = vmatpush.msra.mxu0 0.0
      %3484 = vmatpush.msra.mxu0 0.0
      %3485 = vmatpush.msra.mxu0 0.0
      %3486 = vmatpush.msra.mxu0 0.0
      %3487 = vmatpush.msra.mxu0 %v3466
      %3488 = vmatmul.f32.gmra.mxu0 %v3464
      %v3489 = vpop.f32.mrf.mxu0
      %v3490 = vadd.f32 %v3416, %v3489
      %3491 = vdwg.mxu0
      %3492 = vmatpush.msra.mxu0 0.0
      %3493 = vmatpush.msra.mxu0 0.0
      %3494 = vmatpush.msra.mxu0 0.0
      %3495 = vmatpush.msra.mxu0 0.0
      %3496 = vmatpush.msra.mxu0 0.0
      %3497 = vmatpush.msra.mxu0 0.0
      %3498 = vmatpush.msra.mxu0 0.0
      %3499 = vmatpush.msra.mxu0 0.0
      %3500 = vmatpush.msra.mxu0 0.0
      %3501 = vmatpush.msra.mxu0 0.0
      %3502 = vmatpush.msra.mxu0 0.0
      %3503 = vmatpush.msra.mxu0 0.0
      %3504 = vmatpush.msra.mxu0 0.0
      %3505 = vmatpush.msra.mxu0 0.0
      %3506 = vmatpush.msra.mxu0 0.0
      %3507 = vmatpush.msra.mxu0 %v3468
      %3508 = vmatmul.f32.gmra.mxu0 %v3464
      %v3509 = vpop.f32.mrf.mxu0
      %v3510 = vadd.f32 %v3436, %v3509
      %3511 = vdwg.mxu0
      %3512 = vmatpush.msra.mxu0 0.0
      %3513 = vmatpush.msra.mxu0 0.0
      %3514 = vmatpush.msra.mxu0 0.0
      %3515 = vmatpush.msra.mxu0 0.0
      %3516 = vmatpush.msra.mxu0 0.0
      %3517 = vmatpush.msra.mxu0 0.0
      %3518 = vmatpush.msra.mxu0 0.0
      %3519 = vmatpush.msra.mxu0 0.0
      %3520 = vmatpush.msra.mxu0 0.0
      %3521 = vmatpush.msra.mxu0 0.0
      %3522 = vmatpush.msra.mxu0 0.0
      %3523 = vmatpush.msra.mxu0 0.0
      %3524 = vmatpush.msra.mxu0 0.0
      %3525 = vmatpush.msra.mxu0 0.0
      %3526 = vmatpush.msra.mxu0 0.0
      %3527 = vmatpush.msra.mxu0 %v3470
      %3528 = vmatmul.f32.gmra.mxu0 %v3464
      %v3529 = vpop.f32.mrf.mxu0
      %v3530 = vadd.f32 %v3456, %v3529
      %3531 = vdwg.mxu0
      %v3532 = vld [vmem:[#allocation3] sm:$0xff]
      %v3533 = vld [vmem:[#allocation3 + $0x8] sm:$0xf]
      %3534 = vrot.lane.b32.xlu0 %v3368, 120
      %v3535 = vpop.permute.xlu0 %3534
      %3538 = vst [vmem:[#allocation1] ss:$2 sm:$0xff] %v3532
      %s3539 = scalar_lea.vmem [#allocation1], 16
      %3540 = vst [vmem:[%s3539] ss:$2 sm:$0xff] %v3533
      %v3541 = vld.sshfl [vmem:[#allocation1] sm:$0xff pattern:$0x75316420]
      %v3542 = vld.sshfl [vmem:[#allocation1 + $0x8] sm:$0xff pattern:$0x75316420]
      %v3543 = vld.sshfl [vmem:[#allocation1 + $0x10] sm:$0xff pattern:$0x75316420]
      %3544 = vrot.lane.b32.xlu0 %v3541, 126
      %v3545 = vpop.permute.xlu0 %3544
      %3546 = vrot.lane.b32.xlu0 %v3542, 126
      %v3547 = vpop.permute.xlu0 %3546
      %3548 = vrot.lane.b32.xlu0 %v3543, 126
      %v3549 = vpop.permute.xlu0 %3548
      %v3550 = vsel %vm481, %v3545, %v3547
      %v3551 = vsel %vm481, %v3547, %v3549
      %v3552 = vsel %vm1693, %v3535, 0
      %v3554 = vsel %vm1614, %v3550, 0
      %v3556 = vsel %vm1614, %v3551, 0
      %v3558 = vsel %vm1614, %v3549, 0
      %3560 = vmatpush.msra.mxu0 0.0
      %3561 = vmatpush.msra.mxu0 0.0
      %3562 = vmatpush.msra.mxu0 0.0
      %3563 = vmatpush.msra.mxu0 0.0
      %3564 = vmatpush.msra.mxu0 0.0
      %3565 = vmatpush.msra.mxu0 0.0
      %3566 = vmatpush.msra.mxu0 0.0
      %3567 = vmatpush.msra.mxu0 0.0
      %3568 = vmatpush.msra.mxu0 0.0
      %3569 = vmatpush.msra.mxu0 0.0
      %3570 = vmatpush.msra.mxu0 0.0
      %3571 = vmatpush.msra.mxu0 0.0
      %3572 = vmatpush.msra.mxu0 0.0
      %3573 = vmatpush.msra.mxu0 0.0
      %3574 = vmatpush.msra.mxu0 0.0
      %3575 = vmatpush.msra.mxu0 %v3554
      %3576 = vmatmul.f32.gmra.mxu0 %v3552
      %v3577 = vpop.f32.mrf.mxu0
      %v3578 = vadd.f32 0.0, %v3577
      %3579 = vdwg.mxu0
      %3580 = vmatpush.msra.mxu0 0.0
      %3581 = vmatpush.msra.mxu0 0.0
      %3582 = vmatpush.msra.mxu0 0.0
      %3583 = vmatpush.msra.mxu0 0.0
      %3584 = vmatpush.msra.mxu0 0.0
      %3585 = vmatpush.msra.mxu0 0.0
      %3586 = vmatpush.msra.mxu0 0.0
      %3587 = vmatpush.msra.mxu0 0.0
      %3588 = vmatpush.msra.mxu0 0.0
      %3589 = vmatpush.msra.mxu0 0.0
      %3590 = vmatpush.msra.mxu0 0.0
      %3591 = vmatpush.msra.mxu0 0.0
      %3592 = vmatpush.msra.mxu0 0.0
      %3593 = vmatpush.msra.mxu0 0.0
      %3594 = vmatpush.msra.mxu0 0.0
      %3595 = vmatpush.msra.mxu0 %v3556
      %3596 = vmatmul.f32.gmra.mxu0 %v3552
      %v3597 = vpop.f32.mrf.mxu0
      %v3598 = vadd.f32 0.0, %v3597
      %3599 = vdwg.mxu0
      %3600 = vmatpush.msra.mxu0 0.0
      %3601 = vmatpush.msra.mxu0 0.0
      %3602 = vmatpush.msra.mxu0 0.0
      %3603 = vmatpush.msra.mxu0 0.0
      %3604 = vmatpush.msra.mxu0 0.0
      %3605 = vmatpush.msra.mxu0 0.0
      %3606 = vmatpush.msra.mxu0 0.0
      %3607 = vmatpush.msra.mxu0 0.0
      %3608 = vmatpush.msra.mxu0 0.0
      %3609 = vmatpush.msra.mxu0 0.0
      %3610 = vmatpush.msra.mxu0 0.0
      %3611 = vmatpush.msra.mxu0 0.0
      %3612 = vmatpush.msra.mxu0 0.0
      %3613 = vmatpush.msra.mxu0 0.0
      %3614 = vmatpush.msra.mxu0 0.0
      %3615 = vmatpush.msra.mxu0 %v3558
      %3616 = vmatmul.f32.gmra.mxu0 %v3552
      %v3617 = vpop.f32.mrf.mxu0
      %v3618 = vadd.f32 0.0, %v3617
      %3619 = vdwg.mxu0
      %v3620 = vadd.f32 %v3490, %v3578
      %v3621 = vadd.f32 %v3510, %v3598
      %v3622 = vadd.f32 %v3530, %v3618
      %v3623 = vld [vmem:[#allocation3] sm:$0xff]
      %v3624 = vld [vmem:[#allocation3 + $0x8] sm:$0xf]
      %3625 = vrot.lane.b32.xlu0 %v3368, 116
      %v3626 = vpop.permute.xlu0 %3625
      %3629 = vst [vmem:[#allocation1] ss:$2 sm:$0xff] %v3623
      %s3630 = scalar_lea.vmem [#allocation1], 16
      %3631 = vst [vmem:[%s3630] ss:$2 sm:$0xff] %v3624
      %v3632 = vld.sshfl [vmem:[#allocation1] sm:$0xff pattern:$0x75316420]
      %v3633 = vld.sshfl [vmem:[#allocation1 + $0x8] sm:$0xff pattern:$0x75316420]
      %v3634 = vld.sshfl [vmem:[#allocation1 + $0x10] sm:$0xff pattern:$0x75316420]
      %3635 = vrot.lane.b32.xlu0 %v3632, 110
      %v3636 = vpop.permute.xlu0 %3635
      %3637 = vrot.lane.b32.xlu0 %v3633, 110
      %v3638 = vpop.permute.xlu0 %3637
      %3639 = vrot.lane.b32.xlu0 %v3634, 110
      %v3640 = vpop.permute.xlu0 %3639
      %v3641 = vsel %vm2222, %v3636, %v3638
      %v3642 = vsel %vm2222, %v3638, %v3640
      %v3643 = vsel %vm1693, %v3626, 0
      %v3645 = vsel %vm1614, %v3641, 0
      %v3647 = vsel %vm1614, %v3642, 0
      %v3649 = vsel %vm1614, %v3640, 0
      %3651 = vmatpush.msra.mxu0 0.0
      %3652 = vmatpush.msra.mxu0 0.0
      %3653 = vmatpush.msra.mxu0 0.0
      %3654 = vmatpush.msra.mxu0 0.0
      %3655 = vmatpush.msra.mxu0 0.0
      %3656 = vmatpush.msra.mxu0 0.0
      %3657 = vmatpush.msra.mxu0 0.0
      %3658 = vmatpush.msra.mxu0 0.0
      %3659 = vmatpush.msra.mxu0 0.0
      %3660 = vmatpush.msra.mxu0 0.0
      %3661 = vmatpush.msra.mxu0 0.0
      %3662 = vmatpush.msra.mxu0 0.0
      %3663 = vmatpush.msra.mxu0 0.0
      %3664 = vmatpush.msra.mxu0 0.0
      %3665 = vmatpush.msra.mxu0 0.0
      %3666 = vmatpush.msra.mxu0 %v3645
      %3667 = vmatmul.f32.gmra.mxu0 %v3643
      %v3668 = vpop.f32.mrf.mxu0
      %v3669 = vadd.f32 0.0, %v3668
      %3670 = vdwg.mxu0
      %3671 = vmatpush.msra.mxu0 0.0
      %3672 = vmatpush.msra.mxu0 0.0
      %3673 = vmatpush.msra.mxu0 0.0
      %3674 = vmatpush.msra.mxu0 0.0
      %3675 = vmatpush.msra.mxu0 0.0
      %3676 = vmatpush.msra.mxu0 0.0
      %3677 = vmatpush.msra.mxu0 0.0
      %3678 = vmatpush.msra.mxu0 0.0
      %3679 = vmatpush.msra.mxu0 0.0
      %3680 = vmatpush.msra.mxu0 0.0
      %3681 = vmatpush.msra.mxu0 0.0
      %3682 = vmatpush.msra.mxu0 0.0
      %3683 = vmatpush.msra.mxu0 0.0
      %3684 = vmatpush.msra.mxu0 0.0
      %3685 = vmatpush.msra.mxu0 0.0
      %3686 = vmatpush.msra.mxu0 %v3647
      %3687 = vmatmul.f32.gmra.mxu0 %v3643
      %v3688 = vpop.f32.mrf.mxu0
      %v3689 = vadd.f32 0.0, %v3688
      %3690 = vdwg.mxu0
      %3691 = vmatpush.msra.mxu0 0.0
      %3692 = vmatpush.msra.mxu0 0.0
      %3693 = vmatpush.msra.mxu0 0.0
      %3694 = vmatpush.msra.mxu0 0.0
      %3695 = vmatpush.msra.mxu0 0.0
      %3696 = vmatpush.msra.mxu0 0.0
      %3697 = vmatpush.msra.mxu0 0.0
      %3698 = vmatpush.msra.mxu0 0.0
      %3699 = vmatpush.msra.mxu0 0.0
      %3700 = vmatpush.msra.mxu0 0.0
      %3701 = vmatpush.msra.mxu0 0.0
      %3702 = vmatpush.msra.mxu0 0.0
      %3703 = vmatpush.msra.mxu0 0.0
      %3704 = vmatpush.msra.mxu0 0.0
      %3705 = vmatpush.msra.mxu0 0.0
      %3706 = vmatpush.msra.mxu0 %v3649
      %3707 = vmatmul.f32.gmra.mxu0 %v3643
      %v3708 = vpop.f32.mrf.mxu0
      %v3709 = vadd.f32 0.0, %v3708
      %3710 = vdwg.mxu0
      %v3711 = vadd.f32 %v3620, %v3669
      %v3712 = vadd.f32 %v3621, %v3689
      %v3713 = vadd.f32 %v3622, %v3709
      %v3714 = vld [vmem:[#allocation3] sm:$0xff]
      %v3715 = vld [vmem:[#allocation3 + $0x8] sm:$0xf]
      %3716 = vrot.lane.b32.xlu0 %v3368, 112
      %v3717 = vpop.permute.xlu0 %3716
      %3720 = vst [vmem:[#allocation1] ss:$2 sm:$0xff] %v3714
      %s3721 = scalar_lea.vmem [#allocation1], 16
      %3722 = vst [vmem:[%s3721] ss:$2 sm:$0xff] %v3715
      %v3723 = vld.sshfl [vmem:[#allocation1] sm:$0xff pattern:$0x75316420]
      %v3724 = vld.sshfl [vmem:[#allocation1 + $0x8] sm:$0xff pattern:$0x75316420]
      %v3725 = vld.sshfl [vmem:[#allocation1 + $0x10] sm:$0xff pattern:$0x75316420]
      %3726 = vrot.lane.b32.xlu0 %v3723, 109
      %v3727 = vpop.permute.xlu0 %3726
      %3728 = vrot.lane.b32.xlu0 %v3724, 109
      %v3729 = vpop.permute.xlu0 %3728
      %3730 = vrot.lane.b32.xlu0 %v3725, 109
      %v3731 = vpop.permute.xlu0 %3730
      %v3732 = vsel %vm639, %v3727, %v3729
      %v3733 = vsel %vm639, %v3729, %v3731
      %v3734 = vsel %vm1693, %v3717, 0
      %v3736 = vsel %vm1614, %v3732, 0
      %v3738 = vsel %vm1614, %v3733, 0
      %v3740 = vsel %vm1614, %v3731, 0
      %3742 = vmatpush.msra.mxu0 0.0
      %3743 = vmatpush.msra.mxu0 0.0
      %3744 = vmatpush.msra.mxu0 0.0
      %3745 = vmatpush.msra.mxu0 0.0
      %3746 = vmatpush.msra.mxu0 0.0
      %3747 = vmatpush.msra.mxu0 0.0
      %3748 = vmatpush.msra.mxu0 0.0
      %3749 = vmatpush.msra.mxu0 0.0
      %3750 = vmatpush.msra.mxu0 0.0
      %3751 = vmatpush.msra.mxu0 0.0
      %3752 = vmatpush.msra.mxu0 0.0
      %3753 = vmatpush.msra.mxu0 0.0
      %3754 = vmatpush.msra.mxu0 0.0
      %3755 = vmatpush.msra.mxu0 0.0
      %3756 = vmatpush.msra.mxu0 0.0
      %3757 = vmatpush.msra.mxu0 %v3736
      %3758 = vmatmul.f32.gmra.mxu0 %v3734
      %v3759 = vpop.f32.mrf.mxu0
      %v3760 = vadd.f32 0.0, %v3759
      %3761 = vdwg.mxu0
      %3762 = vmatpush.msra.mxu0 0.0
      %3763 = vmatpush.msra.mxu0 0.0
      %3764 = vmatpush.msra.mxu0 0.0
      %3765 = vmatpush.msra.mxu0 0.0
      %3766 = vmatpush.msra.mxu0 0.0
      %3767 = vmatpush.msra.mxu0 0.0
      %3768 = vmatpush.msra.mxu0 0.0
      %3769 = vmatpush.msra.mxu0 0.0
      %3770 = vmatpush.msra.mxu0 0.0
      %3771 = vmatpush.msra.mxu0 0.0
      %3772 = vmatpush.msra.mxu0 0.0
      %3773 = vmatpush.msra.mxu0 0.0
      %3774 = vmatpush.msra.mxu0 0.0
      %3775 = vmatpush.msra.mxu0 0.0
      %3776 = vmatpush.msra.mxu0 0.0
      %3777 = vmatpush.msra.mxu0 %v3738
      %3778 = vmatmul.f32.gmra.mxu0 %v3734
      %v3779 = vpop.f32.mrf.mxu0
      %v3780 = vadd.f32 0.0, %v3779
      %3781 = vdwg.mxu0
      %3782 = vmatpush.msra.mxu0 0.0
      %3783 = vmatpush.msra.mxu0 0.0
      %3784 = vmatpush.msra.mxu0 0.0
      %3785 = vmatpush.msra.mxu0 0.0
      %3786 = vmatpush.msra.mxu0 0.0
      %3787 = vmatpush.msra.mxu0 0.0
      %3788 = vmatpush.msra.mxu0 0.0
      %3789 = vmatpush.msra.mxu0 0.0
      %3790 = vmatpush.msra.mxu0 0.0
      %3791 = vmatpush.msra.mxu0 0.0
      %3792 = vmatpush.msra.mxu0 0.0
      %3793 = vmatpush.msra.mxu0 0.0
      %3794 = vmatpush.msra.mxu0 0.0
      %3795 = vmatpush.msra.mxu0 0.0
      %3796 = vmatpush.msra.mxu0 0.0
      %3797 = vmatpush.msra.mxu0 %v3740
      %3798 = vmatmul.f32.gmra.mxu0 %v3734
      %v3799 = vpop.f32.mrf.mxu0
      %v3800 = vadd.f32 0.0, %v3799
      %3801 = vdwg.mxu0
      %v3802 = vadd.f32 %v3711, %v3760
      %v3803 = vadd.f32 %v3712, %v3780
      %v3804 = vadd.f32 %v3713, %v3800
      %v3805 = vld [vmem:[#allocation3] sm:$0xff]
      %v3806 = vld [vmem:[#allocation3 + $0x8] sm:$0xf]
      %3807 = vrot.lane.b32.xlu0 %v3368, 108
      %v3808 = vpop.permute.xlu0 %3807
      %3811 = vst [vmem:[#allocation1] ss:$2 sm:$0xff] %v3805
      %s3812 = scalar_lea.vmem [#allocation1], 16
      %3813 = vst [vmem:[%s3812] ss:$2 sm:$0xff] %v3806
      %v3814 = vld.sshfl [vmem:[#allocation1] sm:$0xff pattern:$0x75316420]
      %v3815 = vld.sshfl [vmem:[#allocation1 + $0x8] sm:$0xff pattern:$0x75316420]
      %v3816 = vld.sshfl [vmem:[#allocation1 + $0x10] sm:$0xff pattern:$0x75316420]
      %3817 = vrot.lane.b32.xlu0 %v3814, 108
      %v3818 = vpop.permute.xlu0 %3817
      %3819 = vrot.lane.b32.xlu0 %v3815, 108
      %v3820 = vpop.permute.xlu0 %3819
      %3821 = vrot.lane.b32.xlu0 %v3816, 108
      %v3822 = vpop.permute.xlu0 %3821
      %v3823 = vsel %vm718, %v3818, %v3820
      %v3824 = vsel %vm718, %v3820, %v3822
      %v3825 = vsel %vm1693, %v3808, 0
      %v3827 = vsel %vm1614, %v3823, 0
      %v3829 = vsel %vm1614, %v3824, 0
      %v3831 = vsel %vm1614, %v3822, 0
      %3833 = vmatpush.msra.mxu0 0.0
      %3834 = vmatpush.msra.mxu0 0.0
      %3835 = vmatpush.msra.mxu0 0.0
      %3836 = vmatpush.msra.mxu0 0.0
      %3837 = vmatpush.msra.mxu0 0.0
      %3838 = vmatpush.msra.mxu0 0.0
      %3839 = vmatpush.msra.mxu0 0.0
      %3840 = vmatpush.msra.mxu0 0.0
      %3841 = vmatpush.msra.mxu0 0.0
      %3842 = vmatpush.msra.mxu0 0.0
      %3843 = vmatpush.msra.mxu0 0.0
      %3844 = vmatpush.msra.mxu0 0.0
      %3845 = vmatpush.msra.mxu0 0.0
      %3846 = vmatpush.msra.mxu0 0.0
      %3847 = vmatpush.msra.mxu0 0.0
      %3848 = vmatpush.msra.mxu0 %v3827
      %3849 = vmatmul.f32.gmra.mxu0 %v3825
      %v3850 = vpop.f32.mrf.mxu0
      %v3851 = vadd.f32 0.0, %v3850
      %3852 = vdwg.mxu0
      %3853 = vmatpush.msra.mxu0 0.0
      %3854 = vmatpush.msra.mxu0 0.0
      %3855 = vmatpush.msra.mxu0 0.0
      %3856 = vmatpush.msra.mxu0 0.0
      %3857 = vmatpush.msra.mxu0 0.0
      %3858 = vmatpush.msra.mxu0 0.0
      %3859 = vmatpush.msra.mxu0 0.0
      %3860 = vmatpush.msra.mxu0 0.0
      %3861 = vmatpush.msra.mxu0 0.0
      %3862 = vmatpush.msra.mxu0 0.0
      %3863 = vmatpush.msra.mxu0 0.0
      %3864 = vmatpush.msra.mxu0 0.0
      %3865 = vmatpush.msra.mxu0 0.0
      %3866 = vmatpush.msra.mxu0 0.0
      %3867 = vmatpush.msra.mxu0 0.0
      %3868 = vmatpush.msra.mxu0 %v3829
      %3869 = vmatmul.f32.gmra.mxu0 %v3825
      %v3870 = vpop.f32.mrf.mxu0
      %v3871 = vadd.f32 0.0, %v3870
      %3872 = vdwg.mxu0
      %3873 = vmatpush.msra.mxu0 0.0
      %3874 = vmatpush.msra.mxu0 0.0
      %3875 = vmatpush.msra.mxu0 0.0
      %3876 = vmatpush.msra.mxu0 0.0
      %3877 = vmatpush.msra.mxu0 0.0
      %3878 = vmatpush.msra.mxu0 0.0
      %3879 = vmatpush.msra.mxu0 0.0
      %3880 = vmatpush.msra.mxu0 0.0
      %3881 = vmatpush.msra.mxu0 0.0
      %3882 = vmatpush.msra.mxu0 0.0
      %3883 = vmatpush.msra.mxu0 0.0
      %3884 = vmatpush.msra.mxu0 0.0
      %3885 = vmatpush.msra.mxu0 0.0
      %3886 = vmatpush.msra.mxu0 0.0
      %3887 = vmatpush.msra.mxu0 0.0
      %3888 = vmatpush.msra.mxu0 %v3831
      %3889 = vmatmul.f32.gmra.mxu0 %v3825
      %v3890 = vpop.f32.mrf.mxu0
      %v3891 = vadd.f32 0.0, %v3890
      %3892 = vdwg.mxu0
      %v3893 = vadd.f32 %v3802, %v3851
      %v3894 = vadd.f32 %v3803, %v3871
      %v3895 = vadd.f32 %v3804, %v3891
      %v3896 = vld [vmem:[#allocation3] sm:$0xff]
      %v3897 = vld [vmem:[#allocation3 + $0x8] sm:$0xf]
      %3898 = vrot.lane.b32.xlu0 %v3368, 104
      %v3899 = vpop.permute.xlu0 %3898
      %3902 = vst [vmem:[#allocation1] ss:$2 sm:$0xff] %v3896
      %s3903 = scalar_lea.vmem [#allocation1], 16
      %3904 = vst [vmem:[%s3903] ss:$2 sm:$0xff] %v3897
      %v3905 = vld.sshfl [vmem:[#allocation1] sm:$0xff pattern:$0x75316420]
      %v3906 = vld.sshfl [vmem:[#allocation1 + $0x8] sm:$0xff pattern:$0x75316420]
      %v3907 = vld.sshfl [vmem:[#allocation1 + $0x10] sm:$0xff pattern:$0x75316420]
      %3908 = vrot.lane.b32.xlu0 %v3905, 92
      %v3909 = vpop.permute.xlu0 %3908
      %3910 = vrot.lane.b32.xlu0 %v3906, 92
      %v3911 = vpop.permute.xlu0 %3910
      %3912 = vrot.lane.b32.xlu0 %v3907, 92
      %v3913 = vpop.permute.xlu0 %3912
      %v3914 = vsel %vm2769, %v3909, %v3911
      %v3915 = vsel %vm2769, %v3911, %v3913
      %v3916 = vsel %vm1693, %v3899, 0
      %v3918 = vsel %vm1614, %v3914, 0
      %v3920 = vsel %vm1614, %v3915, 0
      %v3922 = vsel %vm1614, %v3913, 0
      %3924 = vmatpush.msra.mxu0 0.0
      %3925 = vmatpush.msra.mxu0 0.0
      %3926 = vmatpush.msra.mxu0 0.0
      %3927 = vmatpush.msra.mxu0 0.0
      %3928 = vmatpush.msra.mxu0 0.0
      %3929 = vmatpush.msra.mxu0 0.0
      %3930 = vmatpush.msra.mxu0 0.0
      %3931 = vmatpush.msra.mxu0 0.0
      %3932 = vmatpush.msra.mxu0 0.0
      %3933 = vmatpush.msra.mxu0 0.0
      %3934 = vmatpush.msra.mxu0 0.0
      %3935 = vmatpush.msra.mxu0 0.0
      %3936 = vmatpush.msra.mxu0 0.0
      %3937 = vmatpush.msra.mxu0 0.0
      %3938 = vmatpush.msra.mxu0 0.0
      %3939 = vmatpush.msra.mxu0 %v3918
      %3940 = vmatmul.f32.gmra.mxu0 %v3916
      %v3941 = vpop.f32.mrf.mxu0
      %v3942 = vadd.f32 0.0, %v3941
      %3943 = vdwg.mxu0
      %3944 = vmatpush.msra.mxu0 0.0
      %3945 = vmatpush.msra.mxu0 0.0
      %3946 = vmatpush.msra.mxu0 0.0
      %3947 = vmatpush.msra.mxu0 0.0
      %3948 = vmatpush.msra.mxu0 0.0
      %3949 = vmatpush.msra.mxu0 0.0
      %3950 = vmatpush.msra.mxu0 0.0
      %3951 = vmatpush.msra.mxu0 0.0
      %3952 = vmatpush.msra.mxu0 0.0
      %3953 = vmatpush.msra.mxu0 0.0
      %3954 = vmatpush.msra.mxu0 0.0
      %3955 = vmatpush.msra.mxu0 0.0
      %3956 = vmatpush.msra.mxu0 0.0
      %3957 = vmatpush.msra.mxu0 0.0
      %3958 = vmatpush.msra.mxu0 0.0
      %3959 = vmatpush.msra.mxu0 %v3920
      %3960 = vmatmul.f32.gmra.mxu0 %v3916
      %v3961 = vpop.f32.mrf.mxu0
      %v3962 = vadd.f32 0.0, %v3961
      %3963 = vdwg.mxu0
      %3964 = vmatpush.msra.mxu0 0.0
      %3965 = vmatpush.msra.mxu0 0.0
      %3966 = vmatpush.msra.mxu0 0.0
      %3967 = vmatpush.msra.mxu0 0.0
      %3968 = vmatpush.msra.mxu0 0.0
      %3969 = vmatpush.msra.mxu0 0.0
      %3970 = vmatpush.msra.mxu0 0.0
      %3971 = vmatpush.msra.mxu0 0.0
      %3972 = vmatpush.msra.mxu0 0.0
      %3973 = vmatpush.msra.mxu0 0.0
      %3974 = vmatpush.msra.mxu0 0.0
      %3975 = vmatpush.msra.mxu0 0.0
      %3976 = vmatpush.msra.mxu0 0.0
      %3977 = vmatpush.msra.mxu0 0.0
      %3978 = vmatpush.msra.mxu0 0.0
      %3979 = vmatpush.msra.mxu0 %v3922
      %3980 = vmatmul.f32.gmra.mxu0 %v3916
      %v3981 = vpop.f32.mrf.mxu0
      %v3982 = vadd.f32 0.0, %v3981
      %3983 = vdwg.mxu0
      %v3984 = vadd.f32 %v3893, %v3942
      %v3985 = vadd.f32 %v3894, %v3962
      %v3986 = vadd.f32 %v3895, %v3982
      %v3987 = vld [vmem:[#allocation3] sm:$0xff]
      %v3988 = vld [vmem:[#allocation3 + $0x8] sm:$0xf]
      %3989 = vrot.lane.b32.xlu0 %v3368, 100
      %v3990 = vpop.permute.xlu0 %3989
      %3993 = vst [vmem:[#allocation1] ss:$2 sm:$0xff] %v3987
      %s3994 = scalar_lea.vmem [#allocation1], 16
      %3995 = vst [vmem:[%s3994] ss:$2 sm:$0xff] %v3988
      %v3996 = vld.sshfl [vmem:[#allocation1] sm:$0xff pattern:$0x75316420]
      %v3997 = vld.sshfl [vmem:[#allocation1 + $0x8] sm:$0xff pattern:$0x75316420]
      %v3998 = vld.sshfl [vmem:[#allocation1 + $0x10] sm:$0xff pattern:$0x75316420]
      %3999 = vrot.lane.b32.xlu0 %v3996, 91
      %v4000 = vpop.permute.xlu0 %3999
      %4001 = vrot.lane.b32.xlu0 %v3997, 91
      %v4002 = vpop.permute.xlu0 %4001
      %4003 = vrot.lane.b32.xlu0 %v3998, 91
      %v4004 = vpop.permute.xlu0 %4003
      %v4005 = vsel %vm2952, %v4000, %v4002
      %v4006 = vsel %vm2952, %v4002, %v4004
      %v4007 = vsel %vm1693, %v3990, 0
      %v4009 = vsel %vm1614, %v4005, 0
      %v4011 = vsel %vm1614, %v4006, 0
      %v4013 = vsel %vm1614, %v4004, 0
      %4015 = vmatpush.msra.mxu0 0.0
      %4016 = vmatpush.msra.mxu0 0.0
      %4017 = vmatpush.msra.mxu0 0.0
      %4018 = vmatpush.msra.mxu0 0.0
      %4019 = vmatpush.msra.mxu0 0.0
      %4020 = vmatpush.msra.mxu0 0.0
      %4021 = vmatpush.msra.mxu0 0.0
      %4022 = vmatpush.msra.mxu0 0.0
      %4023 = vmatpush.msra.mxu0 0.0
      %4024 = vmatpush.msra.mxu0 0.0
      %4025 = vmatpush.msra.mxu0 0.0
      %4026 = vmatpush.msra.mxu0 0.0
      %4027 = vmatpush.msra.mxu0 0.0
      %4028 = vmatpush.msra.mxu0 0.0
      %4029 = vmatpush.msra.mxu0 0.0
      %4030 = vmatpush.msra.mxu0 %v4009
      %4031 = vmatmul.f32.gmra.mxu0 %v4007
      %v4032 = vpop.f32.mrf.mxu0
      %v4033 = vadd.f32 0.0, %v4032
      %4034 = vdwg.mxu0
      %4035 = vmatpush.msra.mxu0 0.0
      %4036 = vmatpush.msra.mxu0 0.0
      %4037 = vmatpush.msra.mxu0 0.0
      %4038 = vmatpush.msra.mxu0 0.0
      %4039 = vmatpush.msra.mxu0 0.0
      %4040 = vmatpush.msra.mxu0 0.0
      %4041 = vmatpush.msra.mxu0 0.0
      %4042 = vmatpush.msra.mxu0 0.0
      %4043 = vmatpush.msra.mxu0 0.0
      %4044 = vmatpush.msra.mxu0 0.0
      %4045 = vmatpush.msra.mxu0 0.0
      %4046 = vmatpush.msra.mxu0 0.0
      %4047 = vmatpush.msra.mxu0 0.0
      %4048 = vmatpush.msra.mxu0 0.0
      %4049 = vmatpush.msra.mxu0 0.0
      %4050 = vmatpush.msra.mxu0 %v4011
      %4051 = vmatmul.f32.gmra.mxu0 %v4007
      %v4052 = vpop.f32.mrf.mxu0
      %v4053 = vadd.f32 0.0, %v4052
      %4054 = vdwg.mxu0
      %4055 = vmatpush.msra.mxu0 0.0
      %4056 = vmatpush.msra.mxu0 0.0
      %4057 = vmatpush.msra.mxu0 0.0
      %4058 = vmatpush.msra.mxu0 0.0
      %4059 = vmatpush.msra.mxu0 0.0
      %4060 = vmatpush.msra.mxu0 0.0
      %4061 = vmatpush.msra.mxu0 0.0
      %4062 = vmatpush.msra.mxu0 0.0
      %4063 = vmatpush.msra.mxu0 0.0
      %4064 = vmatpush.msra.mxu0 0.0
      %4065 = vmatpush.msra.mxu0 0.0
      %4066 = vmatpush.msra.mxu0 0.0
      %4067 = vmatpush.msra.mxu0 0.0
      %4068 = vmatpush.msra.mxu0 0.0
      %4069 = vmatpush.msra.mxu0 0.0
      %4070 = vmatpush.msra.mxu0 %v4013
      %4071 = vmatmul.f32.gmra.mxu0 %v4007
      %v4072 = vpop.f32.mrf.mxu0
      %v4073 = vadd.f32 0.0, %v4072
      %4074 = vdwg.mxu0
      %v4075 = vadd.f32 %v3984, %v4033
      %v4076 = vadd.f32 %v3985, %v4053
      %v4077 = vadd.f32 %v3986, %v4073
      %v4078 = vld [vmem:[#allocation3] sm:$0xff]
      %v4079 = vld [vmem:[#allocation3 + $0x8] sm:$0xf]
      %4080 = vrot.lane.b32.xlu0 %v3368, 96
      %v4081 = vpop.permute.xlu0 %4080
      %4084 = vst [vmem:[#allocation1] ss:$2 sm:$0xff] %v4078
      %s4085 = scalar_lea.vmem [#allocation1], 16
      %4086 = vst [vmem:[%s4085] ss:$2 sm:$0xff] %v4079
      %v4087 = vld.sshfl [vmem:[#allocation1] sm:$0xff pattern:$0x75316420]
      %v4088 = vld.sshfl [vmem:[#allocation1 + $0x8] sm:$0xff pattern:$0x75316420]
      %v4089 = vld.sshfl [vmem:[#allocation1 + $0x10] sm:$0xff pattern:$0x75316420]
      %4090 = vrot.lane.b32.xlu0 %v4087, 90
      %v4091 = vpop.permute.xlu0 %4090
      %4092 = vrot.lane.b32.xlu0 %v4088, 90
      %v4093 = vpop.permute.xlu0 %4092
      %4094 = vrot.lane.b32.xlu0 %v4089, 90
      %v4095 = vpop.permute.xlu0 %4094
      %v4096 = vsel %vm955, %v4091, %v4093
      %v4097 = vsel %vm955, %v4093, %v4095
      %v4098 = vsel %vm1693, %v4081, 0
      %v4100 = vsel %vm1614, %v4096, 0
      %v4102 = vsel %vm1614, %v4097, 0
      %v4104 = vsel %vm1614, %v4095, 0
      %4106 = vmatpush.msra.mxu0 0.0
      %4107 = vmatpush.msra.mxu0 0.0
      %4108 = vmatpush.msra.mxu0 0.0
      %4109 = vmatpush.msra.mxu0 0.0
      %4110 = vmatpush.msra.mxu0 0.0
      %4111 = vmatpush.msra.mxu0 0.0
      %4112 = vmatpush.msra.mxu0 0.0
      %4113 = vmatpush.msra.mxu0 0.0
      %4114 = vmatpush.msra.mxu0 0.0
      %4115 = vmatpush.msra.mxu0 0.0
      %4116 = vmatpush.msra.mxu0 0.0
      %4117 = vmatpush.msra.mxu0 0.0
      %4118 = vmatpush.msra.mxu0 0.0
      %4119 = vmatpush.msra.mxu0 0.0
      %4120 = vmatpush.msra.mxu0 0.0
      %4121 = vmatpush.msra.mxu0 %v4100
      %4122 = vmatmul.f32.gmra.mxu0 %v4098
      %v4123 = vpop.f32.mrf.mxu0
      %v4124 = vadd.f32 0.0, %v4123
      %4125 = vdwg.mxu0
      %4126 = vmatpush.msra.mxu0 0.0
      %4127 = vmatpush.msra.mxu0 0.0
      %4128 = vmatpush.msra.mxu0 0.0
      %4129 = vmatpush.msra.mxu0 0.0
      %4130 = vmatpush.msra.mxu0 0.0
      %4131 = vmatpush.msra.mxu0 0.0
      %4132 = vmatpush.msra.mxu0 0.0
      %4133 = vmatpush.msra.mxu0 0.0
      %4134 = vmatpush.msra.mxu0 0.0
      %4135 = vmatpush.msra.mxu0 0.0
      %4136 = vmatpush.msra.mxu0 0.0
      %4137 = vmatpush.msra.mxu0 0.0
      %4138 = vmatpush.msra.mxu0 0.0
      %4139 = vmatpush.msra.mxu0 0.0
      %4140 = vmatpush.msra.mxu0 0.0
      %4141 = vmatpush.msra.mxu0 %v4102
      %4142 = vmatmul.f32.gmra.mxu0 %v4098
      %v4143 = vpop.f32.mrf.mxu0
      %v4144 = vadd.f32 0.0, %v4143
      %4145 = vdwg.mxu0
      %4146 = vmatpush.msra.mxu0 0.0
      %4147 = vmatpush.msra.mxu0 0.0
      %4148 = vmatpush.msra.mxu0 0.0
      %4149 = vmatpush.msra.mxu0 0.0
      %4150 = vmatpush.msra.mxu0 0.0
      %4151 = vmatpush.msra.mxu0 0.0
      %4152 = vmatpush.msra.mxu0 0.0
      %4153 = vmatpush.msra.mxu0 0.0
      %4154 = vmatpush.msra.mxu0 0.0
      %4155 = vmatpush.msra.mxu0 0.0
      %4156 = vmatpush.msra.mxu0 0.0
      %4157 = vmatpush.msra.mxu0 0.0
      %4158 = vmatpush.msra.mxu0 0.0
      %4159 = vmatpush.msra.mxu0 0.0
      %4160 = vmatpush.msra.mxu0 0.0
      %4161 = vmatpush.msra.mxu0 %v4104
      %4162 = vmatmul.f32.gmra.mxu0 %v4098
      %v4163 = vpop.f32.mrf.mxu0
      %v4164 = vadd.f32 0.0, %v4163
      %4165 = vdwg.mxu0
      %v4166 = vadd.f32 %v4075, %v4124
      %v4167 = vadd.f32 %v4076, %v4144
      %v4168 = vadd.f32 %v4077, %v4164
      %v4169 = vmul.f32 %v4166, 0.5
      %v4170 = vmul.f32 %v4167, 0.5
      %v4171 = vmul.f32 %v4168, 0.5
      %v4172 = vmul.f32 %v4166, 0.70710677
      %v4173 = vmul.f32 %v4167, 0.70710677
      %v4174 = vmul.f32 %v4168, 0.70710677
      %v4175 = vmul.f32 %v4172, %v4172
      %v4176 = vmin.f32 16.0, %v4175
      %v4177 = vmul.f32 %v4176, 2.1237322e-06
      %v4178 = vadd.f32 %v4177, 0.00028619796
      %v4179 = vmul.f32 %v4176, %v4178
      %v4180 = vadd.f32 %v4179, 0.0036580483
      %v4181 = vmul.f32 %v4176, %v4180
      %v4182 = vadd.f32 %v4181, 0.05243302
      %v4183 = vmul.f32 %v4176, %v4182
      %v4184 = vadd.f32 %v4183, 0.18741608
      %v4185 = vmul.f32 %v4176, %v4184
      %v4186 = vadd.f32 %v4185, 1.1283791
      %v4187 = vmul.f32 %v4172, %v4186
      %v4188 = vmul.f32 %v4176, 3.8918573e-05
      %v4189 = vadd.f32 %v4188, 0.001143296
      %v4190 = vmul.f32 %v4176, %v4189
      %v4191 = vadd.f32 %v4190, 0.014752088
      %v4192 = vmul.f32 %v4176, %v4191
      %v4193 = vadd.f32 %v4192, 0.112945676
      %v4194 = vmul.f32 %v4176, %v4193
      %v4195 = vadd.f32 %v4194, 0.4994258
      %v4196 = vmul.f32 %v4176, %v4195
      %v4197 = vadd.f32 %v4196, 1.0
      %v4198 = vrcp.pop %v4197
      %v4199 = vmul.f32 %v4197, %v4198
      %v4200 = vsub.f32 1.0, %v4199
      %v4201 = vmul.f32 %v4198, %v4200
      %v4202 = vadd.f32 %v4198, %v4201
      %vm4203 = vweird.f32 %v4197
      %vm4204 = vweird.f32 %v4198
      %vm4205 = vmor %vm4203, %vm4204
      %v4206 = vsel %vm4205, %v4198, %v4202
      %v4207 = vand.u32 2147483647, %v4197
      %vm4208 = vcmp.eq.f32.partialorder %v4207, 8.507059e+37
      %v4209 = vand.u32 %v4197, 2147483648
      %v4210 = vor.u32 1.1754944e-38, %v4209
      %v4211 = vsel %vm4208, %v4210, %v4206
      %v4212 = vmul.f32 %v4187, %v4211
      %v4213 = vmin.f32 %v4212, 1.0
      %v4214 = vmax.f32 %v4213, -1.0
      %v4215 = vmul.f32 %v4173, %v4173
      %v4216 = vmin.f32 16.0, %v4215
      %v4217 = vmul.f32 %v4216, 2.1237322e-06
      %v4218 = vadd.f32 %v4217, 0.00028619796
      %v4219 = vmul.f32 %v4216, %v4218
      %v4220 = vadd.f32 %v4219, 0.0036580483
      %v4221 = vmul.f32 %v4216, %v4220
      %v4222 = vadd.f32 %v4221, 0.05243302
      %v4223 = vmul.f32 %v4216, %v4222
      %v4224 = vadd.f32 %v4223, 0.18741608
      %v4225 = vmul.f32 %v4216, %v4224
      %v4226 = vadd.f32 %v4225, 1.1283791
      %v4227 = vmul.f32 %v4173, %v4226
      %v4228 = vmul.f32 %v4216, 3.8918573e-05
      %v4229 = vadd.f32 %v4228, 0.001143296
      %v4230 = vmul.f32 %v4216, %v4229
      %v4231 = vadd.f32 %v4230, 0.014752088
      %v4232 = vmul.f32 %v4216, %v4231
      %v4233 = vadd.f32 %v4232, 0.112945676
      %v4234 = vmul.f32 %v4216, %v4233
      %v4235 = vadd.f32 %v4234, 0.4994258
      %v4236 = vmul.f32 %v4216, %v4235
      %v4237 = vadd.f32 %v4236, 1.0
      %v4238 = vrcp.pop %v4237
      %v4239 = vmul.f32 %v4237, %v4238
      %v4240 = vsub.f32 1.0, %v4239
      %v4241 = vmul.f32 %v4238, %v4240
      %v4242 = vadd.f32 %v4238, %v4241
      %vm4243 = vweird.f32 %v4237
      %vm4244 = vweird.f32 %v4238
      %vm4245 = vmor %vm4243, %vm4244
      %v4246 = vsel %vm4245, %v4238, %v4242
      %v4247 = vand.u32 2147483647, %v4237
      %vm4248 = vcmp.eq.f32.partialorder %v4247, 8.507059e+37
      %v4249 = vand.u32 %v4237, 2147483648
      %v4250 = vor.u32 1.1754944e-38, %v4249
      %v4251 = vsel %vm4248, %v4250, %v4246
      %v4252 = vmul.f32 %v4227, %v4251
      %v4253 = vmin.f32 %v4252, 1.0
      %v4254 = vmax.f32 %v4253, -1.0
      %v4255 = vmul.f32 %v4174, %v4174
      %v4256 = vmin.f32 16.0, %v4255
      %v4257 = vmul.f32 %v4256, 2.1237322e-06
      %v4258 = vadd.f32 %v4257, 0.00028619796
      %v4259 = vmul.f32 %v4256, %v4258
      %v4260 = vadd.f32 %v4259, 0.0036580483
      %v4261 = vmul.f32 %v4256, %v4260
      %v4262 = vadd.f32 %v4261, 0.05243302
      %v4263 = vmul.f32 %v4256, %v4262
      %v4264 = vadd.f32 %v4263, 0.18741608
      %v4265 = vmul.f32 %v4256, %v4264
      %v4266 = vadd.f32 %v4265, 1.1283791
      %v4267 = vmul.f32 %v4174, %v4266
      %v4268 = vmul.f32 %v4256, 3.8918573e-05
      %v4269 = vadd.f32 %v4268, 0.001143296
      %v4270 = vmul.f32 %v4256, %v4269
      %v4271 = vadd.f32 %v4270, 0.014752088
      %v4272 = vmul.f32 %v4256, %v4271
      %v4273 = vadd.f32 %v4272, 0.112945676
      %v4274 = vmul.f32 %v4256, %v4273
      %v4275 = vadd.f32 %v4274, 0.4994258
      %v4276 = vmul.f32 %v4256, %v4275
      %v4277 = vadd.f32 %v4276, 1.0
      %v4278 = vrcp.pop %v4277
      %v4279 = vmul.f32 %v4277, %v4278
      %v4280 = vsub.f32 1.0, %v4279
      %v4281 = vmul.f32 %v4278, %v4280
      %v4282 = vadd.f32 %v4278, %v4281
      %vm4283 = vweird.f32 %v4277
      %vm4284 = vweird.f32 %v4278
      %vm4285 = vmor %vm4283, %vm4284
      %v4286 = vsel %vm4285, %v4278, %v4282
      %v4287 = vand.u32 2147483647, %v4277
      %vm4288 = vcmp.eq.f32.partialorder %v4287, 8.507059e+37
      %v4289 = vand.u32 %v4277, 2147483648
      %v4290 = vor.u32 1.1754944e-38, %v4289
      %v4291 = vsel %vm4288, %v4290, %v4286
      %v4292 = vmul.f32 %v4267, %v4291
      %v4293 = vmin.f32 %v4292, 1.0
      %v4294 = vmax.f32 %v4293, -1.0
      %v4295 = vadd.f32 %v4214, 1.0
      %v4296 = vadd.f32 %v4254, 1.0
      %v4297 = vadd.f32 %v4294, 1.0
      %v4298 = vmul.f32 %v4169, %v4295
      %v4299 = vmul.f32 %v4170, %v4296
      %v4300 = vmul.f32 %v4171, %v4297
      %vm4301 = vcmask 125952
      %4302 = vst.msk [vmem:[%s325] sm:$0xf] %vm4301, %v4298
      %4304 = vrot.lane.b32.xlu0 %v4298, 126
      %v4305 = vpop.permute.xlu0 %4304
      %vm4307 = vcmask 257152
      %4308 = vst.msk [vmem:[%s325] sm:$0xf] %vm4307, %v4305
      %4309 = vrot.lane.b32.xlu0 %v4298, 124
      %v4310 = vpop.permute.xlu0 %4309
      %vm4312 = vcmask 388352
      %4313 = vst.msk [vmem:[%s325] sm:$0xf] %vm4312, %v4310
      %4314 = vrot.lane.b32.xlu0 %v4298, 122
      %v4315 = vpop.permute.xlu0 %4314
      %vm4317 = vcmask 519552
      %4318 = vst.msk [vmem:[%s325] sm:$0xf] %vm4317, %v4315
      %4319 = vrot.lane.b32.xlu0 %v4298, 120
      %v4320 = vpop.permute.xlu0 %4319
      %vm4322 = vcmask 650752
      %4323 = vst.msk [vmem:[%s325] sm:$0xf] %vm4322, %v4320
      %4324 = vrot.lane.b32.xlu0 %v4298, 118
      %v4325 = vpop.permute.xlu0 %4324
      %vm4327 = vcmask 781952
      %4328 = vst.msk [vmem:[%s325] sm:$0xf] %vm4327, %v4325
      %4329 = vrot.lane.b32.xlu0 %v4298, 116
      %v4330 = vpop.permute.xlu0 %4329
      %vm4332 = vcmask 913152
      %4333 = vst.msk [vmem:[%s325] sm:$0xf] %vm4332, %v4330
      %v4335 = vrot.slane %v4299, 4
      %v4336 = vsel %vm1614, %v4298, %v4335
      %4337 = vrot.lane.b32.xlu0 %v4336, 114
      %v4338 = vpop.permute.xlu0 %4337
      %v4339 = vrot.slane %v4338, 4
      %vm4340 = vcmask 932864
      %v4341 = vsel %vm4340, %v4338, %v4339
      %vm4343 = vcmask 1044352
      %4344 = vst.msk [vmem:[%s325] sm:$0xf] %vm4343, %v4341
      %4345 = vrot.lane.b32.xlu0 %v4299, 112
      %v4346 = vpop.permute.xlu0 %4345
      %4348 = vst.msk [vmem:[%s325 + $0x4] sm:$0xf] %vm4301, %v4346
      %4349 = vrot.lane.b32.xlu0 %v4299, 110
      %v4350 = vpop.permute.xlu0 %4349
      %4352 = vst.msk [vmem:[%s325 + $0x4] sm:$0xf] %vm4307, %v4350
      %4353 = vrot.lane.b32.xlu0 %v4299, 108
      %v4354 = vpop.permute.xlu0 %4353
      %4356 = vst.msk [vmem:[%s325 + $0x4] sm:$0xf] %vm4312, %v4354
      %4357 = vrot.lane.b32.xlu0 %v4299, 106
      %v4358 = vpop.permute.xlu0 %4357
      %4360 = vst.msk [vmem:[%s325 + $0x4] sm:$0xf] %vm4317, %v4358
      %4361 = vrot.lane.b32.xlu0 %v4299, 104
      %v4362 = vpop.permute.xlu0 %4361
      %4364 = vst.msk [vmem:[%s325 + $0x4] sm:$0xf] %vm4322, %v4362
      %4365 = vrot.lane.b32.xlu0 %v4299, 102
      %v4366 = vpop.permute.xlu0 %4365
      %4368 = vst.msk [vmem:[%s325 + $0x4] sm:$0xf] %vm4327, %v4366
      %v4370 = vrot.slane %v4300, 4
      %v4371 = vsel %vm1614, %v4299, %v4370
      %4372 = vrot.lane.b32.xlu0 %v4371, 100
      %v4373 = vpop.permute.xlu0 %4372
      %v4374 = vrot.slane %v4373, 4
      %vm4375 = vcmask 818176
      %v4376 = vsel %vm4375, %v4373, %v4374
      %4378 = vst.msk [vmem:[%s325 + $0x4] sm:$0xf] %vm4332, %v4376
      %4379 = vrot.lane.b32.xlu0 %v4300, 98
      %v4380 = vpop.permute.xlu0 %4379
      %4382 = vst.msk [vmem:[%s325 + $0x4] sm:$0xf] %vm4343, %v4380
      %p4383 = scmp.lt.s32.totalorder %s19, 1
      %s4384 = scalar_select %p4383, %s19, 1
      %s4385 = smul.addr %s4384, 2
      %s4386 = smul.addr %s4385, 4
      %s4387 = scalar_lea.vmem %s8, %s4386
      // Predicated region
      $region53: #{unet_up_forward.1} parent=51 // pred_check
        %p4388 = pneg %p215
      $region54: #{unet_up_forward.1} parent=51 // pred_check_branch
        %4390 = sbr.rel (%p4388) target = $region56
      $region55: #{unet_up_forward.1} parent=51 // pred_region
        _
      $region56: #{unet_up_forward.1} parent=51 // pred_fallthru
        _
    $region52: #{unet_up_forward.1} parent=5 // pred_fallthru
      _
    %p4391 = scmp.le.s32.totalorder 2, %s14
    // Predicated region
    $region57: #{unet_up_forward.1} parent=5 // pred_check
      %p4392 = pneg %p4391
    $region58: #{unet_up_forward.1} parent=5 // pred_check_branch
      %4394 = sbr.rel (%p4392) target = $region60
    $region59: #{unet_up_forward.1} parent=5 // pred_region
      %s4395 = ssub.s32 %s14, 2
      // Predicated region
      $region61: #{unet_up_forward.1} parent=59 // pred_check
        %p4396 = pneg %p221
      $region62: #{unet_up_forward.1} parent=59 // pred_check_branch
        %4398 = sbr.rel (%p4396) target = $region64
      $region63: #{unet_up_forward.1} parent=59 // pred_region
        %p4399 = scmp.lt.s32.totalorder %s20, 1
        %s4400 = scalar_select %p4399, %s20, 1
        %s4401 = smul.addr %s4400, 2
        %s4402 = smul.addr %s4401, 4
        %s4403 = scalar_lea.vmem %s8, %s4402
      $region64: #{unet_up_forward.1} parent=59 // pred_fallthru
        _
    $region60: #{unet_up_forward.1} parent=5 // pred_fallthru
      _
  $region6: #{unet_up_forward.1} parent=0 // loop_footer
    %s18 = sadd.s32 1, %s14
  $region7: #{unet_up_forward.1} parent=0 // loop_footer_branch
    %13 = sbr.rel target = $region3
  $region8: #{unet_up_forward.1} parent=0 // loop_exit
    _

</llo_original>
